<compile_context>
chip_gen: v6e
topology: v6e:2x2x1
jax: 0.10.0
libtpu: 0.0.40
codegen_flags: <defaults>
</compile_context>

<pallas_src>
import math
import functools

import jax
import jax.numpy as jnp
from jax import lax
from jax.experimental import pallas as pl
from jax.experimental.pallas import tpu as pltpu


EPS = 1e-5
NEG_INF = -1e30                       # additive key-padding mask (f32 softmax)
_APPROX_SOFTMAX_RECIP = True          # EUP reciprocal for the softmax denom
_VMEM_LIMIT = 48 * 1024 * 1024        # < v7x 64 MiB/TC, leaves compiler headroom


def _layernorm(x, gamma, beta):
    mu = jnp.mean(x, axis=-1, keepdims=True)
    var = jnp.mean((x - mu) ** 2, axis=-1, keepdims=True)
    return (x - mu) * lax.rsqrt(var + EPS) * gamma + beta


# --------------------------- pass 1: K/V projection ---------------------------

def kv_proj_kernel(x_ref, wkv_ref, bkv_ref, kv_ref):
    x_bf = x_ref[0].astype(jnp.bfloat16)                        # (TS, E)
    kv = jnp.dot(x_bf, wkv_ref[...],                            # (TS, 2E) f32
                 preferred_element_type=jnp.float32) + bkv_ref[...]
    kv_ref[0] = kv.astype(jnp.bfloat16)


def kv_proj_call(x, wkv, bkv, ts):
    B, S, E = x.shape
    twoE = wkv.shape[1]
    n_s = S // ts
    cost = pl.CostEstimate(
        flops=int(2 * B * S * E * twoE),
        transcendentals=0,
        bytes_accessed=int(4 * B * S * E + 2 * B * S * twoE + 2 * E * twoE))
    return pl.pallas_call(
        kv_proj_kernel,
        out_shape=jax.ShapeDtypeStruct((B, S, twoE), jnp.bfloat16),
        grid=(B, n_s),
        in_specs=[
            pl.BlockSpec((1, ts, E), lambda b, s: (b, s, 0)),
            pl.BlockSpec(wkv.shape, lambda b, s: (0, 0)),
            pl.BlockSpec(bkv.shape, lambda b, s: (0, 0)),
        ],
        out_specs=pl.BlockSpec((1, ts, twoE), lambda b, s: (b, s, 0)),
        compiler_params=pltpu.CompilerParams(
            dimension_semantics=("parallel", "parallel"),
            vmem_limit_bytes=_VMEM_LIMIT),
        cost_estimate=cost,
    )(x, wkv, bkv)


# ------------------ pass 2: fused attention + FFN + post-LN -------------------

def encoder_layer_kernel(xq_ref, kv_ref, mb_ref,
                         wq_ref, bq_ref, wo_ref, bo_ref,
                         w1_ref, b1_ref, w2_ref, b2_ref,
                         g1_ref, be1_ref, g2_ref, be2_ref,
                         o_ref, ctx_ref, *, nheads, head_dim, emb):
    x_q = xq_ref[0]                               # (TQ, E) f32 residual path
    mask_row = mb_ref[0]                          # (1, S) f32 additive key mask

    # Full-width Q projection; 1/sqrt(head_dim) already folded into wq / bq.
    q = jnp.dot(x_q.astype(jnp.bfloat16), wq_ref[...],
                preferred_element_type=jnp.float32) + bq_ref[...]
    q_bf = q.astype(jnp.bfloat16)

    # Per-head scores / softmax / p@v only; head_dim = 128 in the real config,
    # so every slice below is lane-aligned (no relayout, clean stores).
    for h in range(nheads):
        lo = h * head_dim
        qh = q_bf[:, lo:lo + head_dim]                          # (TQ, d) bf16
        kh = kv_ref[0, :, lo:lo + head_dim]                     # (S, d)  bf16
        vh = kv_ref[0, :, emb + lo:emb + lo + head_dim]         # (S, d)  bf16

        s = lax.dot_general(qh, kh, (((1,), (1,)), ((), ())),
                            preferred_element_type=jnp.float32)  # (TQ, S)
        s = s + mask_row                     # (1,S) broadcast inside the add
        s = s - jnp.max(s, axis=-1, keepdims=True)
        p = jnp.exp(s)
        denom = jnp.sum(p, axis=-1, keepdims=True)
        if _APPROX_SOFTMAX_RECIP:
            p = p * pl.reciprocal(denom, approx=True)            # EUP, not VPU
        else:
            p = p / denom

        ctx = jnp.dot(p.astype(jnp.bfloat16), vh,
                      preferred_element_type=jnp.float32)        # (TQ, d)
        ctx_ref[:, lo:lo + head_dim] = ctx.astype(jnp.bfloat16)

    # Single full-width output projection (no per-head accumulator RMW).
    attn = jnp.dot(ctx_ref[...], wo_ref[...],
                   preferred_element_type=jnp.float32) + bo_ref[...]
    y = _layernorm(x_q + attn, g1_ref[...], be1_ref[...])        # post-norm 1

    h1 = jnp.dot(y.astype(jnp.bfloat16), w1_ref[...],
                 preferred_element_type=jnp.float32) + b1_ref[...]
    h1 = jnp.maximum(h1, 0.0)                                    # relu
    ff = jnp.dot(h1.astype(jnp.bfloat16), w2_ref[...],
                 preferred_element_type=jnp.float32) + b2_ref[...]
    z = _layernorm(y + ff, g2_ref[...], be2_ref[...])            # post-norm 2

    o_ref[0] = z.astype(o_ref.dtype)


def _const_spec(arr):
    # Weights: one block = whole array, same block for every grid step -> the
    # pipeline does not re-DMA it between consecutive steps.
    nd = arr.ndim
    return pl.BlockSpec(arr.shape, lambda b, q, _nd=nd: (0,) * _nd)


def _choose_tile(seq_len):
    # Prefer 256 (fits v7x's 64 MiB VMEM with double-buffered bf16 K|V and
    # still pipelines on v5e/v6e); fall back to 128.  seq_len is always a
    # multiple of 128 (wrapper pads).
    if seq_len >= 256 and seq_len % 256 == 0:
        return 256
    return 128


def encoder_layer_call(x, mask_bias, kp, nheads):
    B, S, E = x.shape
    F = kp["w1"].shape[1]
    head_dim = E // nheads
    tile = _choose_tile(S)
    n_q = S // tile

    # Pass 1: packed bf16 K|V computed once per layer (not per query tile).
    kv = kv_proj_call(x, kp["wkv"], kp["bkv"], tile)

    weight_args = [kp["wq"], kp["bq"], kp["wo"], kp["bo"],
                   kp["w1"], kp["b1"], kp["w2"], kp["b2"],
                   kp["g1"], kp["be1"], kp["g2"], kp["be2"]]

    in_specs = [
        pl.BlockSpec((1, tile, E), lambda b, q: (b, q, 0)),      # x query tile
        pl.BlockSpec((1, S, 2 * E), lambda b, q: (b, 0, 0)),     # packed K|V
        pl.BlockSpec((1, 1, S), lambda b, q: (b, 0, 0)),         # key-mask bias
    ] + [_const_spec(w) for w in weight_args]

    kernel = functools.partial(encoder_layer_kernel, nheads=nheads,
                               head_dim=head_dim, emb=E)

    flops = int(B * (4 * S * E * E + 4 * S * S * E + 4 * S * E * F))
    bytes_accessed = int(B * S * (4 * E + 4 * E + 4 * E)         # x, K|V, out
                         + 2 * (2 * E * E + 2 * E * F))          # bf16 weights
    cost = pl.CostEstimate(flops=flops,
                           transcendentals=int(B * nheads * S * S),
                           bytes_accessed=bytes_accessed)

    return pl.pallas_call(
        kernel,
        out_shape=jax.ShapeDtypeStruct((B, S, E), jnp.float32),
        grid=(B, n_q),
        in_specs=in_specs,
        out_specs=pl.BlockSpec((1, tile, E), lambda b, q: (b, q, 0)),
        scratch_shapes=[pltpu.VMEM((tile, E), jnp.bfloat16)],
        compiler_params=pltpu.CompilerParams(
            dimension_semantics=("parallel", "parallel"),
            vmem_limit_bytes=_VMEM_LIMIT),
        cost_estimate=cost,
    )(x, kv, mask_bias, *weight_args)


# ------------------------------ forward wrapper -------------------------------

def _pad_seq(x, key_mask, multiple=128):
    B, S, E = x.shape
    s_pad = ((S + multiple - 1) // multiple) * multiple
    if s_pad != S:
        x = jnp.pad(x, ((0, 0), (0, s_pad - S), (0, 0)))
        key_mask = jnp.pad(key_mask, ((0, 0), (0, s_pad - S)),
                           constant_values=True)
    return x, key_mask


def audio_encoder_forward(x, key_mask, packed_layers, nheads):
    # key_mask: (B, S) bool, True = padded key position (PyTorch
    # src_key_padding_mask semantics).
    B, S, E = x.shape
    x_p, km_p = _pad_seq(x, key_mask)
    mask_bias = jnp.where(km_p, jnp.float32(NEG_INF),
                          jnp.float32(0.0))[:, None, :]           # (B, 1, Sp)
    for kp in packed_layers:
        x_p = encoder_layer_call(x_p, mask_bias, kp, nheads)
    return x_p[:, :S]


# ---------------- parameter init / kernel-layout prep (done once) -------------

def init_layer_params(key, E, F):
    ks = jax.random.split(key, 8)
    s = 0.02
    # Weights stored (in, out) so math is y = x @ W + b (PyTorch Linear is
    # y = x @ W.T + b).
    return {
        "wq": jax.random.normal(ks[0], (E, E), jnp.float32) * s,
        "bq": jnp.zeros((1, E), jnp.float32),
        "wk": jax.random.normal(ks[1], (E, E), jnp.float32) * s,
        "bk": jnp.zeros((1, E), jnp.float32),
        "wv": jax.random.normal(ks[2], (E, E), jnp.float32) * s,
        "bv": jnp.zeros((1, E), jnp.float32),
        "wo": jax.random.normal(ks[3], (E, E), jnp.float32) * s,
        "bo": jnp.zeros((1, E), jnp.float32),
        "w1": jax.random.normal(ks[4], (E, F), jnp.float32) * s,
        "b1": jax.random.normal(ks[5], (1, F), jnp.float32) * s,
        "w2": jax.random.normal(ks[6], (F, E), jnp.float32) * s,
        "b2": jax.random.normal(ks[7], (1, E), jnp.float32) * s,
        "g1": jnp.ones((1, E), jnp.float32),
        "be1": jnp.zeros((1, E), jnp.float32),
        "g2": jnp.ones((1, E), jnp.float32),
        "be2": jnp.zeros((1, E), jnp.float32),
    }


def prep_layer_params(p, nheads):
    # Hoisted out of the per-forward loop: bf16 weight casts, Wk|Wv packing and
    # the 1/sqrt(head_dim) fold are done exactly once.
    E = p["wq"].shape[0]
    scale = 1.0 / math.sqrt(E // nheads)
    return {
        "wq": (p["wq"] * scale).astype(jnp.bfloat16),
        "bq": p["bq"] * scale,
        "wkv": jnp.concatenate([p["wk"], p["wv"]], axis=1).astype(jnp.bfloat16),
        "bkv": jnp.concatenate([p["bk"], p["bv"]], axis=1),
        "wo": p["wo"].astype(jnp.bfloat16), "bo": p["bo"],
        "w1": p["w1"].astype(jnp.bfloat16), "b1": p["b1"],
        "w2": p["w2"].astype(jnp.bfloat16), "b2": p["b2"],
        "g1": p["g1"], "be1": p["be1"], "g2": p["g2"], "be2": p["be2"],
    }


# ------------- pure-JAX reference (same bf16 matmul numerics) -----------------

def reference_forward(x, key_mask, layer_params, nheads):
    B, S, E = x.shape
    d = E // nheads
    bf = jnp.bfloat16
    mb = jnp.where(key_mask, jnp.float32(NEG_INF),
                   jnp.float32(0.0))[:, None, None, :]            # (B,1,1,S)
    for p in layer_params:
        def mm(a, w):
            return jnp.dot(a.astype(bf), w.astype(bf),
                           preferred_element_type=jnp.float32)
        q = mm(x, p["wq"]) + p["bq"]
        k = mm(x, p["wk"]) + p["bk"]
        v = mm(x, p["wv"]) + p["bv"]
        qh = q.reshape(B, S, nheads, d).transpose(0, 2, 1, 3)
        kh = k.reshape(B, S, nheads, d).transpose(0, 2, 1, 3)
        vh = v.reshape(B, S, nheads, d).transpose(0, 2, 1, 3)
        s = jnp.einsum("bhqd,bhkd->bhqk", qh.astype(bf), kh.astype(bf),
                       preferred_element_type=jnp.float32) / math.sqrt(d)
        s = s + mb
        p_attn = jax.nn.softmax(s, axis=-1)
        ctx = jnp.einsum("bhqk,bhkd->bhqd", p_attn.astype(bf), vh.astype(bf),
                         preferred_element_type=jnp.float32)
        ctx = ctx.transpose(0, 2, 1, 3).reshape(B, S, E)
        attn = mm(ctx, p["wo"]) + p["bo"]
        y = _layernorm(x + attn, p["g1"], p["be1"])
        h1 = jnp.maximum(mm(y, p["w1"]) + p["b1"], 0.0)
        ff = mm(h1, p["w2"]) + p["b2"]
        x = _layernorm(y + ff, p["g2"], p["be2"])
    return x


if __name__ == "__main__":
    # Small shapes consistent with the module (defaults E=1024, H=8, F=256,
    # L=4); here E=256 / H=2 keeps head_dim=128 (lane-aligned, as in the real
    # config) while staying tiny.
    B, S, E, H, F, L = 2, 8, 256, 2, 64, 2

    root = jax.random.PRNGKey(0)
    kx, kp_key = jax.random.split(root)
    x = jax.random.normal(kx, (B, S, E), jnp.float32)

    # key_mask: True means the position is padding and must be ignored.
    lengths = jnp.array([S, 5])
    key_mask = jnp.arange(S)[None, :] >= lengths[:, None]         # (B, S) bool

    layer_keys = jax.random.split(kp_key, L)
    layer_params = [init_layer_params(k, E, F) for k in layer_keys]
    packed = [prep_layer_params(p, H) for p in layer_params]      # once, hoisted

    fwd = jax.jit(functools.partial(audio_encoder_forward, nheads=H))
    out = jax.block_until_ready(fwd(x, key_mask, packed))

    ref = reference_forward(x, key_mask, layer_params, H)
    assert out.shape == (B, S, E)
    max_err = float(jnp.max(jnp.abs(out - ref)))
    assert jnp.allclose(out, ref, atol=2e-2, rtol=2e-2), f"mismatch: {max_err}"

    print("KERNEL_OK")
</pallas_src>

<mosaic_0001>
module attributes {stable_mosaic.version = 11 : i64} {
  func.func @kv_proj_kernel(%arg0: i32, %arg1: i32, %arg2: memref<1x128x256xf32, #tpu.memory_space<vmem>>, %arg3: memref<256x512xbf16, #tpu.memory_space<vmem>>, %arg4: memref<1x512xf32, #tpu.memory_space<vmem>>, %arg5: memref<1x128x512xbf16, #tpu.memory_space<vmem>>) attributes {dimension_semantics = [#tpu.dimension_semantics<parallel>, #tpu.dimension_semantics<parallel>], iteration_bounds = array<i64: 2, 1>, scalar_prefetch = 0 : i64, scratch_operands = 0 : i64, tpu.core_type = #tpu.core_type<tc>, window_params = [{transform_indices = @transform_0, window_bounds = array<i64: 1, 128, 256>}, {pipeline_mode = #tpu.pipeline_mode<synchronous>, transform_indices = @transform_1, window_bounds = array<i64: 256, 512>}, {pipeline_mode = #tpu.pipeline_mode<synchronous>, transform_indices = @transform_2, window_bounds = array<i64: 1, 512>}, {transform_indices = @transform_3, window_bounds = array<i64: 1, 128, 512>}]} {
    %c0 = arith.constant 0 : index
    %c0_0 = arith.constant 0 : index
    %c0_1 = arith.constant 0 : index
    %0 = vector.load %arg2[%c0, %c0_0, %c0_1] : memref<1x128x256xf32, #tpu.memory_space<vmem>>, vector<1x128x256xf32>
    %1 = vector.shape_cast %0 : vector<1x128x256xf32> to vector<128x256xf32>
    %2 = arith.truncf %1 : vector<128x256xf32> to vector<128x256xbf16>
    %c0_2 = arith.constant 0 : index
    %c0_3 = arith.constant 0 : index
    %3 = vector.load %arg3[%c0_2, %c0_3] : memref<256x512xbf16, #tpu.memory_space<vmem>>, vector<256x512xbf16>
    %cst = arith.constant dense<0.000000e+00> : vector<128x512xf32>
    %4 = tpu.matmul %2, %3, %cst {dimension_numbers = #tpu.dot_dimension_numbers<[1], [0], [0], [1], [0, 0, 1, 1], [], []>} : vector<128x256xbf16>, vector<256x512xbf16>, vector<128x512xf32> -> vector<128x512xf32>
    %c0_4 = arith.constant 0 : index
    %c0_5 = arith.constant 0 : index
    %5 = vector.load %arg4[%c0_4, %c0_5] : memref<1x512xf32, #tpu.memory_space<vmem>>, vector<1x512xf32>
    %6 = vector.broadcast %5 : vector<1x512xf32> to vector<128x512xf32>
    %7 = arith.addf %4, %6 : vector<128x512xf32>
    %8 = arith.truncf %7 : vector<128x512xf32> to vector<128x512xbf16>
    %c0_6 = arith.constant 0 : index
    %c0_7 = arith.constant 0 : index
    %c0_8 = arith.constant 0 : index
    %9 = vector.load %arg5[%c0_6, %c0_7, %c0_8] : memref<1x128x512xbf16, #tpu.memory_space<vmem>>, vector<1x128x512xbf16>
    %10 = vector.shape_cast %9 : vector<1x128x512xbf16> to vector<128x512xbf16>
    %11 = vector.shape_cast %8 : vector<128x512xbf16> to vector<1x128x512xbf16>
    tpu.vector_store %arg5[%c0_6, %c0_7, %c0_8], %11 {strides = array<i32>} : memref<1x128x512xbf16, #tpu.memory_space<vmem>>, vector<1x128x512xbf16>,
    return
  }
  func.func @transform_0(%arg0: i32, %arg1: i32) -> (i32, i32, i32) {
    %c0_i32 = arith.constant 0 : i32
    %c0_i32_0 = arith.constant 0 : i32
    return %arg0, %arg1, %c0_i32 : i32, i32, i32
  }
  func.func @transform_1(%arg0: i32, %arg1: i32) -> (i32, i32) {
    %c0_i32 = arith.constant 0 : i32
    %c0_i32_0 = arith.constant 0 : i32
    %c0_i32_1 = arith.constant 0 : i32
    return %c0_i32, %c0_i32_0 : i32, i32
  }
  func.func @transform_2(%arg0: i32, %arg1: i32) -> (i32, i32) {
    %c0_i32 = arith.constant 0 : i32
    %c0_i32_0 = arith.constant 0 : i32
    %c0_i32_1 = arith.constant 0 : i32
    return %c0_i32, %c0_i32_0 : i32, i32
  }
  func.func @transform_3(%arg0: i32, %arg1: i32) -> (i32, i32, i32) {
    %c0_i32 = arith.constant 0 : i32
    %c0_i32_0 = arith.constant 0 : i32
    return %arg0, %arg1, %c0_i32 : i32, i32, i32
  }
}

module attributes {stable_mosaic.version = 11 : i64} {
  func.func @encoder_layer_kernel(%arg0: i32, %arg1: i32, %arg2: memref<1x128x256xf32, #tpu.memory_space<vmem>>, %arg3: memref<1x128x512xbf16, #tpu.memory_space<vmem>>, %arg4: memref<1x1x128xf32, #tpu.memory_space<vmem>>, %arg5: memref<256x256xbf16, #tpu.memory_space<vmem>>, %arg6: memref<1x256xf32, #tpu.memory_space<vmem>>, %arg7: memref<256x256xbf16, #tpu.memory_space<vmem>>, %arg8: memref<1x256xf32, #tpu.memory_space<vmem>>, %arg9: memref<256x64xbf16, #tpu.memory_space<vmem>>, %arg10: memref<1x64xf32, #tpu.memory_space<vmem>>, %arg11: memref<64x256xbf16, #tpu.memory_space<vmem>>, %arg12: memref<1x256xf32, #tpu.memory_space<vmem>>, %arg13: memref<1x256xf32, #tpu.memory_space<vmem>>, %arg14: memref<1x256xf32, #tpu.memory_space<vmem>>, %arg15: memref<1x256xf32, #tpu.memory_space<vmem>>, %arg16: memref<1x256xf32, #tpu.memory_space<vmem>>, %arg17: memref<1x128x256xf32, #tpu.memory_space<vmem>>, %arg18: memref<128x256xbf16, #tpu.memory_space<vmem>>) attributes {dimension_semantics = [#tpu.dimension_semantics<parallel>, #tpu.dimension_semantics<parallel>], iteration_bounds = array<i64: 2, 1>, scalar_prefetch = 0 : i64, scratch_operands = 1 : i64, tpu.core_type = #tpu.core_type<tc>, window_params = [{transform_indices = @transform_0, window_bounds = array<i64: 1, 128, 256>}, {transform_indices = @transform_1, window_bounds = array<i64: 1, 128, 512>}, {transform_indices = @transform_2, window_bounds = array<i64: 1, 1, 128>}, {pipeline_mode = #tpu.pipeline_mode<synchronous>, transform_indices = @transform_3, window_bounds = array<i64: 256, 256>}, {pipeline_mode = #tpu.pipeline_mode<synchronous>, transform_indices = @transform_4, window_bounds = array<i64: 1, 256>}, {pipeline_mode = #tpu.pipeline_mode<synchronous>, transform_indices = @transform_5, window_bounds = array<i64: 256, 256>}, {pipeline_mode = #tpu.pipeline_mode<synchronous>, transform_indices = @transform_6, window_bounds = array<i64: 1, 256>}, {pipeline_mode = #tpu.pipeline_mode<synchronous>, transform_indices = @transform_7, window_bounds = array<i64: 256, 64>}, {pipeline_mode = #tpu.pipeline_mode<synchronous>, transform_indices = @transform_8, window_bounds = array<i64: 1, 64>}, {pipeline_mode = #tpu.pipeline_mode<synchronous>, transform_indices = @transform_9, window_bounds = array<i64: 64, 256>}, {pipeline_mode = #tpu.pipeline_mode<synchronous>, transform_indices = @transform_10, window_bounds = array<i64: 1, 256>}, {pipeline_mode = #tpu.pipeline_mode<synchronous>, transform_indices = @transform_11, window_bounds = array<i64: 1, 256>}, {pipeline_mode = #tpu.pipeline_mode<synchronous>, transform_indices = @transform_12, window_bounds = array<i64: 1, 256>}, {pipeline_mode = #tpu.pipeline_mode<synchronous>, transform_indices = @transform_13, window_bounds = array<i64: 1, 256>}, {pipeline_mode = #tpu.pipeline_mode<synchronous>, transform_indices = @transform_14, window_bounds = array<i64: 1, 256>}, {transform_indices = @transform_15, window_bounds = array<i64: 1, 128, 256>}]} {
    %c0 = arith.constant 0 : index
    %c0_0 = arith.constant 0 : index
    %c0_1 = arith.constant 0 : index
    %0 = vector.load %arg2[%c0, %c0_0, %c0_1] : memref<1x128x256xf32, #tpu.memory_space<vmem>>, vector<1x128x256xf32>
    %1 = vector.shape_cast %0 : vector<1x128x256xf32> to vector<128x256xf32>
    %c0_2 = arith.constant 0 : index
    %c0_3 = arith.constant 0 : index
    %c0_4 = arith.constant 0 : index
    %2 = vector.load %arg4[%c0_2, %c0_3, %c0_4] : memref<1x1x128xf32, #tpu.memory_space<vmem>>, vector<1x1x128xf32>
    %3 = vector.shape_cast %2 : vector<1x1x128xf32> to vector<1x128xf32>
    %4 = arith.truncf %1 : vector<128x256xf32> to vector<128x256xbf16>
    %c0_5 = arith.constant 0 : index
    %c0_6 = arith.constant 0 : index
    %5 = vector.load %arg5[%c0_5, %c0_6] : memref<256x256xbf16, #tpu.memory_space<vmem>>, vector<256x256xbf16>
    %cst = arith.constant dense<0.000000e+00> : vector<128x256xf32>
    %6 = tpu.matmul %4, %5, %cst {dimension_numbers = #tpu.dot_dimension_numbers<[1], [0], [0], [1], [0, 0, 1, 1], [], []>} : vector<128x256xbf16>, vector<256x256xbf16>, vector<128x256xf32> -> vector<128x256xf32>
    %c0_7 = arith.constant 0 : index
    %c0_8 = arith.constant 0 : index
    %7 = vector.load %arg6[%c0_7, %c0_8] : memref<1x256xf32, #tpu.memory_space<vmem>>, vector<1x256xf32>
    %8 = vector.broadcast %7 : vector<1x256xf32> to vector<128x256xf32>
    %9 = arith.addf %6, %8 : vector<128x256xf32>
    %10 = arith.truncf %9 : vector<128x256xf32> to vector<128x256xbf16>
    %11 = vector.extract_strided_slice %10 {offsets = [0, 0], sizes = [128, 128], strides = [1, 1]} : vector<128x256xbf16> to vector<128x128xbf16>
    %c0_9 = arith.constant 0 : index
    %c0_10 = arith.constant 0 : index
    %c0_11 = arith.constant 0 : index
    %12 = vector.load %arg3[%c0_9, %c0_10, %c0_11] : memref<1x128x512xbf16, #tpu.memory_space<vmem>>, vector<1x128x128xbf16>
    %13 = vector.shape_cast %12 : vector<1x128x128xbf16> to vector<128x128xbf16>
    %c0_12 = arith.constant 0 : index
    %c0_13 = arith.constant 0 : index
    %c256 = arith.constant 256 : index
    %14 = vector.load %arg3[%c0_12, %c0_13, %c256] : memref<1x128x512xbf16, #tpu.memory_space<vmem>>, vector<1x128x128xbf16>
    %15 = vector.shape_cast %14 : vector<1x128x128xbf16> to vector<128x128xbf16>
    %cst_14 = arith.constant dense<0.000000e+00> : vector<128x128xf32>
    %16 = tpu.matmul %11, %13, %cst_14 {dimension_numbers = #tpu.dot_dimension_numbers<[1], [1], [0], [0], [0, 0, 1, 0], [], []>} : vector<128x128xbf16>, vector<128x128xbf16>, vector<128x128xf32> -> vector<128x128xf32>
    %17 = vector.broadcast %3 : vector<1x128xf32> to vector<128x128xf32>
    %18 = arith.addf %16, %17 : vector<128x128xf32>
    %cst_15 = arith.constant dense<0xFF800000> : vector<128xf32>
    %19 = vector.multi_reduction <maximumf>, %18, %cst_15 [1] : vector<128x128xf32> to vector<128xf32>
    %20 = vector.shape_cast %19 : vector<128xf32> to vector<128x1xf32>
    %21 = vector.broadcast %20 : vector<128x1xf32> to vector<128x128xf32>
    %22 = arith.subf %18, %21 : vector<128x128xf32>
    %23 = math.exp %22 : vector<128x128xf32>
    %cst_16 = arith.constant dense<0.000000e+00> : vector<128xf32>
    %24 = vector.multi_reduction <add>, %23, %cst_16 [1] : vector<128x128xf32> to vector<128xf32>
    %25 = vector.shape_cast %24 : vector<128xf32> to vector<128x1xf32>
    %26 = tpu.reciprocal %25 {approx = true} : vector<128x1xf32> -> vector<128x1xf32>
    %27 = vector.broadcast %26 : vector<128x1xf32> to vector<128x128xf32>
    %28 = arith.mulf %23, %27 : vector<128x128xf32>
    %29 = arith.truncf %28 : vector<128x128xf32> to vector<128x128xbf16>
    %cst_17 = arith.constant dense<0.000000e+00> : vector<128x128xf32>
    %30 = tpu.matmul %29, %15, %cst_17 {dimension_numbers = #tpu.dot_dimension_numbers<[1], [0], [0], [1], [0, 0, 1, 1], [], []>} : vector<128x128xbf16>, vector<128x128xbf16>, vector<128x128xf32> -> vector<128x128xf32>
    %31 = arith.truncf %30 : vector<128x128xf32> to vector<128x128xbf16>
    %c0_18 = arith.constant 0 : index
    %c0_19 = arith.constant 0 : index
    %32 = vector.load %arg18[%c0_18, %c0_19] : memref<128x256xbf16, #tpu.memory_space<vmem>>, vector<128x128xbf16>
    tpu.vector_store %arg18[%c0_18, %c0_19], %31 {strides = array<i32>} : memref<128x256xbf16, #tpu.memory_space<vmem>>, vector<128x128xbf16>,
    %33 = vector.extract_strided_slice %10 {offsets = [0, 128], sizes = [128, 128], strides = [1, 1]} : vector<128x256xbf16> to vector<128x128xbf16>
    %c0_20 = arith.constant 0 : index
    %c0_21 = arith.constant 0 : index
    %c128 = arith.constant 128 : index
    %34 = vector.load %arg3[%c0_20, %c0_21, %c128] : memref<1x128x512xbf16, #tpu.memory_space<vmem>>, vector<1x128x128xbf16>
    %35 = vector.shape_cast %34 : vector<1x128x128xbf16> to vector<128x128xbf16>
    %c0_22 = arith.constant 0 : index
    %c0_23 = arith.constant 0 : index
    %c384 = arith.constant 384 : index
    %36 = vector.load %arg3[%c0_22, %c0_23, %c384] : memref<1x128x512xbf16, #tpu.memory_space<vmem>>, vector<1x128x128xbf16>
    %37 = vector.shape_cast %36 : vector<1x128x128xbf16> to vector<128x128xbf16>
    %cst_24 = arith.constant dense<0.000000e+00> : vector<128x128xf32>
    %38 = tpu.matmul %33, %35, %cst_24 {dimension_numbers = #tpu.dot_dimension_numbers<[1], [1], [0], [0], [0, 0, 1, 0], [], []>} : vector<128x128xbf16>, vector<128x128xbf16>, vector<128x128xf32> -> vector<128x128xf32>
    %39 = vector.broadcast %3 : vector<1x128xf32> to vector<128x128xf32>
    %40 = arith.addf %38, %39 : vector<128x128xf32>
    %cst_25 = arith.constant dense<0xFF800000> : vector<128xf32>
    %41 = vector.multi_reduction <maximumf>, %40, %cst_25 [1] : vector<128x128xf32> to vector<128xf32>
    %42 = vector.shape_cast %41 : vector<128xf32> to vector<128x1xf32>
    %43 = vector.broadcast %42 : vector<128x1xf32> to vector<128x128xf32>
    %44 = arith.subf %40, %43 : vector<128x128xf32>
    %45 = math.exp %44 : vector<128x128xf32>
    %cst_26 = arith.constant dense<0.000000e+00> : vector<128xf32>
    %46 = vector.multi_reduction <add>, %45, %cst_26 [1] : vector<128x128xf32> to vector<128xf32>
    %47 = vector.shape_cast %46 : vector<128xf32> to vector<128x1xf32>
    %48 = tpu.reciprocal %47 {approx = true} : vector<128x1xf32> -> vector<128x1xf32>
    %49 = vector.broadcast %48 : vector<128x1xf32> to vector<128x128xf32>
    %50 = arith.mulf %45, %49 : vector<128x128xf32>
    %51 = arith.truncf %50 : vector<128x128xf32> to vector<128x128xbf16>
    %cst_27 = arith.constant dense<0.000000e+00> : vector<128x128xf32>
    %52 = tpu.matmul %51, %37, %cst_27 {dimension_numbers = #tpu.dot_dimension_numbers<[1], [0], [0], [1], [0, 0, 1, 1], [], []>} : vector<128x128xbf16>, vector<128x128xbf16>, vector<128x128xf32> -> vector<128x128xf32>
    %53 = arith.truncf %52 : vector<128x128xf32> to vector<128x128xbf16>
    %c0_28 = arith.constant 0 : index
    %c128_29 = arith.constant 128 : index
    %54 = vector.load %arg18[%c0_28, %c128_29] : memref<128x256xbf16, #tpu.memory_space<vmem>>, vector<128x128xbf16>
    tpu.vector_store %arg18[%c0_28, %c128_29], %53 {strides = array<i32>} : memref<128x256xbf16, #tpu.memory_space<vmem>>, vector<128x128xbf16>,
    %c0_30 = arith.constant 0 : index
    %c0_31 = arith.constant 0 : index
    %55 = vector.load %arg18[%c0_30, %c0_31] : memref<128x256xbf16, #tpu.memory_space<vmem>>, vector<128x256xbf16>
    %c0_32 = arith.constant 0 : index
    %c0_33 = arith.constant 0 : index
    %56 = vector.load %arg7[%c0_32, %c0_33] : memref<256x256xbf16, #tpu.memory_space<vmem>>, vector<256x256xbf16>
    %cst_34 = arith.constant dense<0.000000e+00> : vector<128x256xf32>
    %57 = tpu.matmul %55, %56, %cst_34 {dimension_numbers = #tpu.dot_dimension_numbers<[1], [0], [0], [1], [0, 0, 1, 1], [], []>} : vector<128x256xbf16>, vector<256x256xbf16>, vector<128x256xf32> -> vector<128x256xf32>
    %c0_35 = arith.constant 0 : index
    %c0_36 = arith.constant 0 : index
    %58 = vector.load %arg8[%c0_35, %c0_36] : memref<1x256xf32, #tpu.memory_space<vmem>>, vector<1x256xf32>
    %59 = vector.broadcast %58 : vector<1x256xf32> to vector<128x256xf32>
    %60 = arith.addf %57, %59 : vector<128x256xf32>
    %61 = arith.addf %1, %60 : vector<128x256xf32>
    %c0_37 = arith.constant 0 : index
    %c0_38 = arith.constant 0 : index
    %62 = vector.load %arg13[%c0_37, %c0_38] : memref<1x256xf32, #tpu.memory_space<vmem>>, vector<1x256xf32>
    %c0_39 = arith.constant 0 : index
    %c0_40 = arith.constant 0 : index
    %63 = vector.load %arg14[%c0_39, %c0_40] : memref<1x256xf32, #tpu.memory_space<vmem>>, vector<1x256xf32>
    %cst_41 = arith.constant dense<0.000000e+00> : vector<128xf32>
    %64 = vector.multi_reduction <add>, %61, %cst_41 [1] : vector<128x256xf32> to vector<128xf32>
    %65 = vector.shape_cast %64 : vector<128xf32> to vector<128x1xf32>
    %cst_42 = arith.constant 2.560000e+02 : f32
    %66 = vector.broadcast %cst_42 : f32 to vector<128x1xf32>
    %67 = arith.divf %65, %66 : vector<128x1xf32>
    %68 = vector.broadcast %67 : vector<128x1xf32> to vector<128x256xf32>
    %69 = arith.subf %61, %68 : vector<128x256xf32>
    %70 = arith.mulf %69, %69 : vector<128x256xf32>
    %cst_43 = arith.constant dense<0.000000e+00> : vector<128xf32>
    %71 = vector.multi_reduction <add>, %70, %cst_43 [1] : vector<128x256xf32> to vector<128xf32>
    %72 = vector.shape_cast %71 : vector<128xf32> to vector<128x1xf32>
    %cst_44 = arith.constant 2.560000e+02 : f32
    %73 = vector.broadcast %cst_44 : f32 to vector<128x1xf32>
    %74 = arith.divf %72, %73 : vector<128x1xf32>
    %75 = vector.broadcast %67 : vector<128x1xf32> to vector<128x256xf32>
    %76 = arith.subf %61, %75 : vector<128x256xf32>
    %cst_45 = arith.constant 9.99999974E-6 : f32
    %77 = vector.broadcast %cst_45 : f32 to vector<128x1xf32>
    %78 = arith.addf %74, %77 : vector<128x1xf32>
    %79 = math.rsqrt %78 : vector<128x1xf32>
    %80 = vector.broadcast %79 : vector<128x1xf32> to vector<128x256xf32>
    %81 = arith.mulf %76, %80 : vector<128x256xf32>
    %82 = vector.broadcast %62 : vector<1x256xf32> to vector<128x256xf32>
    %83 = arith.mulf %81, %82 : vector<128x256xf32>
    %84 = vector.broadcast %63 : vector<1x256xf32> to vector<128x256xf32>
    %85 = arith.addf %83, %84 : vector<128x256xf32>
    %86 = arith.truncf %85 : vector<128x256xf32> to vector<128x256xbf16>
    %c0_46 = arith.constant 0 : index
    %c0_47 = arith.constant 0 : index
    %87 = vector.load %arg9[%c0_46, %c0_47] : memref<256x64xbf16, #tpu.memory_space<vmem>>, vector<256x64xbf16>
    %cst_48 = arith.constant dense<0.000000e+00> : vector<128x64xf32>
    %88 = tpu.matmul %86, %87, %cst_48 {dimension_numbers = #tpu.dot_dimension_numbers<[1], [0], [0], [1], [0, 0, 1, 1], [], []>} : vector<128x256xbf16>, vector<256x64xbf16>, vector<128x64xf32> -> vector<128x64xf32>
    %c0_49 = arith.constant 0 : index
    %c0_50 = arith.constant 0 : index
    %89 = vector.load %arg10[%c0_49, %c0_50] : memref<1x64xf32, #tpu.memory_space<vmem>>, vector<1x64xf32>
    %90 = vector.broadcast %89 : vector<1x64xf32> to vector<128x64xf32>
    %91 = arith.addf %88, %90 : vector<128x64xf32>
    %cst_51 = arith.constant 0.000000e+00 : f32
    %92 = vector.broadcast %cst_51 : f32 to vector<128x64xf32>
    %93 = arith.maximumf %91, %92 : vector<128x64xf32>
    %94 = arith.truncf %93 : vector<128x64xf32> to vector<128x64xbf16>
    %c0_52 = arith.constant 0 : index
    %c0_53 = arith.constant 0 : index
    %95 = vector.load %arg11[%c0_52, %c0_53] : memref<64x256xbf16, #tpu.memory_space<vmem>>, vector<64x256xbf16>
    %cst_54 = arith.constant dense<0.000000e+00> : vector<128x256xf32>
    %96 = tpu.matmul %94, %95, %cst_54 {dimension_numbers = #tpu.dot_dimension_numbers<[1], [0], [0], [1], [0, 0, 1, 1], [], []>} : vector<128x64xbf16>, vector<64x256xbf16>, vector<128x256xf32> -> vector<128x256xf32>
    %c0_55 = arith.constant 0 : index
    %c0_56 = arith.constant 0 : index
    %97 = vector.load %arg12[%c0_55, %c0_56] : memref<1x256xf32, #tpu.memory_space<vmem>>, vector<1x256xf32>
    %98 = vector.broadcast %97 : vector<1x256xf32> to vector<128x256xf32>
    %99 = arith.addf %96, %98 : vector<128x256xf32>
    %100 = arith.addf %85, %99 : vector<128x256xf32>
    %c0_57 = arith.constant 0 : index
    %c0_58 = arith.constant 0 : index
    %101 = vector.load %arg15[%c0_57, %c0_58] : memref<1x256xf32, #tpu.memory_space<vmem>>, vector<1x256xf32>
    %c0_59 = arith.constant 0 : index
    %c0_60 = arith.constant 0 : index
    %102 = vector.load %arg16[%c0_59, %c0_60] : memref<1x256xf32, #tpu.memory_space<vmem>>, vector<1x256xf32>
    %cst_61 = arith.constant dense<0.000000e+00> : vector<128xf32>
    %103 = vector.multi_reduction <add>, %100, %cst_61 [1] : vector<128x256xf32> to vector<128xf32>
    %104 = vector.shape_cast %103 : vector<128xf32> to vector<128x1xf32>
    %cst_62 = arith.constant 2.560000e+02 : f32
    %105 = vector.broadcast %cst_62 : f32 to vector<128x1xf32>
    %106 = arith.divf %104, %105 : vector<128x1xf32>
    %107 = vector.broadcast %106 : vector<128x1xf32> to vector<128x256xf32>
    %108 = arith.subf %100, %107 : vector<128x256xf32>
    %109 = arith.mulf %108, %108 : vector<128x256xf32>
    %cst_63 = arith.constant dense<0.000000e+00> : vector<128xf32>
    %110 = vector.multi_reduction <add>, %109, %cst_63 [1] : vector<128x256xf32> to vector<128xf32>
    %111 = vector.shape_cast %110 : vector<128xf32> to vector<128x1xf32>
    %cst_64 = arith.constant 2.560000e+02 : f32
    %112 = vector.broadcast %cst_64 : f32 to vector<128x1xf32>
    %113 = arith.divf %111, %112 : vector<128x1xf32>
    %114 = vector.broadcast %106 : vector<128x1xf32> to vector<128x256xf32>
    %115 = arith.subf %100, %114 : vector<128x256xf32>
    %cst_65 = arith.constant 9.99999974E-6 : f32
    %116 = vector.broadcast %cst_65 : f32 to vector<128x1xf32>
    %117 = arith.addf %113, %116 : vector<128x1xf32>
    %118 = math.rsqrt %117 : vector<128x1xf32>
    %119 = vector.broadcast %118 : vector<128x1xf32> to vector<128x256xf32>
    %120 = arith.mulf %115, %119 : vector<128x256xf32>
    %121 = vector.broadcast %101 : vector<1x256xf32> to vector<128x256xf32>
    %122 = arith.mulf %120, %121 : vector<128x256xf32>
    %123 = vector.broadcast %102 : vector<1x256xf32> to vector<128x256xf32>
    %124 = arith.addf %122, %123 : vector<128x256xf32>
    %c0_66 = arith.constant 0 : index
    %c0_67 = arith.constant 0 : index
    %c0_68 = arith.constant 0 : index
    %125 = vector.load %arg17[%c0_66, %c0_67, %c0_68] : memref<1x128x256xf32, #tpu.memory_space<vmem>>, vector<1x128x256xf32>
    %126 = vector.shape_cast %125 : vector<1x128x256xf32> to vector<128x256xf32>
    %127 = vector.shape_cast %124 : vector<128x256xf32> to vector<1x128x256xf32>
    tpu.vector_store %arg17[%c0_66, %c0_67, %c0_68], %127 {strides = array<i32>} : memref<1x128x256xf32, #tpu.memory_space<vmem>>, vector<1x128x256xf32>,
    return
  }
  func.func @transform_0(%arg0: i32, %arg1: i32) -> (i32, i32, i32) {
    %c0_i32 = arith.constant 0 : i32
    %c0_i32_0 = arith.constant 0 : i32
    return %arg0, %arg1, %c0_i32 : i32, i32, i32
  }
  func.func @transform_1(%arg0: i32, %arg1: i32) -> (i32, i32, i32) {
    %c0_i32 = arith.constant 0 : i32
    %c0_i32_0 = arith.constant 0 : i32
    %c0_i32_1 = arith.constant 0 : i32
    return %arg0, %c0_i32, %c0_i32_0 : i32, i32, i32
  }
  func.func @transform_2(%arg0: i32, %arg1: i32) -> (i32, i32, i32) {
    %c0_i32 = arith.constant 0 : i32
    %c0_i32_0 = arith.constant 0 : i32
    %c0_i32_1 = arith.constant 0 : i32
    return %arg0, %c0_i32, %c0_i32_0 : i32, i32, i32
  }
  func.func @transform_3(%arg0: i32, %arg1: i32) -> (i32, i32) {
    %c0_i32 = arith.constant 0 : i32
    %c0_i32_0 = arith.constant 0 : i32
    %c0_i32_1 = arith.constant 0 : i32
    return %c0_i32, %c0_i32_0 : i32, i32
  }
  func.func @transform_4(%arg0: i32, %arg1: i32) -> (i32, i32) {
    %c0_i32 = arith.constant 0 : i32
    %c0_i32_0 = arith.constant 0 : i32
    %c0_i32_1 = arith.constant 0 : i32
    return %c0_i32, %c0_i32_0 : i32, i32
  }
  func.func @transform_5(%arg0: i32, %arg1: i32) -> (i32, i32) {
    %c0_i32 = arith.constant 0 : i32
    %c0_i32_0 = arith.constant 0 : i32
    %c0_i32_1 = arith.constant 0 : i32
    return %c0_i32, %c0_i32_0 : i32, i32
  }
  func.func @transform_6(%arg0: i32, %arg1: i32) -> (i32, i32) {
    %c0_i32 = arith.constant 0 : i32
    %c0_i32_0 = arith.constant 0 : i32
    %c0_i32_1 = arith.constant 0 : i32
    return %c0_i32, %c0_i32_0 : i32, i32
  }
  func.func @transform_7(%arg0: i32, %arg1: i32) -> (i32, i32) {
    %c0_i32 = arith.constant 0 : i32
    %c0_i32_0 = arith.constant 0 : i32
    %c0_i32_1 = arith.constant 0 : i32
    return %c0_i32, %c0_i32_0 : i32, i32
  }
  func.func @transform_8(%arg0: i32, %arg1: i32) -> (i32, i32) {
    %c0_i32 = arith.constant 0 : i32
    %c0_i32_0 = arith.constant 0 : i32
    %c0_i32_1 = arith.constant 0 : i32
    return %c0_i32, %c0_i32_0 : i32, i32
  }
  func.func @transform_9(%arg0: i32, %arg1: i32) -> (i32, i32) {
    %c0_i32 = arith.constant 0 : i32
    %c0_i32_0 = arith.constant 0 : i32
    %c0_i32_1 = arith.constant 0 : i32
    return %c0_i32, %c0_i32_0 : i32, i32
  }
  func.func @transform_10(%arg0: i32, %arg1: i32) -> (i32, i32) {
    %c0_i32 = arith.constant 0 : i32
    %c0_i32_0 = arith.constant 0 : i32
    %c0_i32_1 = arith.constant 0 : i32
    return %c0_i32, %c0_i32_0 : i32, i32
  }
  func.func @transform_11(%arg0: i32, %arg1: i32) -> (i32, i32) {
    %c0_i32 = arith.constant 0 : i32
    %c0_i32_0 = arith.constant 0 : i32
    %c0_i32_1 = arith.constant 0 : i32
    return %c0_i32, %c0_i32_0 : i32, i32
  }
  func.func @transform_12(%arg0: i32, %arg1: i32) -> (i32, i32) {
    %c0_i32 = arith.constant 0 : i32
    %c0_i32_0 = arith.constant 0 : i32
    %c0_i32_1 = arith.constant 0 : i32
    return %c0_i32, %c0_i32_0 : i32, i32
  }
  func.func @transform_13(%arg0: i32, %arg1: i32) -> (i32, i32) {
    %c0_i32 = arith.constant 0 : i32
    %c0_i32_0 = arith.constant 0 : i32
    %c0_i32_1 = arith.constant 0 : i32
    return %c0_i32, %c0_i32_0 : i32, i32
  }
  func.func @transform_14(%arg0: i32, %arg1: i32) -> (i32, i32) {
    %c0_i32 = arith.constant 0 : i32
    %c0_i32_0 = arith.constant 0 : i32
    %c0_i32_1 = arith.constant 0 : i32
    return %c0_i32, %c0_i32_0 : i32, i32
  }
  func.func @transform_15(%arg0: i32, %arg1: i32) -> (i32, i32, i32) {
    %c0_i32 = arith.constant 0 : i32
    %c0_i32_0 = arith.constant 0 : i32
    return %arg0, %arg1, %c0_i32 : i32, i32, i32
  }
}

</mosaic_0001>

<llo_original>
// kernel: audio_encoder_forward.4
$region0: #{audio_encoder_forward.4}
  #allocation0 [shape = 'u32[]', space=smem, size = 0x4, offset = 0x4, fixed_abs, tag = 'smem constant byte address 0x4 - core index']
  #allocation1 [shape = 'u32[144,128]{1,0:T(1,128)}', space=vmem, size = 0x12000, scoped, tag = 'internal scratch']
  %s0 = inlined_call_operand.vmem [shape: f32[2,128,256], index: 0, kind: input, shape index: {}]
  %s1 = inlined_call_operand.vmem [shape: bf16[256,512], index: 1, kind: input, shape index: {}]
  %s2 = inlined_call_operand.vmem [shape: f32[1,512], index: 2, kind: input, shape index: {}]
  %s3 = inlined_call_operand.vmem [shape: bf16[2,128,512], index: 3, kind: output, shape index: {}]
  %s4 = sld [smem:[#allocation0]]
  $region45: #{audio_encoder_forward.4} parent=0
    _
  %s6 = ssub.s32 1, %s4
  %s7 = scalar_select 0, %s6, %s4
  loop: start=0, step=1, limit=4
  $region2: #{audio_encoder_forward.4} parent=0 // loop_pre_header
    _
  $region3: #{audio_encoder_forward.4} parent=0 // loop_header
    %s9 = sphi 0, %s13
    %p10 = scmp.ge.s32.totalorder %s9, 4
    %s16 = sphi 0, %s28
    %s17 = sphi 0, %s24
    %s18 = sphi 0, %s16
    %s19 = sphi 0, %s17
    %s20 = sphi 0, %s18
    %s21 = sphi 0, %s19
    %s33 = sphi 0, %s35
    %s36 = sphi 0, %s33
    %s37 = sphi 0, %s36
    %s53 = sphi 0, %s37
    %s57 = sphi 0, %s57
    %s59 = sphi 0, %s57
    %s60 = sphi 0, %s59
    %s74 = sphi 0, %s60
    %s78 = sphi 0, %s78
    %s80 = sphi 0, %s78
    %s81 = sphi 0, %s80
    %s95 = sphi 0, %s81
    %s103 = sphi 0, %s105
    %s106 = sphi 0, %s103
    %s107 = sphi 0, %s106
    %s123 = sphi 0, %s107
  $region4: #{audio_encoder_forward.4} parent=0 // loop_header_branch
    %12 = sbr.rel (%p10) target = $region8
  $region5: #{audio_encoder_forward.4} parent=0 // loop_body
    %s14 = ssub.s32 %s9, 1
    %s15 = ssub.s32 %s9, 2
    %s22 = sadd.s32 1, %s17
    %p23 = scmp.ge.s32.totalorder %s22, 1
    %s24 = scalar_select %p23, 0, %s22
    %s25 = sadd.s32 1, %s16
    %s26 = scalar_select %p23, %s25, %s16
    %p27 = scmp.ge.s32.totalorder %s26, 2
    %s28 = scalar_select %p27, 0, %s26
    %s29 = ssub.s32 %s16, %s28
    %s30 = ssub.s32 %s17, %s24
    %s31 = sor.u32 %s29, %s30
    %p32 = scmp.eq.s32.totalorder %s31, 0
    %s34 = sadd.s32 %s33, 1
    %s35 = scalar_select %p32, %s33, %s34
    %p38 = pneg %p32
    %p39 = scmp.eq.s32.totalorder %s9, 1
    %p40 = por %p38, %p39
    %p41 = scmp.ne.s32.totalorder %s33, %s36
    %p42 = scmp.eq.s32.totalorder %s9, 0
    %p43 = por %p41, %p42
    %p44 = scmp.ne.s32.totalorder %s33, %s36
    %p45 = scmp.eq.s32.totalorder %s14, 1
    %p46 = por %p44, %p45
    %p47 = scmp.ne.s32.totalorder %s36, %s37
    %p48 = scmp.eq.s32.totalorder %s14, 0
    %p49 = por %p47, %p48
    %p50 = scmp.ne.s32.totalorder %s36, %s37
    %p51 = scmp.eq.s32.totalorder %s15, 1
    %p52 = por %p50, %p51
    %p54 = scmp.ne.s32.totalorder %s37, %s53
    %p55 = scmp.eq.s32.totalorder %s15, 0
    %p56 = por %p54, %p55
    %s58 = sadd.s32 %s57, 1
    %p61 = scmp.eq.s32.totalorder %s9, 1
    %p62 = scmp.ne.s32.totalorder %s57, %s59
    %p63 = scmp.eq.s32.totalorder %s9, 0
    %p64 = por %p62, %p63
    %p65 = scmp.ne.s32.totalorder %s57, %s59
    %p66 = scmp.eq.s32.totalorder %s14, 1
    %p67 = por %p65, %p66
    %p68 = scmp.ne.s32.totalorder %s59, %s60
    %p69 = scmp.eq.s32.totalorder %s14, 0
    %p70 = por %p68, %p69
    %p71 = scmp.ne.s32.totalorder %s59, %s60
    %p72 = scmp.eq.s32.totalorder %s15, 1
    %p73 = por %p71, %p72
    %p75 = scmp.ne.s32.totalorder %s60, %s74
    %p76 = scmp.eq.s32.totalorder %s15, 0
    %p77 = por %p75, %p76
    %s79 = sadd.s32 %s78, 1
    %p82 = scmp.eq.s32.totalorder %s9, 1
    %p83 = scmp.ne.s32.totalorder %s78, %s80
    %p84 = scmp.eq.s32.totalorder %s9, 0
    %p85 = por %p83, %p84
    %p86 = scmp.ne.s32.totalorder %s78, %s80
    %p87 = scmp.eq.s32.totalorder %s14, 1
    %p88 = por %p86, %p87
    %p89 = scmp.ne.s32.totalorder %s80, %s81
    %p90 = scmp.eq.s32.totalorder %s14, 0
    %p91 = por %p89, %p90
    %p92 = scmp.ne.s32.totalorder %s80, %s81
    %p93 = scmp.eq.s32.totalorder %s15, 1
    %p94 = por %p92, %p93
    %p96 = scmp.ne.s32.totalorder %s81, %s95
    %p97 = scmp.eq.s32.totalorder %s15, 0
    %p98 = por %p96, %p97
    %s99 = ssub.s32 %s16, %s28
    %s100 = ssub.s32 %s17, %s24
    %s101 = sor.u32 %s99, %s100
    %p102 = scmp.eq.s32.totalorder %s101, 0
    %s104 = sadd.s32 %s103, 1
    %s105 = scalar_select %p102, %s103, %s104
    %p108 = pneg %p102
    %p109 = scmp.eq.s32.totalorder %s9, 1
    %p110 = por %p108, %p109
    %p111 = scmp.ne.s32.totalorder %s103, %s106
    %p112 = scmp.eq.s32.totalorder %s9, 0
    %p113 = por %p111, %p112
    %p114 = scmp.ne.s32.totalorder %s103, %s106
    %p115 = scmp.eq.s32.totalorder %s14, 1
    %p116 = por %p114, %p115
    %p117 = scmp.ne.s32.totalorder %s106, %s107
    %p118 = scmp.eq.s32.totalorder %s14, 0
    %p119 = por %p117, %p118
    %p120 = scmp.ne.s32.totalorder %s106, %s107
    %p121 = scmp.eq.s32.totalorder %s15, 1
    %p122 = por %p120, %p121
    %p124 = scmp.ne.s32.totalorder %s107, %s123
    %p125 = scmp.eq.s32.totalorder %s15, 0
    %p126 = por %p124, %p125
    %p127 = scmp.le.s32.totalorder 1, %s9
    %p128 = scmp.lt.s32.totalorder %s9, 3
    %p129 = pnand %p127, %p128
    %p130 = pneg %p129
    // Predicated region
    $region9: #{audio_encoder_forward.4} parent=5 // pred_check
      _
    $region10: #{audio_encoder_forward.4} parent=5 // pred_check_branch
      %132 = sbr.rel (%p129) target = $region12
    $region11: #{audio_encoder_forward.4} parent=5 // pred_region
      %s133 = ssub.s32 %s9, 1
      // Predicated region
      $region13: #{audio_encoder_forward.4} parent=11 // pred_check
        %p134 = pneg %p70
      $region14: #{audio_encoder_forward.4} parent=11 // pred_check_branch
        %136 = sbr.rel (%p134) target = $region16
      $region15: #{audio_encoder_forward.4} parent=11 // pred_region
        _
      $region16: #{audio_encoder_forward.4} parent=11 // pred_fallthru
        _
      // Predicated region
      $region17: #{audio_encoder_forward.4} parent=11 // pred_check
        %p137 = pneg %p91
      $region18: #{audio_encoder_forward.4} parent=11 // pred_check_branch
        %139 = sbr.rel (%p137) target = $region20
      $region19: #{audio_encoder_forward.4} parent=11 // pred_region
        _
      $region20: #{audio_encoder_forward.4} parent=11 // pred_fallthru
        _
    $region12: #{audio_encoder_forward.4} parent=5 // pred_fallthru
      _
    %p140 = scmp.lt.s32.totalorder %s9, 2
    // Predicated region
    $region21: #{audio_encoder_forward.4} parent=5 // pred_check
      %p141 = pneg %p140
    $region22: #{audio_encoder_forward.4} parent=5 // pred_check_branch
      %143 = sbr.rel (%p141) target = $region24
    $region23: #{audio_encoder_forward.4} parent=5 // pred_region
      // Predicated region
      $region25: #{audio_encoder_forward.4} parent=23 // pred_check
        %p144 = pneg %p43
      $region26: #{audio_encoder_forward.4} parent=23 // pred_check_branch
        %146 = sbr.rel (%p144) target = $region28
      $region27: #{audio_encoder_forward.4} parent=23 // pred_region
        %s147 = smul.u32 16, %s17
        %p148 = scmp.lt.s32.totalorder %s16, 1
        %s149 = scalar_select %p148, %s16, 1
        %p150 = scmp.lt.s32.totalorder %s147, 15
        %s151 = scalar_select %p150, %s147, 15
        %s152 = smul.addr %s151, 2
        %s153 = smul.addr %s149, 32
        %s154 = sadd.s32 %s152, %s153
        %s155 = smul.addr %s154, 8
        %s156 = scalar_lea.vmem %s0, %s155
        %s157 = smul.u32 16, %s17
      $region28: #{audio_encoder_forward.4} parent=23 // pred_fallthru
        _
    $region24: #{audio_encoder_forward.4} parent=5 // pred_fallthru
      _
    %p158 = scmp.le.s32.totalorder 1, %s9
    %p159 = scmp.lt.s32.totalorder %s9, 3
    %p160 = pnand %p158, %p159
    %p161 = pneg %p160
    // Predicated region
    $region29: #{audio_encoder_forward.4} parent=5 // pred_check
      _
    $region30: #{audio_encoder_forward.4} parent=5 // pred_check_branch
      %163 = sbr.rel (%p160) target = $region32
    $region31: #{audio_encoder_forward.4} parent=5 // pred_region
      %s164 = ssub.s32 %s9, 1
      %s165 = smul.u32 16, %s19
      %p166 = scmp.lt.s32.totalorder %s18, 1
      %s167 = scalar_select %p166, %s18, 1
      %p168 = scmp.lt.s32.totalorder %s165, 15
      %s169 = scalar_select %p168, %s165, 15
      %s170 = smul.addr %s169, 2
      %s171 = smul.addr %s167, 32
      %s172 = sadd.s32 %s170, %s171
      %s173 = smul.addr %s172, 8
      %s174 = scalar_lea.vmem %s0, %s173
      %p175 = pneg %p49
      %p176 = pneg %p46
      %p177 = pneg %p70
      %p178 = pneg %p67
      %p179 = pneg %p91
      %p180 = pneg %p88
      %p181 = pneg %p119
      %p182 = pneg %p116
      %s183 = smul.u32 16, %s19
      %p184 = scmp.lt.s32.totalorder %s18, 1
      %s185 = scalar_select %p184, %s18, 1
      %p186 = scmp.lt.s32.totalorder %s183, 15
      %s187 = scalar_select %p186, %s183, 15
      %s188 = smul.addr %s187, 4
      %s189 = smul.addr %s185, 64
      %s190 = sadd.s32 %s188, %s189
      %s191 = smul.addr %s190, 4
      %s192 = scalar_lea.vmem %s3, %s191
      %s193 = smul.u32 16, %s19
      %p194 = scmp.lt.s32.totalorder %s18, 1
      %s195 = scalar_select %p194, %s18, 1
      %p196 = scmp.lt.s32.totalorder %s193, 15
      %s197 = scalar_select %p196, %s193, 15
      %s198 = smul.addr %s197, 2
      %s199 = smul.addr %s195, 32
      %s200 = sadd.s32 %s198, %s199
      %s201 = smul.addr %s200, 8
      %s202 = scalar_lea.vmem %s0, %s201
      %s203 = smul.u32 16, %s19
      %s204 = smul.u32 16, %s19
      %p205 = scmp.lt.s32.totalorder %s18, 1
      %s206 = scalar_select %p205, %s18, 1
      %p207 = scmp.lt.s32.totalorder %s204, 15
      %s208 = scalar_select %p207, %s204, 15
      %s209 = smul.addr %s208, 4
      %s210 = smul.addr %s206, 64
      %s211 = sadd.s32 %s209, %s210
      %s212 = smul.addr %s211, 4
      %s213 = scalar_lea.vmem %s3, %s212
      %s214 = smul.u32 16, %s19
      %v215 = vld [vmem:[%s202] sm:$0xff]
      %v216 = vld [vmem:[%s202 + $0x8] sm:$0xff]
      %v217 = vld [vmem:[%s202 + $0x10] sm:$0xff]
      %v218 = vld [vmem:[%s202 + $0x18] sm:$0xff]
      %v219 = vld [vmem:[%s202 + $0x20] sm:$0xff]
      %v220 = vld [vmem:[%s202 + $0x28] sm:$0xff]
      %v221 = vld [vmem:[%s202 + $0x30] sm:$0xff]
      %v222 = vld [vmem:[%s202 + $0x38] sm:$0xff]
      %v223 = vld [vmem:[%s202 + $0x40] sm:$0xff]
      %v224 = vld [vmem:[%s202 + $0x48] sm:$0xff]
      %v225 = vld [vmem:[%s202 + $0x50] sm:$0xff]
      %v226 = vld [vmem:[%s202 + $0x58] sm:$0xff]
      %v227 = vld [vmem:[%s202 + $0x60] sm:$0xff]
      %v228 = vld [vmem:[%s202 + $0x68] sm:$0xff]
      %v229 = vld [vmem:[%s202 + $0x70] sm:$0xff]
      %v230 = vld [vmem:[%s202 + $0x78] sm:$0xff]
      %v231 = vld [vmem:[%s202 + $0x80] sm:$0xff]
      %v232 = vld [vmem:[%s202 + $0x88] sm:$0xff]
      %v233 = vld [vmem:[%s202 + $0x90] sm:$0xff]
      %v234 = vld [vmem:[%s202 + $0x98] sm:$0xff]
      %v235 = vld [vmem:[%s202 + $0xa0] sm:$0xff]
      %v236 = vld [vmem:[%s202 + $0xa8] sm:$0xff]
      %v237 = vld [vmem:[%s202 + $0xb0] sm:$0xff]
      %v238 = vld [vmem:[%s202 + $0xb8] sm:$0xff]
      %v239 = vld [vmem:[%s202 + $0xc0] sm:$0xff]
      %v240 = vld [vmem:[%s202 + $0xc8] sm:$0xff]
      %v241 = vld [vmem:[%s202 + $0xd0] sm:$0xff]
      %v242 = vld [vmem:[%s202 + $0xd8] sm:$0xff]
      %v243 = vld [vmem:[%s202 + $0xe0] sm:$0xff]
      %v244 = vld [vmem:[%s202 + $0xe8] sm:$0xff]
      %v245 = vld [vmem:[%s202 + $0xf0] sm:$0xff]
      %v246 = vld [vmem:[%s202 + $0xf8] sm:$0xff]
      %v247 = vpack.c.bf16 %v217, %v215
      %v248 = vpack.c.bf16 %v218, %v216
      %v249 = vpack.c.bf16 %v221, %v219
      %v250 = vpack.c.bf16 %v222, %v220
      %v251 = vpack.c.bf16 %v225, %v223
      %v252 = vpack.c.bf16 %v226, %v224
      %v253 = vpack.c.bf16 %v229, %v227
      %v254 = vpack.c.bf16 %v230, %v228
      %v255 = vpack.c.bf16 %v233, %v231
      %v256 = vpack.c.bf16 %v234, %v232
      %v257 = vpack.c.bf16 %v237, %v235
      %v258 = vpack.c.bf16 %v238, %v236
      %v259 = vpack.c.bf16 %v241, %v239
      %v260 = vpack.c.bf16 %v242, %v240
      %v261 = vpack.c.bf16 %v245, %v243
      %v262 = vpack.c.bf16 %v246, %v244
      %v263 = vld [vmem:[%s1] sm:$0xff]
      %v264 = vld [vmem:[%s1 + $0x8] sm:$0xff]
      %v265 = vld [vmem:[%s1 + $0x10] sm:$0xff]
      %v266 = vld [vmem:[%s1 + $0x18] sm:$0xff]
      %v267 = vld [vmem:[%s1 + $0x20] sm:$0xff]
      %v268 = vld [vmem:[%s1 + $0x28] sm:$0xff]
      %v269 = vld [vmem:[%s1 + $0x30] sm:$0xff]
      %v270 = vld [vmem:[%s1 + $0x38] sm:$0xff]
      %v271 = vld [vmem:[%s1 + $0x40] sm:$0xff]
      %v272 = vld [vmem:[%s1 + $0x48] sm:$0xff]
      %v273 = vld [vmem:[%s1 + $0x50] sm:$0xff]
      %v274 = vld [vmem:[%s1 + $0x58] sm:$0xff]
      %v275 = vld [vmem:[%s1 + $0x60] sm:$0xff]
      %v276 = vld [vmem:[%s1 + $0x68] sm:$0xff]
      %v277 = vld [vmem:[%s1 + $0x70] sm:$0xff]
      %v278 = vld [vmem:[%s1 + $0x78] sm:$0xff]
      %v279 = vld [vmem:[%s1 + $0x80] sm:$0xff]
      %v280 = vld [vmem:[%s1 + $0x88] sm:$0xff]
      %v281 = vld [vmem:[%s1 + $0x90] sm:$0xff]
      %v282 = vld [vmem:[%s1 + $0x98] sm:$0xff]
      %v283 = vld [vmem:[%s1 + $0xa0] sm:$0xff]
      %v284 = vld [vmem:[%s1 + $0xa8] sm:$0xff]
      %v285 = vld [vmem:[%s1 + $0xb0] sm:$0xff]
      %v286 = vld [vmem:[%s1 + $0xb8] sm:$0xff]
      %v287 = vld [vmem:[%s1 + $0xc0] sm:$0xff]
      %v288 = vld [vmem:[%s1 + $0xc8] sm:$0xff]
      %v289 = vld [vmem:[%s1 + $0xd0] sm:$0xff]
      %v290 = vld [vmem:[%s1 + $0xd8] sm:$0xff]
      %v291 = vld [vmem:[%s1 + $0xe0] sm:$0xff]
      %v292 = vld [vmem:[%s1 + $0xe8] sm:$0xff]
      %v293 = vld [vmem:[%s1 + $0xf0] sm:$0xff]
      %v294 = vld [vmem:[%s1 + $0xf8] sm:$0xff]
      %v295 = vld [vmem:[%s1 + $0x100] sm:$0xff]
      %v296 = vld [vmem:[%s1 + $0x108] sm:$0xff]
      %v297 = vld [vmem:[%s1 + $0x110] sm:$0xff]
      %v298 = vld [vmem:[%s1 + $0x118] sm:$0xff]
      %v299 = vld [vmem:[%s1 + $0x120] sm:$0xff]
      %v300 = vld [vmem:[%s1 + $0x128] sm:$0xff]
      %v301 = vld [vmem:[%s1 + $0x130] sm:$0xff]
      %v302 = vld [vmem:[%s1 + $0x138] sm:$0xff]
      %v303 = vld [vmem:[%s1 + $0x140] sm:$0xff]
      %v304 = vld [vmem:[%s1 + $0x148] sm:$0xff]
      %v305 = vld [vmem:[%s1 + $0x150] sm:$0xff]
      %v306 = vld [vmem:[%s1 + $0x158] sm:$0xff]
      %v307 = vld [vmem:[%s1 + $0x160] sm:$0xff]
      %v308 = vld [vmem:[%s1 + $0x168] sm:$0xff]
      %v309 = vld [vmem:[%s1 + $0x170] sm:$0xff]
      %v310 = vld [vmem:[%s1 + $0x178] sm:$0xff]
      %v311 = vld [vmem:[%s1 + $0x180] sm:$0xff]
      %v312 = vld [vmem:[%s1 + $0x188] sm:$0xff]
      %v313 = vld [vmem:[%s1 + $0x190] sm:$0xff]
      %v314 = vld [vmem:[%s1 + $0x198] sm:$0xff]
      %v315 = vld [vmem:[%s1 + $0x1a0] sm:$0xff]
      %v316 = vld [vmem:[%s1 + $0x1a8] sm:$0xff]
      %v317 = vld [vmem:[%s1 + $0x1b0] sm:$0xff]
      %v318 = vld [vmem:[%s1 + $0x1b8] sm:$0xff]
      %v319 = vld [vmem:[%s1 + $0x1c0] sm:$0xff]
      %v320 = vld [vmem:[%s1 + $0x1c8] sm:$0xff]
      %v321 = vld [vmem:[%s1 + $0x1d0] sm:$0xff]
      %v322 = vld [vmem:[%s1 + $0x1d8] sm:$0xff]
      %v323 = vld [vmem:[%s1 + $0x1e0] sm:$0xff]
      %v324 = vld [vmem:[%s1 + $0x1e8] sm:$0xff]
      %v325 = vld [vmem:[%s1 + $0x1f0] sm:$0xff]
      %v326 = vld [vmem:[%s1 + $0x1f8] sm:$0xff]
      %v327 = vld [vmem:[%s2] sm:$0xf]
      %v329 = vlaneseq
      %v330 = vshrl.u32 %v329, 7
      %v331 = vsub.s32 0, %v330
      %v332 = vrot.slane %v327, %v331
      %v333 = vlaneseq
      %v334 = vshrl.u32 %v333, 7
      %v335 = vsub.s32 1, %v334
      %v336 = vrot.slane %v327, %v335
      %v337 = vlaneseq
      %v338 = vshrl.u32 %v337, 7
      %v339 = vsub.s32 2, %v338
      %v340 = vrot.slane %v327, %v339
      %v341 = vlaneseq
      %v342 = vshrl.u32 %v341, 7
      %v343 = vsub.s32 3, %v342
      %v344 = vrot.slane %v327, %v343
      %v413 = vunpack.c.l.b16 %v263
      %v414 = vunpack.c.h.b16 %v263
      %v415 = vunpack.c.l.b16 %v264
      %v416 = vunpack.c.h.b16 %v264
      %v417 = vunpack.c.l.b16 %v265
      %v418 = vunpack.c.h.b16 %v265
      %v419 = vunpack.c.l.b16 %v266
      %v420 = vunpack.c.h.b16 %v266
      %v421 = vunpack.c.l.b16 %v267
      %v422 = vunpack.c.h.b16 %v267
      %v423 = vunpack.c.l.b16 %v268
      %v424 = vunpack.c.h.b16 %v268
      %v425 = vunpack.c.l.b16 %v269
      %v426 = vunpack.c.h.b16 %v269
      %v427 = vunpack.c.l.b16 %v270
      %v428 = vunpack.c.h.b16 %v270
      %v429 = vunpack.c.l.b16 %v271
      %v430 = vunpack.c.h.b16 %v271
      %v431 = vunpack.c.l.b16 %v272
      %v432 = vunpack.c.h.b16 %v272
      %v433 = vunpack.c.l.b16 %v273
      %v434 = vunpack.c.h.b16 %v273
      %v435 = vunpack.c.l.b16 %v274
      %v436 = vunpack.c.h.b16 %v274
      %v437 = vunpack.c.l.b16 %v275
      %v438 = vunpack.c.h.b16 %v275
      %v439 = vunpack.c.l.b16 %v276
      %v440 = vunpack.c.h.b16 %v276
      %v441 = vunpack.c.l.b16 %v277
      %v442 = vunpack.c.h.b16 %v277
      %v443 = vunpack.c.l.b16 %v278
      %v444 = vunpack.c.h.b16 %v278
      %v445 = vunpack.c.l.b16 %v279
      %v446 = vunpack.c.h.b16 %v279
      %v447 = vunpack.c.l.b16 %v280
      %v448 = vunpack.c.h.b16 %v280
      %v449 = vunpack.c.l.b16 %v281
      %v450 = vunpack.c.h.b16 %v281
      %v451 = vunpack.c.l.b16 %v282
      %v452 = vunpack.c.h.b16 %v282
      %v453 = vunpack.c.l.b16 %v283
      %v454 = vunpack.c.h.b16 %v283
      %v455 = vunpack.c.l.b16 %v284
      %v456 = vunpack.c.h.b16 %v284
      %v457 = vunpack.c.l.b16 %v285
      %v458 = vunpack.c.h.b16 %v285
      %v459 = vunpack.c.l.b16 %v286
      %v460 = vunpack.c.h.b16 %v286
      %v461 = vunpack.c.l.b16 %v287
      %v462 = vunpack.c.h.b16 %v287
      %v463 = vunpack.c.l.b16 %v288
      %v464 = vunpack.c.h.b16 %v288
      %v465 = vunpack.c.l.b16 %v289
      %v466 = vunpack.c.h.b16 %v289
      %v467 = vunpack.c.l.b16 %v290
      %v468 = vunpack.c.h.b16 %v290
      %v469 = vunpack.c.l.b16 %v291
      %v470 = vunpack.c.h.b16 %v291
      %v471 = vunpack.c.l.b16 %v292
      %v472 = vunpack.c.h.b16 %v292
      %v473 = vunpack.c.l.b16 %v293
      %v474 = vunpack.c.h.b16 %v293
      %v475 = vunpack.c.l.b16 %v294
      %v476 = vunpack.c.h.b16 %v294
      %v477 = vunpack.c.l.b16 %v295
      %v478 = vunpack.c.h.b16 %v295
      %v479 = vunpack.c.l.b16 %v296
      %v480 = vunpack.c.h.b16 %v296
      %v481 = vunpack.c.l.b16 %v297
      %v482 = vunpack.c.h.b16 %v297
      %v483 = vunpack.c.l.b16 %v298
      %v484 = vunpack.c.h.b16 %v298
      %v485 = vunpack.c.l.b16 %v299
      %v486 = vunpack.c.h.b16 %v299
      %v487 = vunpack.c.l.b16 %v300
      %v488 = vunpack.c.h.b16 %v300
      %v489 = vunpack.c.l.b16 %v301
      %v490 = vunpack.c.h.b16 %v301
      %v491 = vunpack.c.l.b16 %v302
      %v492 = vunpack.c.h.b16 %v302
      %v493 = vunpack.c.l.b16 %v303
      %v494 = vunpack.c.h.b16 %v303
      %v495 = vunpack.c.l.b16 %v304
      %v496 = vunpack.c.h.b16 %v304
      %v497 = vunpack.c.l.b16 %v305
      %v498 = vunpack.c.h.b16 %v305
      %v499 = vunpack.c.l.b16 %v306
      %v500 = vunpack.c.h.b16 %v306
      %v501 = vunpack.c.l.b16 %v307
      %v502 = vunpack.c.h.b16 %v307
      %v503 = vunpack.c.l.b16 %v308
      %v504 = vunpack.c.h.b16 %v308
      %v505 = vunpack.c.l.b16 %v309
      %v506 = vunpack.c.h.b16 %v309
      %v507 = vunpack.c.l.b16 %v310
      %v508 = vunpack.c.h.b16 %v310
      %v509 = vunpack.c.l.b16 %v311
      %v510 = vunpack.c.h.b16 %v311
      %v511 = vunpack.c.l.b16 %v312
      %v512 = vunpack.c.h.b16 %v312
      %v513 = vunpack.c.l.b16 %v313
      %v514 = vunpack.c.h.b16 %v313
      %v515 = vunpack.c.l.b16 %v314
      %v516 = vunpack.c.h.b16 %v314
      %v517 = vunpack.c.l.b16 %v315
      %v518 = vunpack.c.h.b16 %v315
      %v519 = vunpack.c.l.b16 %v316
      %v520 = vunpack.c.h.b16 %v316
      %v521 = vunpack.c.l.b16 %v317
      %v522 = vunpack.c.h.b16 %v317
      %v523 = vunpack.c.l.b16 %v318
      %v524 = vunpack.c.h.b16 %v318
      %v525 = vunpack.c.l.b16 %v319
      %v526 = vunpack.c.h.b16 %v319
      %v527 = vunpack.c.l.b16 %v320
      %v528 = vunpack.c.h.b16 %v320
      %v529 = vunpack.c.l.b16 %v321
      %v530 = vunpack.c.h.b16 %v321
      %v531 = vunpack.c.l.b16 %v322
      %v532 = vunpack.c.h.b16 %v322
      %v533 = vunpack.c.l.b16 %v323
      %v534 = vunpack.c.h.b16 %v323
      %v535 = vunpack.c.l.b16 %v324
      %v536 = vunpack.c.h.b16 %v324
      %v537 = vunpack.c.l.b16 %v325
      %v538 = vunpack.c.h.b16 %v325
      %v539 = vunpack.c.l.b16 %v326
      %v540 = vunpack.c.h.b16 %v326
      %v541 = vpack.c.b16 %v417, %v413
      %v542 = vpack.c.b16 %v418, %v414
      %v543 = vpack.c.b16 %v419, %v415
      %v544 = vpack.c.b16 %v420, %v416
      %v545 = vpack.c.b16 %v425, %v421
      %v546 = vpack.c.b16 %v426, %v422
      %v547 = vpack.c.b16 %v427, %v423
      %v548 = vpack.c.b16 %v428, %v424
      %v549 = vpack.c.b16 %v433, %v429
      %v550 = vpack.c.b16 %v434, %v430
      %v551 = vpack.c.b16 %v435, %v431
      %v552 = vpack.c.b16 %v436, %v432
      %v553 = vpack.c.b16 %v441, %v437
      %v554 = vpack.c.b16 %v442, %v438
      %v555 = vpack.c.b16 %v443, %v439
      %v556 = vpack.c.b16 %v444, %v440
      %v557 = vpack.c.b16 %v449, %v445
      %v558 = vpack.c.b16 %v450, %v446
      %v559 = vpack.c.b16 %v451, %v447
      %v560 = vpack.c.b16 %v452, %v448
      %v561 = vpack.c.b16 %v457, %v453
      %v562 = vpack.c.b16 %v458, %v454
      %v563 = vpack.c.b16 %v459, %v455
      %v564 = vpack.c.b16 %v460, %v456
      %v565 = vpack.c.b16 %v465, %v461
      %v566 = vpack.c.b16 %v466, %v462
      %v567 = vpack.c.b16 %v467, %v463
      %v568 = vpack.c.b16 %v468, %v464
      %v569 = vpack.c.b16 %v473, %v469
      %v570 = vpack.c.b16 %v474, %v470
      %v571 = vpack.c.b16 %v475, %v471
      %v572 = vpack.c.b16 %v476, %v472
      %v573 = vpack.c.b16 %v481, %v477
      %v574 = vpack.c.b16 %v482, %v478
      %v575 = vpack.c.b16 %v483, %v479
      %v576 = vpack.c.b16 %v484, %v480
      %v577 = vpack.c.b16 %v489, %v485
      %v578 = vpack.c.b16 %v490, %v486
      %v579 = vpack.c.b16 %v491, %v487
      %v580 = vpack.c.b16 %v492, %v488
      %v581 = vpack.c.b16 %v497, %v493
      %v582 = vpack.c.b16 %v498, %v494
      %v583 = vpack.c.b16 %v499, %v495
      %v584 = vpack.c.b16 %v500, %v496
      %v585 = vpack.c.b16 %v505, %v501
      %v586 = vpack.c.b16 %v506, %v502
      %v587 = vpack.c.b16 %v507, %v503
      %v588 = vpack.c.b16 %v508, %v504
      %v589 = vpack.c.b16 %v513, %v509
      %v590 = vpack.c.b16 %v514, %v510
      %v591 = vpack.c.b16 %v515, %v511
      %v592 = vpack.c.b16 %v516, %v512
      %v593 = vpack.c.b16 %v521, %v517
      %v594 = vpack.c.b16 %v522, %v518
      %v595 = vpack.c.b16 %v523, %v519
      %v596 = vpack.c.b16 %v524, %v520
      %v597 = vpack.c.b16 %v529, %v525
      %v598 = vpack.c.b16 %v530, %v526
      %v599 = vpack.c.b16 %v531, %v527
      %v600 = vpack.c.b16 %v532, %v528
      %v601 = vpack.c.b16 %v537, %v533
      %v602 = vpack.c.b16 %v538, %v534
      %v603 = vpack.c.b16 %v539, %v535
      %v604 = vpack.c.b16 %v540, %v536
      %669 = vmatprep.subr.bf16.mxu0 %v570
      %670 = vmatpush1.bf16.msra.mxu0 %v569
      %671 = vmatprep.subr.bf16.mxu0 %v566
      %672 = vmatpush1.bf16.msra.mxu0 %v565
      %673 = vmatprep.subr.bf16.mxu0 %v562
      %674 = vmatpush1.bf16.msra.mxu0 %v561
      %675 = vmatprep.subr.bf16.mxu0 %v558
      %676 = vmatpush1.bf16.msra.mxu0 %v557
      %677 = vmatprep.subr.bf16.mxu0 %v554
      %678 = vmatpush1.bf16.msra.mxu0 %v553
      %679 = vmatprep.subr.bf16.mxu0 %v550
      %680 = vmatpush1.bf16.msra.mxu0 %v549
      %681 = vmatprep.subr.bf16.mxu0 %v546
      %682 = vmatpush1.bf16.msra.mxu0 %v545
      %683 = vmatprep.subr.bf16.mxu0 %v542
      %684 = vmatpush1.bf16.msra.mxu0 %v541
      %685 = vmatprep.subr.bf16.mxu0 %v602
      %686 = vmatpush2.bf16.msra.mxu0 %v601
      %687 = vmatprep.subr.bf16.mxu0 %v598
      %688 = vmatpush2.bf16.msra.mxu0 %v597
      %689 = vmatprep.subr.bf16.mxu0 %v594
      %690 = vmatpush2.bf16.msra.mxu0 %v593
      %691 = vmatprep.subr.bf16.mxu0 %v590
      %692 = vmatpush2.bf16.msra.mxu0 %v589
      %693 = vmatprep.subr.bf16.mxu0 %v586
      %694 = vmatpush2.bf16.msra.mxu0 %v585
      %695 = vmatprep.subr.bf16.mxu0 %v582
      %696 = vmatpush2.bf16.msra.mxu0 %v581
      %697 = vmatprep.subr.bf16.mxu0 %v578
      %698 = vmatpush2.bf16.msra.mxu0 %v577
      %699 = vmatprep.subr.bf16.mxu0 %v574
      %700 = vmatpush2.bf16.msra.mxu0 %v573
      %701 = vmatprep.mubr.bf16.mxu0 %v248
      %702 = vmatmul.mubr.bf16.gmra.mxu0 %v247
      %v703 = vpop.f32.mrf.mxu0
      %v704 = vadd.f32 %v332, %v703
      %v705 = vpop.f32.mrf.mxu0
      %v706 = vadd.f32 %v336, %v705
      %v707 = vpop.f32.mrf.mxu0
      %v708 = vadd.f32 %v332, %v707
      %v709 = vpop.f32.mrf.mxu0
      %v710 = vadd.f32 %v336, %v709
      %711 = vmatprep.mubr.bf16.mxu0 %v250
      %712 = vmatmul.mubr.bf16.gmra.mxu0 %v249
      %v713 = vpop.f32.mrf.mxu0
      %v714 = vadd.f32 %v332, %v713
      %v715 = vpop.f32.mrf.mxu0
      %v716 = vadd.f32 %v336, %v715
      %v717 = vpop.f32.mrf.mxu0
      %v718 = vadd.f32 %v332, %v717
      %v719 = vpop.f32.mrf.mxu0
      %v720 = vadd.f32 %v336, %v719
      %721 = vmatprep.mubr.bf16.mxu0 %v252
      %722 = vmatmul.mubr.bf16.gmra.mxu0 %v251
      %v723 = vpop.f32.mrf.mxu0
      %v724 = vadd.f32 %v332, %v723
      %v725 = vpop.f32.mrf.mxu0
      %v726 = vadd.f32 %v336, %v725
      %v727 = vpop.f32.mrf.mxu0
      %v728 = vadd.f32 %v332, %v727
      %v729 = vpop.f32.mrf.mxu0
      %v730 = vadd.f32 %v336, %v729
      %731 = vmatprep.mubr.bf16.mxu0 %v254
      %732 = vmatmul.mubr.bf16.gmra.mxu0 %v253
      %v733 = vpop.f32.mrf.mxu0
      %v734 = vadd.f32 %v332, %v733
      %v735 = vpop.f32.mrf.mxu0
      %v736 = vadd.f32 %v336, %v735
      %v737 = vpop.f32.mrf.mxu0
      %v738 = vadd.f32 %v332, %v737
      %v739 = vpop.f32.mrf.mxu0
      %v740 = vadd.f32 %v336, %v739
      %741 = vmatprep.mubr.bf16.mxu0 %v256
      %742 = vmatmul.mubr.bf16.gmra.mxu0 %v255
      %v743 = vpop.f32.mrf.mxu0
      %v744 = vadd.f32 %v332, %v743
      %v745 = vpop.f32.mrf.mxu0
      %v746 = vadd.f32 %v336, %v745
      %v747 = vpop.f32.mrf.mxu0
      %v748 = vadd.f32 %v332, %v747
      %v749 = vpop.f32.mrf.mxu0
      %v750 = vadd.f32 %v336, %v749
      %751 = vmatprep.mubr.bf16.mxu0 %v258
      %752 = vmatmul.mubr.bf16.gmra.mxu0 %v257
      %v753 = vpop.f32.mrf.mxu0
      %v754 = vadd.f32 %v332, %v753
      %v755 = vpop.f32.mrf.mxu0
      %v756 = vadd.f32 %v336, %v755
      %v757 = vpop.f32.mrf.mxu0
      %v758 = vadd.f32 %v332, %v757
      %v759 = vpop.f32.mrf.mxu0
      %v760 = vadd.f32 %v336, %v759
      %761 = vmatprep.mubr.bf16.mxu0 %v260
      %762 = vmatmul.mubr.bf16.gmra.mxu0 %v259
      %v763 = vpop.f32.mrf.mxu0
      %v764 = vadd.f32 %v332, %v763
      %v765 = vpop.f32.mrf.mxu0
      %v766 = vadd.f32 %v336, %v765
      %v767 = vpop.f32.mrf.mxu0
      %v768 = vadd.f32 %v332, %v767
      %v769 = vpop.f32.mrf.mxu0
      %v770 = vadd.f32 %v336, %v769
      %771 = vmatprep.mubr.bf16.mxu0 %v262
      %772 = vmatmul.mubr.bf16.gmra.mxu0 %v261
      %v773 = vpop.f32.mrf.mxu0
      %v774 = vadd.f32 %v332, %v773
      %v775 = vpop.f32.mrf.mxu0
      %v776 = vadd.f32 %v336, %v775
      %v777 = vpop.f32.mrf.mxu0
      %v778 = vadd.f32 %v332, %v777
      %v779 = vpop.f32.mrf.mxu0
      %v780 = vadd.f32 %v336, %v779
      %781 = vdwg.mxu0
      %782 = vmatprep.subr.bf16.mxu0 %v572
      %783 = vmatpush1.bf16.msra.mxu0 %v571
      %784 = vmatprep.subr.bf16.mxu0 %v568
      %785 = vmatpush1.bf16.msra.mxu0 %v567
      %786 = vmatprep.subr.bf16.mxu0 %v564
      %787 = vmatpush1.bf16.msra.mxu0 %v563
      %788 = vmatprep.subr.bf16.mxu0 %v560
      %789 = vmatpush1.bf16.msra.mxu0 %v559
      %790 = vmatprep.subr.bf16.mxu0 %v556
      %791 = vmatpush1.bf16.msra.mxu0 %v555
      %792 = vmatprep.subr.bf16.mxu0 %v552
      %793 = vmatpush1.bf16.msra.mxu0 %v551
      %794 = vmatprep.subr.bf16.mxu0 %v548
      %795 = vmatpush1.bf16.msra.mxu0 %v547
      %796 = vmatprep.subr.bf16.mxu0 %v544
      %797 = vmatpush1.bf16.msra.mxu0 %v543
      %798 = vmatprep.subr.bf16.mxu0 %v604
      %799 = vmatpush2.bf16.msra.mxu0 %v603
      %800 = vmatprep.subr.bf16.mxu0 %v600
      %801 = vmatpush2.bf16.msra.mxu0 %v599
      %802 = vmatprep.subr.bf16.mxu0 %v596
      %803 = vmatpush2.bf16.msra.mxu0 %v595
      %804 = vmatprep.subr.bf16.mxu0 %v592
      %805 = vmatpush2.bf16.msra.mxu0 %v591
      %806 = vmatprep.subr.bf16.mxu0 %v588
      %807 = vmatpush2.bf16.msra.mxu0 %v587
      %808 = vmatprep.subr.bf16.mxu0 %v584
      %809 = vmatpush2.bf16.msra.mxu0 %v583
      %810 = vmatprep.subr.bf16.mxu0 %v580
      %811 = vmatpush2.bf16.msra.mxu0 %v579
      %812 = vmatprep.subr.bf16.mxu0 %v576
      %813 = vmatpush2.bf16.msra.mxu0 %v575
      %814 = vmatprep.mubr.bf16.mxu0 %v248
      %815 = vmatmul.mubr.bf16.gmra.mxu0 %v247
      %v816 = vpop.f32.mrf.mxu0
      %v817 = vadd.f32 %v340, %v816
      %v818 = vpop.f32.mrf.mxu0
      %v819 = vadd.f32 %v344, %v818
      %v820 = vpop.f32.mrf.mxu0
      %v821 = vadd.f32 %v340, %v820
      %v822 = vpop.f32.mrf.mxu0
      %v823 = vadd.f32 %v344, %v822
      %824 = vmatprep.mubr.bf16.mxu0 %v250
      %825 = vmatmul.mubr.bf16.gmra.mxu0 %v249
      %v826 = vpop.f32.mrf.mxu0
      %v827 = vadd.f32 %v340, %v826
      %v828 = vpop.f32.mrf.mxu0
      %v829 = vadd.f32 %v344, %v828
      %v830 = vpop.f32.mrf.mxu0
      %v831 = vadd.f32 %v340, %v830
      %v832 = vpop.f32.mrf.mxu0
      %v833 = vadd.f32 %v344, %v832
      %834 = vmatprep.mubr.bf16.mxu0 %v252
      %835 = vmatmul.mubr.bf16.gmra.mxu0 %v251
      %v836 = vpop.f32.mrf.mxu0
      %v837 = vadd.f32 %v340, %v836
      %v838 = vpop.f32.mrf.mxu0
      %v839 = vadd.f32 %v344, %v838
      %v840 = vpop.f32.mrf.mxu0
      %v841 = vadd.f32 %v340, %v840
      %v842 = vpop.f32.mrf.mxu0
      %v843 = vadd.f32 %v344, %v842
      %844 = vmatprep.mubr.bf16.mxu0 %v254
      %845 = vmatmul.mubr.bf16.gmra.mxu0 %v253
      %v846 = vpop.f32.mrf.mxu0
      %v847 = vadd.f32 %v340, %v846
      %v848 = vpop.f32.mrf.mxu0
      %v849 = vadd.f32 %v344, %v848
      %v850 = vpop.f32.mrf.mxu0
      %v851 = vadd.f32 %v340, %v850
      %v852 = vpop.f32.mrf.mxu0
      %v853 = vadd.f32 %v344, %v852
      %854 = vmatprep.mubr.bf16.mxu0 %v256
      %855 = vmatmul.mubr.bf16.gmra.mxu0 %v255
      %v856 = vpop.f32.mrf.mxu0
      %v857 = vadd.f32 %v340, %v856
      %v858 = vpop.f32.mrf.mxu0
      %v859 = vadd.f32 %v344, %v858
      %v860 = vpop.f32.mrf.mxu0
      %v861 = vadd.f32 %v340, %v860
      %v862 = vpop.f32.mrf.mxu0
      %v863 = vadd.f32 %v344, %v862
      %864 = vmatprep.mubr.bf16.mxu0 %v258
      %865 = vmatmul.mubr.bf16.gmra.mxu0 %v257
      %v866 = vpop.f32.mrf.mxu0
      %v867 = vadd.f32 %v340, %v866
      %v868 = vpop.f32.mrf.mxu0
      %v869 = vadd.f32 %v344, %v868
      %v870 = vpop.f32.mrf.mxu0
      %v871 = vadd.f32 %v340, %v870
      %v872 = vpop.f32.mrf.mxu0
      %v873 = vadd.f32 %v344, %v872
      %874 = vmatprep.mubr.bf16.mxu0 %v260
      %875 = vmatmul.mubr.bf16.gmra.mxu0 %v259
      %v876 = vpop.f32.mrf.mxu0
      %v877 = vadd.f32 %v340, %v876
      %v878 = vpop.f32.mrf.mxu0
      %v879 = vadd.f32 %v344, %v878
      %v880 = vpop.f32.mrf.mxu0
      %v881 = vadd.f32 %v340, %v880
      %v882 = vpop.f32.mrf.mxu0
      %v883 = vadd.f32 %v344, %v882
      %884 = vmatprep.mubr.bf16.mxu0 %v262
      %885 = vmatmul.mubr.bf16.gmra.mxu0 %v261
      %v886 = vpop.f32.mrf.mxu0
      %v887 = vadd.f32 %v340, %v886
      %v888 = vpop.f32.mrf.mxu0
      %v889 = vadd.f32 %v344, %v888
      %v890 = vpop.f32.mrf.mxu0
      %v891 = vadd.f32 %v340, %v890
      %v892 = vpop.f32.mrf.mxu0
      %v893 = vadd.f32 %v344, %v892
      %894 = vdwg.mxu0
      %v895 = vpack.c.bf16 %v708, %v704
      %v896 = vpack.c.bf16 %v710, %v706
      %v897 = vpack.c.bf16 %v821, %v817
      %v898 = vpack.c.bf16 %v823, %v819
      %v899 = vpack.c.bf16 %v718, %v714
      %v900 = vpack.c.bf16 %v720, %v716
      %v901 = vpack.c.bf16 %v831, %v827
      %v902 = vpack.c.bf16 %v833, %v829
      %v903 = vpack.c.bf16 %v728, %v724
      %v904 = vpack.c.bf16 %v730, %v726
      %v905 = vpack.c.bf16 %v841, %v837
      %v906 = vpack.c.bf16 %v843, %v839
      %v907 = vpack.c.bf16 %v738, %v734
      %v908 = vpack.c.bf16 %v740, %v736
      %v909 = vpack.c.bf16 %v851, %v847
      %v910 = vpack.c.bf16 %v853, %v849
      %v911 = vpack.c.bf16 %v748, %v744
      %v912 = vpack.c.bf16 %v750, %v746
      %v913 = vpack.c.bf16 %v861, %v857
      %v914 = vpack.c.bf16 %v863, %v859
      %v915 = vpack.c.bf16 %v758, %v754
      %v916 = vpack.c.bf16 %v760, %v756
      %v917 = vpack.c.bf16 %v871, %v867
      %v918 = vpack.c.bf16 %v873, %v869
      %v919 = vpack.c.bf16 %v768, %v764
      %v920 = vpack.c.bf16 %v770, %v766
      %v921 = vpack.c.bf16 %v881, %v877
      %v922 = vpack.c.bf16 %v883, %v879
      %v923 = vpack.c.bf16 %v778, %v774
      %v924 = vpack.c.bf16 %v780, %v776
      %v925 = vpack.c.bf16 %v891, %v887
      %v926 = vpack.c.bf16 %v893, %v889
      %v959 = vunpack.c.l.b16 %v895
      %v960 = vunpack.c.l.b16 %v896
      %v961 = vunpack.c.l.b16 %v897
      %v962 = vunpack.c.l.b16 %v898
      %v963 = vunpack.c.h.b16 %v895
      %v964 = vunpack.c.h.b16 %v896
      %v965 = vunpack.c.h.b16 %v897
      %v966 = vunpack.c.h.b16 %v898
      %v967 = vunpack.c.l.b16 %v899
      %v968 = vunpack.c.l.b16 %v900
      %v969 = vunpack.c.l.b16 %v901
      %v970 = vunpack.c.l.b16 %v902
      %v971 = vunpack.c.h.b16 %v899
      %v972 = vunpack.c.h.b16 %v900
      %v973 = vunpack.c.h.b16 %v901
      %v974 = vunpack.c.h.b16 %v902
      %v975 = vunpack.c.l.b16 %v903
      %v976 = vunpack.c.l.b16 %v904
      %v977 = vunpack.c.l.b16 %v905
      %v978 = vunpack.c.l.b16 %v906
      %v979 = vunpack.c.h.b16 %v903
      %v980 = vunpack.c.h.b16 %v904
      %v981 = vunpack.c.h.b16 %v905
      %v982 = vunpack.c.h.b16 %v906
      %v983 = vunpack.c.l.b16 %v907
      %v984 = vunpack.c.l.b16 %v908
      %v985 = vunpack.c.l.b16 %v909
      %v986 = vunpack.c.l.b16 %v910
      %v987 = vunpack.c.h.b16 %v907
      %v988 = vunpack.c.h.b16 %v908
      %v989 = vunpack.c.h.b16 %v909
      %v990 = vunpack.c.h.b16 %v910
      %v991 = vunpack.c.l.b16 %v911
      %v992 = vunpack.c.l.b16 %v912
      %v993 = vunpack.c.l.b16 %v913
      %v994 = vunpack.c.l.b16 %v914
      %v995 = vunpack.c.h.b16 %v911
      %v996 = vunpack.c.h.b16 %v912
      %v997 = vunpack.c.h.b16 %v913
      %v998 = vunpack.c.h.b16 %v914
      %v999 = vunpack.c.l.b16 %v915
      %v1000 = vunpack.c.l.b16 %v916
      %v1001 = vunpack.c.l.b16 %v917
      %v1002 = vunpack.c.l.b16 %v918
      %v1003 = vunpack.c.h.b16 %v915
      %v1004 = vunpack.c.h.b16 %v916
      %v1005 = vunpack.c.h.b16 %v917
      %v1006 = vunpack.c.h.b16 %v918
      %v1007 = vunpack.c.l.b16 %v919
      %v1008 = vunpack.c.l.b16 %v920
      %v1009 = vunpack.c.l.b16 %v921
      %v1010 = vunpack.c.l.b16 %v922
      %v1011 = vunpack.c.h.b16 %v919
      %v1012 = vunpack.c.h.b16 %v920
      %v1013 = vunpack.c.h.b16 %v921
      %v1014 = vunpack.c.h.b16 %v922
      %v1015 = vunpack.c.l.b16 %v923
      %v1016 = vunpack.c.l.b16 %v924
      %v1017 = vunpack.c.l.b16 %v925
      %v1018 = vunpack.c.l.b16 %v926
      %v1019 = vunpack.c.h.b16 %v923
      %v1020 = vunpack.c.h.b16 %v924
      %v1021 = vunpack.c.h.b16 %v925
      %v1022 = vunpack.c.h.b16 %v926
      %v1023 = vpack.c.b16 %v960, %v959
      %v1024 = vpack.c.b16 %v962, %v961
      %v1025 = vpack.c.b16 %v964, %v963
      %v1026 = vpack.c.b16 %v966, %v965
      %v1027 = vpack.c.b16 %v968, %v967
      %v1028 = vpack.c.b16 %v970, %v969
      %v1029 = vpack.c.b16 %v972, %v971
      %v1030 = vpack.c.b16 %v974, %v973
      %v1031 = vpack.c.b16 %v976, %v975
      %v1032 = vpack.c.b16 %v978, %v977
      %v1033 = vpack.c.b16 %v980, %v979
      %v1034 = vpack.c.b16 %v982, %v981
      %v1035 = vpack.c.b16 %v984, %v983
      %v1036 = vpack.c.b16 %v986, %v985
      %v1037 = vpack.c.b16 %v988, %v987
      %v1038 = vpack.c.b16 %v990, %v989
      %v1039 = vpack.c.b16 %v992, %v991
      %v1040 = vpack.c.b16 %v994, %v993
      %v1041 = vpack.c.b16 %v996, %v995
      %v1042 = vpack.c.b16 %v998, %v997
      %v1043 = vpack.c.b16 %v1000, %v999
      %v1044 = vpack.c.b16 %v1002, %v1001
      %v1045 = vpack.c.b16 %v1004, %v1003
      %v1046 = vpack.c.b16 %v1006, %v1005
      %v1047 = vpack.c.b16 %v1008, %v1007
      %v1048 = vpack.c.b16 %v1010, %v1009
      %v1049 = vpack.c.b16 %v1012, %v1011
      %v1050 = vpack.c.b16 %v1014, %v1013
      %v1051 = vpack.c.b16 %v1016, %v1015
      %v1052 = vpack.c.b16 %v1018, %v1017
      %v1053 = vpack.c.b16 %v1020, %v1019
      %v1054 = vpack.c.b16 %v1022, %v1021
      %1087 = vst [vmem:[%s213] sm:$0xff] %v1023
      %1088 = vst [vmem:[%s213 + $0x8] sm:$0xff] %v1024
      %1089 = vst [vmem:[%s213 + $0x10] sm:$0xff] %v1025
      %1090 = vst [vmem:[%s213 + $0x18] sm:$0xff] %v1026
      %1091 = vst [vmem:[%s213 + $0x20] sm:$0xff] %v1027
      %1092 = vst [vmem:[%s213 + $0x28] sm:$0xff] %v1028
      %1093 = vst [vmem:[%s213 + $0x30] sm:$0xff] %v1029
      %1094 = vst [vmem:[%s213 + $0x38] sm:$0xff] %v1030
      %1095 = vst [vmem:[%s213 + $0x40] sm:$0xff] %v1031
      %1096 = vst [vmem:[%s213 + $0x48] sm:$0xff] %v1032
      %1097 = vst [vmem:[%s213 + $0x50] sm:$0xff] %v1033
      %1098 = vst [vmem:[%s213 + $0x58] sm:$0xff] %v1034
      %1099 = vst [vmem:[%s213 + $0x60] sm:$0xff] %v1035
      %1100 = vst [vmem:[%s213 + $0x68] sm:$0xff] %v1036
      %1101 = vst [vmem:[%s213 + $0x70] sm:$0xff] %v1037
      %1102 = vst [vmem:[%s213 + $0x78] sm:$0xff] %v1038
      %1103 = vst [vmem:[%s213 + $0x80] sm:$0xff] %v1039
      %1104 = vst [vmem:[%s213 + $0x88] sm:$0xff] %v1040
      %1105 = vst [vmem:[%s213 + $0x90] sm:$0xff] %v1041
      %1106 = vst [vmem:[%s213 + $0x98] sm:$0xff] %v1042
      %1107 = vst [vmem:[%s213 + $0xa0] sm:$0xff] %v1043
      %1108 = vst [vmem:[%s213 + $0xa8] sm:$0xff] %v1044
      %1109 = vst [vmem:[%s213 + $0xb0] sm:$0xff] %v1045
      %1110 = vst [vmem:[%s213 + $0xb8] sm:$0xff] %v1046
      %1111 = vst [vmem:[%s213 + $0xc0] sm:$0xff] %v1047
      %1112 = vst [vmem:[%s213 + $0xc8] sm:$0xff] %v1048
      %1113 = vst [vmem:[%s213 + $0xd0] sm:$0xff] %v1049
      %1114 = vst [vmem:[%s213 + $0xd8] sm:$0xff] %v1050
      %1115 = vst [vmem:[%s213 + $0xe0] sm:$0xff] %v1051
      %1116 = vst [vmem:[%s213 + $0xe8] sm:$0xff] %v1052
      %1117 = vst [vmem:[%s213 + $0xf0] sm:$0xff] %v1053
      %1118 = vst [vmem:[%s213 + $0xf8] sm:$0xff] %v1054
      %s1119 = smul.u32 16, %s19
      %p1120 = scmp.lt.s32.totalorder %s18, 1
      %s1121 = scalar_select %p1120, %s18, 1
      %p1122 = scmp.lt.s32.totalorder %s1119, 15
      %s1123 = scalar_select %p1122, %s1119, 15
      %s1124 = smul.addr %s1123, 4
      %s1125 = smul.addr %s1121, 64
      %s1126 = sadd.s32 %s1124, %s1125
      %s1127 = smul.addr %s1126, 4
      %s1128 = scalar_lea.vmem %s3, %s1127
      // Predicated region
      $region33: #{audio_encoder_forward.4} parent=31 // pred_check
        %p1129 = pneg %p116
      $region34: #{audio_encoder_forward.4} parent=31 // pred_check_branch
        %1131 = sbr.rel (%p1129) target = $region36
      $region35: #{audio_encoder_forward.4} parent=31 // pred_region
        %s1132 = smul.u32 16, %s19
      $region36: #{audio_encoder_forward.4} parent=31 // pred_fallthru
        _
    $region32: #{audio_encoder_forward.4} parent=5 // pred_fallthru
      _
    %p1133 = scmp.le.s32.totalorder 2, %s9
    // Predicated region
    $region37: #{audio_encoder_forward.4} parent=5 // pred_check
      %p1134 = pneg %p1133
    $region38: #{audio_encoder_forward.4} parent=5 // pred_check_branch
      %1136 = sbr.rel (%p1134) target = $region40
    $region39: #{audio_encoder_forward.4} parent=5 // pred_region
      %s1137 = ssub.s32 %s9, 2
      // Predicated region
      $region41: #{audio_encoder_forward.4} parent=39 // pred_check
        %p1138 = pneg %p122
      $region42: #{audio_encoder_forward.4} parent=39 // pred_check_branch
        %1140 = sbr.rel (%p1138) target = $region44
      $region43: #{audio_encoder_forward.4} parent=39 // pred_region
        %s1141 = smul.u32 16, %s21
        %p1142 = scmp.lt.s32.totalorder %s20, 1
        %s1143 = scalar_select %p1142, %s20, 1
        %p1144 = scmp.lt.s32.totalorder %s1141, 15
        %s1145 = scalar_select %p1144, %s1141, 15
        %s1146 = smul.addr %s1145, 4
        %s1147 = smul.addr %s1143, 64
        %s1148 = sadd.s32 %s1146, %s1147
        %s1149 = smul.addr %s1148, 4
        %s1150 = scalar_lea.vmem %s3, %s1149
      $region44: #{audio_encoder_forward.4} parent=39 // pred_fallthru
        _
    $region40: #{audio_encoder_forward.4} parent=5 // pred_fallthru
      _
  $region6: #{audio_encoder_forward.4} parent=0 // loop_footer
    %s13 = sadd.s32 1, %s9
  $region7: #{audio_encoder_forward.4} parent=0 // loop_footer_branch
    %8 = sbr.rel target = $region3
  $region8: #{audio_encoder_forward.4} parent=0 // loop_exit
    _

// kernel: audio_encoder_forward.5
$region0: #{audio_encoder_forward.5}
  #allocation0 [shape = 'u32[]', space=smem, size = 0x4, offset = 0x4, fixed_abs, tag = 'smem constant byte address 0x4 - core index']
  #allocation1 [shape = 'u32[144,128]{1,0:T(1,128)}', space=vmem, size = 0x12000, scoped, tag = 'internal scratch']
  #allocation2 [shape = 'bf16[128,256]{1,0:T(8,128)(2,1)}', space=vmem, size = 0x10000, scoped, tag = 'scratch operand']
  %s0 = inlined_call_operand.vmem [shape: f32[2,128,256], index: 0, kind: input, shape index: {}]
  %s1 = inlined_call_operand.vmem [shape: bf16[2,128,512], index: 1, kind: input, shape index: {}]
  %s2 = inlined_call_operand.vmem [shape: f32[2,1,128], index: 2, kind: input, shape index: {}]
  %s3 = inlined_call_operand.vmem [shape: bf16[256,256], index: 3, kind: input, shape index: {}]
  %s4 = inlined_call_operand.vmem [shape: f32[1,256], index: 4, kind: input, shape index: {}]
  %s5 = inlined_call_operand.vmem [shape: bf16[256,256], index: 5, kind: input, shape index: {}]
  %s6 = inlined_call_operand.vmem [shape: f32[1,256], index: 6, kind: input, shape index: {}]
  %s7 = inlined_call_operand.vmem [shape: bf16[256,64], index: 7, kind: input, shape index: {}]
  %s8 = inlined_call_operand.vmem [shape: f32[1,64], index: 8, kind: input, shape index: {}]
  %s9 = inlined_call_operand.vmem [shape: bf16[64,256], index: 9, kind: input, shape index: {}]
  %s10 = inlined_call_operand.vmem [shape: f32[1,256], index: 10, kind: input, shape index: {}]
  %s11 = inlined_call_operand.vmem [shape: f32[1,256], index: 11, kind: input, shape index: {}]
  %s12 = inlined_call_operand.vmem [shape: f32[1,256], index: 12, kind: input, shape index: {}]
  %s13 = inlined_call_operand.vmem [shape: f32[1,256], index: 13, kind: input, shape index: {}]
  %s14 = inlined_call_operand.vmem [shape: f32[1,256], index: 14, kind: input, shape index: {}]
  %s15 = inlined_call_operand.vmem [shape: f32[2,128,256], index: 15, kind: output, shape index: {}]
  %s16 = sld [smem:[#allocation0]]
  $region93: #{audio_encoder_forward.5} parent=0
    _
  %s18 = ssub.s32 1, %s16
  %s19 = scalar_select 0, %s18, %s16
  loop: start=0, step=1, limit=4
  $region2: #{audio_encoder_forward.5} parent=0 // loop_pre_header
    _
  $region3: #{audio_encoder_forward.5} parent=0 // loop_header
    %s21 = sphi 0, %s25
    %p22 = scmp.ge.s32.totalorder %s21, 4
    %s28 = sphi 0, %s40
    %s29 = sphi 0, %s36
    %s30 = sphi 0, %s28
    %s31 = sphi 0, %s29
    %s32 = sphi 0, %s30
    %s33 = sphi 0, %s31
    %s45 = sphi 0, %s47
    %s48 = sphi 0, %s45
    %s49 = sphi 0, %s48
    %s65 = sphi 0, %s49
    %s71 = sphi 0, %s73
    %s74 = sphi 0, %s71
    %s75 = sphi 0, %s74
    %s91 = sphi 0, %s75
    %s97 = sphi 0, %s99
    %s100 = sphi 0, %s97
    %s101 = sphi 0, %s100
    %s117 = sphi 0, %s101
    %s121 = sphi 0, %s121
    %s123 = sphi 0, %s121
    %s124 = sphi 0, %s123
    %s138 = sphi 0, %s124
    %s142 = sphi 0, %s142
    %s144 = sphi 0, %s142
    %s145 = sphi 0, %s144
    %s159 = sphi 0, %s145
    %s163 = sphi 0, %s163
    %s165 = sphi 0, %s163
    %s166 = sphi 0, %s165
    %s180 = sphi 0, %s166
    %s184 = sphi 0, %s184
    %s186 = sphi 0, %s184
    %s187 = sphi 0, %s186
    %s201 = sphi 0, %s187
    %s205 = sphi 0, %s205
    %s207 = sphi 0, %s205
    %s208 = sphi 0, %s207
    %s222 = sphi 0, %s208
    %s226 = sphi 0, %s226
    %s228 = sphi 0, %s226
    %s229 = sphi 0, %s228
    %s243 = sphi 0, %s229
    %s247 = sphi 0, %s247
    %s249 = sphi 0, %s247
    %s250 = sphi 0, %s249
    %s264 = sphi 0, %s250
    %s268 = sphi 0, %s268
    %s270 = sphi 0, %s268
    %s271 = sphi 0, %s270
    %s285 = sphi 0, %s271
    %s289 = sphi 0, %s289
    %s291 = sphi 0, %s289
    %s292 = sphi 0, %s291
    %s306 = sphi 0, %s292
    %s310 = sphi 0, %s310
    %s312 = sphi 0, %s310
    %s313 = sphi 0, %s312
    %s327 = sphi 0, %s313
    %s331 = sphi 0, %s331
    %s333 = sphi 0, %s331
    %s334 = sphi 0, %s333
    %s348 = sphi 0, %s334
    %s352 = sphi 0, %s352
    %s354 = sphi 0, %s352
    %s355 = sphi 0, %s354
    %s369 = sphi 0, %s355
    %s377 = sphi 0, %s379
    %s380 = sphi 0, %s377
    %s381 = sphi 0, %s380
    %s397 = sphi 0, %s381
  $region4: #{audio_encoder_forward.5} parent=0 // loop_header_branch
    %24 = sbr.rel (%p22) target = $region8
  $region5: #{audio_encoder_forward.5} parent=0 // loop_body
    %s26 = ssub.s32 %s21, 1
    %s27 = ssub.s32 %s21, 2
    %s34 = sadd.s32 1, %s29
    %p35 = scmp.ge.s32.totalorder %s34, 1
    %s36 = scalar_select %p35, 0, %s34
    %s37 = sadd.s32 1, %s28
    %s38 = scalar_select %p35, %s37, %s28
    %p39 = scmp.ge.s32.totalorder %s38, 2
    %s40 = scalar_select %p39, 0, %s38
    %s41 = ssub.s32 %s28, %s40
    %s42 = ssub.s32 %s29, %s36
    %s43 = sor.u32 %s41, %s42
    %p44 = scmp.eq.s32.totalorder %s43, 0
    %s46 = sadd.s32 %s45, 1
    %s47 = scalar_select %p44, %s45, %s46
    %p50 = pneg %p44
    %p51 = scmp.eq.s32.totalorder %s21, 1
    %p52 = por %p50, %p51
    %p53 = scmp.ne.s32.totalorder %s45, %s48
    %p54 = scmp.eq.s32.totalorder %s21, 0
    %p55 = por %p53, %p54
    %p56 = scmp.ne.s32.totalorder %s45, %s48
    %p57 = scmp.eq.s32.totalorder %s26, 1
    %p58 = por %p56, %p57
    %p59 = scmp.ne.s32.totalorder %s48, %s49
    %p60 = scmp.eq.s32.totalorder %s26, 0
    %p61 = por %p59, %p60
    %p62 = scmp.ne.s32.totalorder %s48, %s49
    %p63 = scmp.eq.s32.totalorder %s27, 1
    %p64 = por %p62, %p63
    %p66 = scmp.ne.s32.totalorder %s49, %s65
    %p67 = scmp.eq.s32.totalorder %s27, 0
    %p68 = por %p66, %p67
    %s69 = ssub.s32 %s28, %s40
    %p70 = scmp.eq.s32.totalorder %s69, 0
    %s72 = sadd.s32 %s71, 1
    %s73 = scalar_select %p70, %s71, %s72
    %p76 = pneg %p70
    %p77 = scmp.eq.s32.totalorder %s21, 1
    %p78 = por %p76, %p77
    %p79 = scmp.ne.s32.totalorder %s71, %s74
    %p80 = scmp.eq.s32.totalorder %s21, 0
    %p81 = por %p79, %p80
    %p82 = scmp.ne.s32.totalorder %s71, %s74
    %p83 = scmp.eq.s32.totalorder %s26, 1
    %p84 = por %p82, %p83
    %p85 = scmp.ne.s32.totalorder %s74, %s75
    %p86 = scmp.eq.s32.totalorder %s26, 0
    %p87 = por %p85, %p86
    %p88 = scmp.ne.s32.totalorder %s74, %s75
    %p89 = scmp.eq.s32.totalorder %s27, 1
    %p90 = por %p88, %p89
    %p92 = scmp.ne.s32.totalorder %s75, %s91
    %p93 = scmp.eq.s32.totalorder %s27, 0
    %p94 = por %p92, %p93
    %s95 = ssub.s32 %s28, %s40
    %p96 = scmp.eq.s32.totalorder %s95, 0
    %s98 = sadd.s32 %s97, 1
    %s99 = scalar_select %p96, %s97, %s98
    %p102 = pneg %p96
    %p103 = scmp.eq.s32.totalorder %s21, 1
    %p104 = por %p102, %p103
    %p105 = scmp.ne.s32.totalorder %s97, %s100
    %p106 = scmp.eq.s32.totalorder %s21, 0
    %p107 = por %p105, %p106
    %p108 = scmp.ne.s32.totalorder %s97, %s100
    %p109 = scmp.eq.s32.totalorder %s26, 1
    %p110 = por %p108, %p109
    %p111 = scmp.ne.s32.totalorder %s100, %s101
    %p112 = scmp.eq.s32.totalorder %s26, 0
    %p113 = por %p111, %p112
    %p114 = scmp.ne.s32.totalorder %s100, %s101
    %p115 = scmp.eq.s32.totalorder %s27, 1
    %p116 = por %p114, %p115
    %p118 = scmp.ne.s32.totalorder %s101, %s117
    %p119 = scmp.eq.s32.totalorder %s27, 0
    %p120 = por %p118, %p119
    %s122 = sadd.s32 %s121, 1
    %p125 = scmp.eq.s32.totalorder %s21, 1
    %p126 = scmp.ne.s32.totalorder %s121, %s123
    %p127 = scmp.eq.s32.totalorder %s21, 0
    %p128 = por %p126, %p127
    %p129 = scmp.ne.s32.totalorder %s121, %s123
    %p130 = scmp.eq.s32.totalorder %s26, 1
    %p131 = por %p129, %p130
    %p132 = scmp.ne.s32.totalorder %s123, %s124
    %p133 = scmp.eq.s32.totalorder %s26, 0
    %p134 = por %p132, %p133
    %p135 = scmp.ne.s32.totalorder %s123, %s124
    %p136 = scmp.eq.s32.totalorder %s27, 1
    %p137 = por %p135, %p136
    %p139 = scmp.ne.s32.totalorder %s124, %s138
    %p140 = scmp.eq.s32.totalorder %s27, 0
    %p141 = por %p139, %p140
    %s143 = sadd.s32 %s142, 1
    %p146 = scmp.eq.s32.totalorder %s21, 1
    %p147 = scmp.ne.s32.totalorder %s142, %s144
    %p148 = scmp.eq.s32.totalorder %s21, 0
    %p149 = por %p147, %p148
    %p150 = scmp.ne.s32.totalorder %s142, %s144
    %p151 = scmp.eq.s32.totalorder %s26, 1
    %p152 = por %p150, %p151
    %p153 = scmp.ne.s32.totalorder %s144, %s145
    %p154 = scmp.eq.s32.totalorder %s26, 0
    %p155 = por %p153, %p154
    %p156 = scmp.ne.s32.totalorder %s144, %s145
    %p157 = scmp.eq.s32.totalorder %s27, 1
    %p158 = por %p156, %p157
    %p160 = scmp.ne.s32.totalorder %s145, %s159
    %p161 = scmp.eq.s32.totalorder %s27, 0
    %p162 = por %p160, %p161
    %s164 = sadd.s32 %s163, 1
    %p167 = scmp.eq.s32.totalorder %s21, 1
    %p168 = scmp.ne.s32.totalorder %s163, %s165
    %p169 = scmp.eq.s32.totalorder %s21, 0
    %p170 = por %p168, %p169
    %p171 = scmp.ne.s32.totalorder %s163, %s165
    %p172 = scmp.eq.s32.totalorder %s26, 1
    %p173 = por %p171, %p172
    %p174 = scmp.ne.s32.totalorder %s165, %s166
    %p175 = scmp.eq.s32.totalorder %s26, 0
    %p176 = por %p174, %p175
    %p177 = scmp.ne.s32.totalorder %s165, %s166
    %p178 = scmp.eq.s32.totalorder %s27, 1
    %p179 = por %p177, %p178
    %p181 = scmp.ne.s32.totalorder %s166, %s180
    %p182 = scmp.eq.s32.totalorder %s27, 0
    %p183 = por %p181, %p182
    %s185 = sadd.s32 %s184, 1
    %p188 = scmp.eq.s32.totalorder %s21, 1
    %p189 = scmp.ne.s32.totalorder %s184, %s186
    %p190 = scmp.eq.s32.totalorder %s21, 0
    %p191 = por %p189, %p190
    %p192 = scmp.ne.s32.totalorder %s184, %s186
    %p193 = scmp.eq.s32.totalorder %s26, 1
    %p194 = por %p192, %p193
    %p195 = scmp.ne.s32.totalorder %s186, %s187
    %p196 = scmp.eq.s32.totalorder %s26, 0
    %p197 = por %p195, %p196
    %p198 = scmp.ne.s32.totalorder %s186, %s187
    %p199 = scmp.eq.s32.totalorder %s27, 1
    %p200 = por %p198, %p199
    %p202 = scmp.ne.s32.totalorder %s187, %s201
    %p203 = scmp.eq.s32.totalorder %s27, 0
    %p204 = por %p202, %p203
    %s206 = sadd.s32 %s205, 1
    %p209 = scmp.eq.s32.totalorder %s21, 1
    %p210 = scmp.ne.s32.totalorder %s205, %s207
    %p211 = scmp.eq.s32.totalorder %s21, 0
    %p212 = por %p210, %p211
    %p213 = scmp.ne.s32.totalorder %s205, %s207
    %p214 = scmp.eq.s32.totalorder %s26, 1
    %p215 = por %p213, %p214
    %p216 = scmp.ne.s32.totalorder %s207, %s208
    %p217 = scmp.eq.s32.totalorder %s26, 0
    %p218 = por %p216, %p217
    %p219 = scmp.ne.s32.totalorder %s207, %s208
    %p220 = scmp.eq.s32.totalorder %s27, 1
    %p221 = por %p219, %p220
    %p223 = scmp.ne.s32.totalorder %s208, %s222
    %p224 = scmp.eq.s32.totalorder %s27, 0
    %p225 = por %p223, %p224
    %s227 = sadd.s32 %s226, 1
    %p230 = scmp.eq.s32.totalorder %s21, 1
    %p231 = scmp.ne.s32.totalorder %s226, %s228
    %p232 = scmp.eq.s32.totalorder %s21, 0
    %p233 = por %p231, %p232
    %p234 = scmp.ne.s32.totalorder %s226, %s228
    %p235 = scmp.eq.s32.totalorder %s26, 1
    %p236 = por %p234, %p235
    %p237 = scmp.ne.s32.totalorder %s228, %s229
    %p238 = scmp.eq.s32.totalorder %s26, 0
    %p239 = por %p237, %p238
    %p240 = scmp.ne.s32.totalorder %s228, %s229
    %p241 = scmp.eq.s32.totalorder %s27, 1
    %p242 = por %p240, %p241
    %p244 = scmp.ne.s32.totalorder %s229, %s243
    %p245 = scmp.eq.s32.totalorder %s27, 0
    %p246 = por %p244, %p245
    %s248 = sadd.s32 %s247, 1
    %p251 = scmp.eq.s32.totalorder %s21, 1
    %p252 = scmp.ne.s32.totalorder %s247, %s249
    %p253 = scmp.eq.s32.totalorder %s21, 0
    %p254 = por %p252, %p253
    %p255 = scmp.ne.s32.totalorder %s247, %s249
    %p256 = scmp.eq.s32.totalorder %s26, 1
    %p257 = por %p255, %p256
    %p258 = scmp.ne.s32.totalorder %s249, %s250
    %p259 = scmp.eq.s32.totalorder %s26, 0
    %p260 = por %p258, %p259
    %p261 = scmp.ne.s32.totalorder %s249, %s250
    %p262 = scmp.eq.s32.totalorder %s27, 1
    %p263 = por %p261, %p262
    %p265 = scmp.ne.s32.totalorder %s250, %s264
    %p266 = scmp.eq.s32.totalorder %s27, 0
    %p267 = por %p265, %p266
    %s269 = sadd.s32 %s268, 1
    %p272 = scmp.eq.s32.totalorder %s21, 1
    %p273 = scmp.ne.s32.totalorder %s268, %s270
    %p274 = scmp.eq.s32.totalorder %s21, 0
    %p275 = por %p273, %p274
    %p276 = scmp.ne.s32.totalorder %s268, %s270
    %p277 = scmp.eq.s32.totalorder %s26, 1
    %p278 = por %p276, %p277
    %p279 = scmp.ne.s32.totalorder %s270, %s271
    %p280 = scmp.eq.s32.totalorder %s26, 0
    %p281 = por %p279, %p280
    %p282 = scmp.ne.s32.totalorder %s270, %s271
    %p283 = scmp.eq.s32.totalorder %s27, 1
    %p284 = por %p282, %p283
    %p286 = scmp.ne.s32.totalorder %s271, %s285
    %p287 = scmp.eq.s32.totalorder %s27, 0
    %p288 = por %p286, %p287
    %s290 = sadd.s32 %s289, 1
    %p293 = scmp.eq.s32.totalorder %s21, 1
    %p294 = scmp.ne.s32.totalorder %s289, %s291
    %p295 = scmp.eq.s32.totalorder %s21, 0
    %p296 = por %p294, %p295
    %p297 = scmp.ne.s32.totalorder %s289, %s291
    %p298 = scmp.eq.s32.totalorder %s26, 1
    %p299 = por %p297, %p298
    %p300 = scmp.ne.s32.totalorder %s291, %s292
    %p301 = scmp.eq.s32.totalorder %s26, 0
    %p302 = por %p300, %p301
    %p303 = scmp.ne.s32.totalorder %s291, %s292
    %p304 = scmp.eq.s32.totalorder %s27, 1
    %p305 = por %p303, %p304
    %p307 = scmp.ne.s32.totalorder %s292, %s306
    %p308 = scmp.eq.s32.totalorder %s27, 0
    %p309 = por %p307, %p308
    %s311 = sadd.s32 %s310, 1
    %p314 = scmp.eq.s32.totalorder %s21, 1
    %p315 = scmp.ne.s32.totalorder %s310, %s312
    %p316 = scmp.eq.s32.totalorder %s21, 0
    %p317 = por %p315, %p316
    %p318 = scmp.ne.s32.totalorder %s310, %s312
    %p319 = scmp.eq.s32.totalorder %s26, 1
    %p320 = por %p318, %p319
    %p321 = scmp.ne.s32.totalorder %s312, %s313
    %p322 = scmp.eq.s32.totalorder %s26, 0
    %p323 = por %p321, %p322
    %p324 = scmp.ne.s32.totalorder %s312, %s313
    %p325 = scmp.eq.s32.totalorder %s27, 1
    %p326 = por %p324, %p325
    %p328 = scmp.ne.s32.totalorder %s313, %s327
    %p329 = scmp.eq.s32.totalorder %s27, 0
    %p330 = por %p328, %p329
    %s332 = sadd.s32 %s331, 1
    %p335 = scmp.eq.s32.totalorder %s21, 1
    %p336 = scmp.ne.s32.totalorder %s331, %s333
    %p337 = scmp.eq.s32.totalorder %s21, 0
    %p338 = por %p336, %p337
    %p339 = scmp.ne.s32.totalorder %s331, %s333
    %p340 = scmp.eq.s32.totalorder %s26, 1
    %p341 = por %p339, %p340
    %p342 = scmp.ne.s32.totalorder %s333, %s334
    %p343 = scmp.eq.s32.totalorder %s26, 0
    %p344 = por %p342, %p343
    %p345 = scmp.ne.s32.totalorder %s333, %s334
    %p346 = scmp.eq.s32.totalorder %s27, 1
    %p347 = por %p345, %p346
    %p349 = scmp.ne.s32.totalorder %s334, %s348
    %p350 = scmp.eq.s32.totalorder %s27, 0
    %p351 = por %p349, %p350
    %s353 = sadd.s32 %s352, 1
    %p356 = scmp.eq.s32.totalorder %s21, 1
    %p357 = scmp.ne.s32.totalorder %s352, %s354
    %p358 = scmp.eq.s32.totalorder %s21, 0
    %p359 = por %p357, %p358
    %p360 = scmp.ne.s32.totalorder %s352, %s354
    %p361 = scmp.eq.s32.totalorder %s26, 1
    %p362 = por %p360, %p361
    %p363 = scmp.ne.s32.totalorder %s354, %s355
    %p364 = scmp.eq.s32.totalorder %s26, 0
    %p365 = por %p363, %p364
    %p366 = scmp.ne.s32.totalorder %s354, %s355
    %p367 = scmp.eq.s32.totalorder %s27, 1
    %p368 = por %p366, %p367
    %p370 = scmp.ne.s32.totalorder %s355, %s369
    %p371 = scmp.eq.s32.totalorder %s27, 0
    %p372 = por %p370, %p371
    %s373 = ssub.s32 %s28, %s40
    %s374 = ssub.s32 %s29, %s36
    %s375 = sor.u32 %s373, %s374
    %p376 = scmp.eq.s32.totalorder %s375, 0
    %s378 = sadd.s32 %s377, 1
    %s379 = scalar_select %p376, %s377, %s378
    %p382 = pneg %p376
    %p383 = scmp.eq.s32.totalorder %s21, 1
    %p384 = por %p382, %p383
    %p385 = scmp.ne.s32.totalorder %s377, %s380
    %p386 = scmp.eq.s32.totalorder %s21, 0
    %p387 = por %p385, %p386
    %p388 = scmp.ne.s32.totalorder %s377, %s380
    %p389 = scmp.eq.s32.totalorder %s26, 1
    %p390 = por %p388, %p389
    %p391 = scmp.ne.s32.totalorder %s380, %s381
    %p392 = scmp.eq.s32.totalorder %s26, 0
    %p393 = por %p391, %p392
    %p394 = scmp.ne.s32.totalorder %s380, %s381
    %p395 = scmp.eq.s32.totalorder %s27, 1
    %p396 = por %p394, %p395
    %p398 = scmp.ne.s32.totalorder %s381, %s397
    %p399 = scmp.eq.s32.totalorder %s27, 0
    %p400 = por %p398, %p399
    %p401 = scmp.le.s32.totalorder 1, %s21
    %p402 = scmp.lt.s32.totalorder %s21, 3
    %p403 = pnand %p401, %p402
    %p404 = pneg %p403
    // Predicated region
    $region9: #{audio_encoder_forward.5} parent=5 // pred_check
      _
    $region10: #{audio_encoder_forward.5} parent=5 // pred_check_branch
      %406 = sbr.rel (%p403) target = $region12
    $region11: #{audio_encoder_forward.5} parent=5 // pred_region
      %s407 = ssub.s32 %s21, 1
      // Predicated region
      $region13: #{audio_encoder_forward.5} parent=11 // pred_check
        %p408 = pneg %p134
      $region14: #{audio_encoder_forward.5} parent=11 // pred_check_branch
        %410 = sbr.rel (%p408) target = $region16
      $region15: #{audio_encoder_forward.5} parent=11 // pred_region
        _
      $region16: #{audio_encoder_forward.5} parent=11 // pred_fallthru
        _
      // Predicated region
      $region17: #{audio_encoder_forward.5} parent=11 // pred_check
        %p411 = pneg %p155
      $region18: #{audio_encoder_forward.5} parent=11 // pred_check_branch
        %413 = sbr.rel (%p411) target = $region20
      $region19: #{audio_encoder_forward.5} parent=11 // pred_region
        _
      $region20: #{audio_encoder_forward.5} parent=11 // pred_fallthru
        _
      // Predicated region
      $region21: #{audio_encoder_forward.5} parent=11 // pred_check
        %p414 = pneg %p176
      $region22: #{audio_encoder_forward.5} parent=11 // pred_check_branch
        %416 = sbr.rel (%p414) target = $region24
      $region23: #{audio_encoder_forward.5} parent=11 // pred_region
        _
      $region24: #{audio_encoder_forward.5} parent=11 // pred_fallthru
        _
      // Predicated region
      $region25: #{audio_encoder_forward.5} parent=11 // pred_check
        %p417 = pneg %p197
      $region26: #{audio_encoder_forward.5} parent=11 // pred_check_branch
        %419 = sbr.rel (%p417) target = $region28
      $region27: #{audio_encoder_forward.5} parent=11 // pred_region
        _
      $region28: #{audio_encoder_forward.5} parent=11 // pred_fallthru
        _
      // Predicated region
      $region29: #{audio_encoder_forward.5} parent=11 // pred_check
        %p420 = pneg %p218
      $region30: #{audio_encoder_forward.5} parent=11 // pred_check_branch
        %422 = sbr.rel (%p420) target = $region32
      $region31: #{audio_encoder_forward.5} parent=11 // pred_region
        _
      $region32: #{audio_encoder_forward.5} parent=11 // pred_fallthru
        _
      // Predicated region
      $region33: #{audio_encoder_forward.5} parent=11 // pred_check
        %p423 = pneg %p239
      $region34: #{audio_encoder_forward.5} parent=11 // pred_check_branch
        %425 = sbr.rel (%p423) target = $region36
      $region35: #{audio_encoder_forward.5} parent=11 // pred_region
        _
      $region36: #{audio_encoder_forward.5} parent=11 // pred_fallthru
        _
      // Predicated region
      $region37: #{audio_encoder_forward.5} parent=11 // pred_check
        %p426 = pneg %p260
      $region38: #{audio_encoder_forward.5} parent=11 // pred_check_branch
        %428 = sbr.rel (%p426) target = $region40
      $region39: #{audio_encoder_forward.5} parent=11 // pred_region
        _
      $region40: #{audio_encoder_forward.5} parent=11 // pred_fallthru
        _
      // Predicated region
      $region41: #{audio_encoder_forward.5} parent=11 // pred_check
        %p429 = pneg %p281
      $region42: #{audio_encoder_forward.5} parent=11 // pred_check_branch
        %431 = sbr.rel (%p429) target = $region44
      $region43: #{audio_encoder_forward.5} parent=11 // pred_region
        _
      $region44: #{audio_encoder_forward.5} parent=11 // pred_fallthru
        _
      // Predicated region
      $region45: #{audio_encoder_forward.5} parent=11 // pred_check
        %p432 = pneg %p302
      $region46: #{audio_encoder_forward.5} parent=11 // pred_check_branch
        %434 = sbr.rel (%p432) target = $region48
      $region47: #{audio_encoder_forward.5} parent=11 // pred_region
        _
      $region48: #{audio_encoder_forward.5} parent=11 // pred_fallthru
        _
      // Predicated region
      $region49: #{audio_encoder_forward.5} parent=11 // pred_check
        %p435 = pneg %p323
      $region50: #{audio_encoder_forward.5} parent=11 // pred_check_branch
        %437 = sbr.rel (%p435) target = $region52
      $region51: #{audio_encoder_forward.5} parent=11 // pred_region
        _
      $region52: #{audio_encoder_forward.5} parent=11 // pred_fallthru
        _
      // Predicated region
      $region53: #{audio_encoder_forward.5} parent=11 // pred_check
        %p438 = pneg %p344
      $region54: #{audio_encoder_forward.5} parent=11 // pred_check_branch
        %440 = sbr.rel (%p438) target = $region56
      $region55: #{audio_encoder_forward.5} parent=11 // pred_region
        _
      $region56: #{audio_encoder_forward.5} parent=11 // pred_fallthru
        _
      // Predicated region
      $region57: #{audio_encoder_forward.5} parent=11 // pred_check
        %p441 = pneg %p365
      $region58: #{audio_encoder_forward.5} parent=11 // pred_check_branch
        %443 = sbr.rel (%p441) target = $region60
      $region59: #{audio_encoder_forward.5} parent=11 // pred_region
        _
      $region60: #{audio_encoder_forward.5} parent=11 // pred_fallthru
        _
    $region12: #{audio_encoder_forward.5} parent=5 // pred_fallthru
      _
    %p444 = scmp.lt.s32.totalorder %s21, 2
    // Predicated region
    $region61: #{audio_encoder_forward.5} parent=5 // pred_check
      %p445 = pneg %p444
    $region62: #{audio_encoder_forward.5} parent=5 // pred_check_branch
      %447 = sbr.rel (%p445) target = $region64
    $region63: #{audio_encoder_forward.5} parent=5 // pred_region
      // Predicated region
      $region65: #{audio_encoder_forward.5} parent=63 // pred_check
        %p448 = pneg %p55
      $region66: #{audio_encoder_forward.5} parent=63 // pred_check_branch
        %450 = sbr.rel (%p448) target = $region68
      $region67: #{audio_encoder_forward.5} parent=63 // pred_region
        %s451 = smul.u32 16, %s29
        %p452 = scmp.lt.s32.totalorder %s28, 1
        %s453 = scalar_select %p452, %s28, 1
        %p454 = scmp.lt.s32.totalorder %s451, 15
        %s455 = scalar_select %p454, %s451, 15
        %s456 = smul.addr %s455, 2
        %s457 = smul.addr %s453, 32
        %s458 = sadd.s32 %s456, %s457
        %s459 = smul.addr %s458, 8
        %s460 = scalar_lea.vmem %s0, %s459
        %s461 = smul.u32 16, %s29
      $region68: #{audio_encoder_forward.5} parent=63 // pred_fallthru
        _
      // Predicated region
      $region69: #{audio_encoder_forward.5} parent=63 // pred_check
        %p462 = pneg %p81
      $region70: #{audio_encoder_forward.5} parent=63 // pred_check_branch
        %464 = sbr.rel (%p462) target = $region72
      $region71: #{audio_encoder_forward.5} parent=63 // pred_region
        %p465 = scmp.lt.s32.totalorder %s28, 1
        %s466 = scalar_select %p465, %s28, 1
        %s467 = smul.addr %s466, 64
        %s468 = smul.addr %s467, 4
        %s469 = scalar_lea.vmem %s1, %s468
      $region72: #{audio_encoder_forward.5} parent=63 // pred_fallthru
        _
      // Predicated region
      $region73: #{audio_encoder_forward.5} parent=63 // pred_check
        %p470 = pneg %p107
      $region74: #{audio_encoder_forward.5} parent=63 // pred_check_branch
        %472 = sbr.rel (%p470) target = $region76
      $region75: #{audio_encoder_forward.5} parent=63 // pred_region
        %p473 = scmp.lt.s32.totalorder %s28, 1
        %s474 = scalar_select %p473, %s28, 1
        %s475 = scalar_lea.vmem %s2, %s474
      $region76: #{audio_encoder_forward.5} parent=63 // pred_fallthru
        _
    $region64: #{audio_encoder_forward.5} parent=5 // pred_fallthru
      _
    %p476 = scmp.le.s32.totalorder 1, %s21
    %p477 = scmp.lt.s32.totalorder %s21, 3
    %p478 = pnand %p476, %p477
    %p479 = pneg %p478
    // Predicated region
    $region77: #{audio_encoder_forward.5} parent=5 // pred_check
      _
    $region78: #{audio_encoder_forward.5} parent=5 // pred_check_branch
      %481 = sbr.rel (%p478) target = $region80
    $region79: #{audio_encoder_forward.5} parent=5 // pred_region
      %s482 = ssub.s32 %s21, 1
      %s483 = smul.u32 16, %s31
      %p484 = scmp.lt.s32.totalorder %s30, 1
      %s485 = scalar_select %p484, %s30, 1
      %p486 = scmp.lt.s32.totalorder %s483, 15
      %s487 = scalar_select %p486, %s483, 15
      %s488 = smul.addr %s487, 2
      %s489 = smul.addr %s485, 32
      %s490 = sadd.s32 %s488, %s489
      %s491 = smul.addr %s490, 8
      %s492 = scalar_lea.vmem %s0, %s491
      %p493 = pneg %p61
      %p494 = pneg %p58
      %p495 = scmp.lt.s32.totalorder %s30, 1
      %s496 = scalar_select %p495, %s30, 1
      %s497 = smul.addr %s496, 64
      %s498 = smul.addr %s497, 4
      %s499 = scalar_lea.vmem %s1, %s498
      %p500 = pneg %p87
      %p501 = pneg %p84
      %p502 = scmp.lt.s32.totalorder %s30, 1
      %s503 = scalar_select %p502, %s30, 1
      %s504 = scalar_lea.vmem %s2, %s503
      %p505 = pneg %p113
      %p506 = pneg %p110
      %p507 = pneg %p134
      %p508 = pneg %p131
      %p509 = pneg %p155
      %p510 = pneg %p152
      %p511 = pneg %p176
      %p512 = pneg %p173
      %p513 = pneg %p197
      %p514 = pneg %p194
      %p515 = pneg %p218
      %p516 = pneg %p215
      %p517 = pneg %p239
      %p518 = pneg %p236
      %p519 = pneg %p260
      %p520 = pneg %p257
      %p521 = pneg %p281
      %p522 = pneg %p278
      %p523 = pneg %p302
      %p524 = pneg %p299
      %p525 = pneg %p323
      %p526 = pneg %p320
      %p527 = pneg %p344
      %p528 = pneg %p341
      %p529 = pneg %p365
      %p530 = pneg %p362
      %p531 = pneg %p393
      %p532 = pneg %p390
      %s533 = smul.u32 16, %s31
      %p534 = scmp.lt.s32.totalorder %s30, 1
      %s535 = scalar_select %p534, %s30, 1
      %p536 = scmp.lt.s32.totalorder %s533, 15
      %s537 = scalar_select %p536, %s533, 15
      %s538 = smul.addr %s537, 2
      %s539 = smul.addr %s535, 32
      %s540 = sadd.s32 %s538, %s539
      %s541 = smul.addr %s540, 8
      %s542 = scalar_lea.vmem %s15, %s541
      %s543 = smul.u32 16, %s31
      %p544 = scmp.lt.s32.totalorder %s30, 1
      %s545 = scalar_select %p544, %s30, 1
      %p546 = scmp.lt.s32.totalorder %s543, 15
      %s547 = scalar_select %p546, %s543, 15
      %s548 = smul.addr %s547, 2
      %s549 = smul.addr %s545, 32
      %s550 = sadd.s32 %s548, %s549
      %s551 = smul.addr %s550, 8
      %s552 = scalar_lea.vmem %s0, %s551
      %s553 = smul.u32 16, %s31
      %p554 = scmp.lt.s32.totalorder %s30, 1
      %s555 = scalar_select %p554, %s30, 1
      %s556 = smul.addr %s555, 64
      %s557 = smul.addr %s556, 4
      %s558 = scalar_lea.vmem %s1, %s557
      %p559 = scmp.lt.s32.totalorder %s30, 1
      %s560 = scalar_select %p559, %s30, 1
      %s561 = scalar_lea.vmem %s2, %s560
      %s562 = smul.u32 16, %s31
      %p563 = scmp.lt.s32.totalorder %s30, 1
      %s564 = scalar_select %p563, %s30, 1
      %p565 = scmp.lt.s32.totalorder %s562, 15
      %s566 = scalar_select %p565, %s562, 15
      %s567 = smul.addr %s566, 2
      %s568 = smul.addr %s564, 32
      %s569 = sadd.s32 %s567, %s568
      %s570 = smul.addr %s569, 8
      %s571 = scalar_lea.vmem %s15, %s570
      %s572 = smul.u32 16, %s31
      %v574 = vld [vmem:[%s552] sm:$0xff]
      %v575 = vld [vmem:[%s552 + $0x8] sm:$0xff]
      %v576 = vld [vmem:[%s552 + $0x10] sm:$0xff]
      %v577 = vld [vmem:[%s552 + $0x18] sm:$0xff]
      %v578 = vld [vmem:[%s552 + $0x20] sm:$0xff]
      %v579 = vld [vmem:[%s552 + $0x28] sm:$0xff]
      %v580 = vld [vmem:[%s552 + $0x30] sm:$0xff]
      %v581 = vld [vmem:[%s552 + $0x38] sm:$0xff]
      %v582 = vld [vmem:[%s552 + $0x40] sm:$0xff]
      %v583 = vld [vmem:[%s552 + $0x48] sm:$0xff]
      %v584 = vld [vmem:[%s552 + $0x50] sm:$0xff]
      %v585 = vld [vmem:[%s552 + $0x58] sm:$0xff]
      %v586 = vld [vmem:[%s552 + $0x60] sm:$0xff]
      %v587 = vld [vmem:[%s552 + $0x68] sm:$0xff]
      %v588 = vld [vmem:[%s552 + $0x70] sm:$0xff]
      %v589 = vld [vmem:[%s552 + $0x78] sm:$0xff]
      %v590 = vld [vmem:[%s552 + $0x80] sm:$0xff]
      %v591 = vld [vmem:[%s552 + $0x88] sm:$0xff]
      %v592 = vld [vmem:[%s552 + $0x90] sm:$0xff]
      %v593 = vld [vmem:[%s552 + $0x98] sm:$0xff]
      %v594 = vld [vmem:[%s552 + $0xa0] sm:$0xff]
      %v595 = vld [vmem:[%s552 + $0xa8] sm:$0xff]
      %v596 = vld [vmem:[%s552 + $0xb0] sm:$0xff]
      %v597 = vld [vmem:[%s552 + $0xb8] sm:$0xff]
      %v598 = vld [vmem:[%s552 + $0xc0] sm:$0xff]
      %v599 = vld [vmem:[%s552 + $0xc8] sm:$0xff]
      %v600 = vld [vmem:[%s552 + $0xd0] sm:$0xff]
      %v601 = vld [vmem:[%s552 + $0xd8] sm:$0xff]
      %v602 = vld [vmem:[%s552 + $0xe0] sm:$0xff]
      %v603 = vld [vmem:[%s552 + $0xe8] sm:$0xff]
      %v604 = vld [vmem:[%s552 + $0xf0] sm:$0xff]
      %v605 = vld [vmem:[%s552 + $0xf8] sm:$0xff]
      %v606 = vld [vmem:[%s561] sm:$0x1]
      %v607 = vpack.c.bf16 %v576, %v574
      %v608 = vpack.c.bf16 %v577, %v575
      %v609 = vpack.c.bf16 %v580, %v578
      %v610 = vpack.c.bf16 %v581, %v579
      %v611 = vpack.c.bf16 %v584, %v582
      %v612 = vpack.c.bf16 %v585, %v583
      %v613 = vpack.c.bf16 %v588, %v586
      %v614 = vpack.c.bf16 %v589, %v587
      %v615 = vpack.c.bf16 %v592, %v590
      %v616 = vpack.c.bf16 %v593, %v591
      %v617 = vpack.c.bf16 %v596, %v594
      %v618 = vpack.c.bf16 %v597, %v595
      %v619 = vpack.c.bf16 %v600, %v598
      %v620 = vpack.c.bf16 %v601, %v599
      %v621 = vpack.c.bf16 %v604, %v602
      %v622 = vpack.c.bf16 %v605, %v603
      %v623 = vld [vmem:[%s3] sm:$0xff]
      %v624 = vld [vmem:[%s3 + $0x8] sm:$0xff]
      %v625 = vld [vmem:[%s3 + $0x10] sm:$0xff]
      %v626 = vld [vmem:[%s3 + $0x18] sm:$0xff]
      %v627 = vld [vmem:[%s3 + $0x20] sm:$0xff]
      %v628 = vld [vmem:[%s3 + $0x28] sm:$0xff]
      %v629 = vld [vmem:[%s3 + $0x30] sm:$0xff]
      %v630 = vld [vmem:[%s3 + $0x38] sm:$0xff]
      %v631 = vld [vmem:[%s3 + $0x40] sm:$0xff]
      %v632 = vld [vmem:[%s3 + $0x48] sm:$0xff]
      %v633 = vld [vmem:[%s3 + $0x50] sm:$0xff]
      %v634 = vld [vmem:[%s3 + $0x58] sm:$0xff]
      %v635 = vld [vmem:[%s3 + $0x60] sm:$0xff]
      %v636 = vld [vmem:[%s3 + $0x68] sm:$0xff]
      %v637 = vld [vmem:[%s3 + $0x70] sm:$0xff]
      %v638 = vld [vmem:[%s3 + $0x78] sm:$0xff]
      %v639 = vld [vmem:[%s3 + $0x80] sm:$0xff]
      %v640 = vld [vmem:[%s3 + $0x88] sm:$0xff]
      %v641 = vld [vmem:[%s3 + $0x90] sm:$0xff]
      %v642 = vld [vmem:[%s3 + $0x98] sm:$0xff]
      %v643 = vld [vmem:[%s3 + $0xa0] sm:$0xff]
      %v644 = vld [vmem:[%s3 + $0xa8] sm:$0xff]
      %v645 = vld [vmem:[%s3 + $0xb0] sm:$0xff]
      %v646 = vld [vmem:[%s3 + $0xb8] sm:$0xff]
      %v647 = vld [vmem:[%s3 + $0xc0] sm:$0xff]
      %v648 = vld [vmem:[%s3 + $0xc8] sm:$0xff]
      %v649 = vld [vmem:[%s3 + $0xd0] sm:$0xff]
      %v650 = vld [vmem:[%s3 + $0xd8] sm:$0xff]
      %v651 = vld [vmem:[%s3 + $0xe0] sm:$0xff]
      %v652 = vld [vmem:[%s3 + $0xe8] sm:$0xff]
      %v653 = vld [vmem:[%s3 + $0xf0] sm:$0xff]
      %v654 = vld [vmem:[%s3 + $0xf8] sm:$0xff]
      %v655 = vld [vmem:[%s4] sm:$0x3]
      %v657 = vlaneseq
      %v658 = vshrl.u32 %v657, 7
      %v659 = vsub.s32 0, %v658
      %v660 = vrot.slane %v655, %v659
      %v661 = vlaneseq
      %v662 = vshrl.u32 %v661, 7
      %v663 = vsub.s32 1, %v662
      %v664 = vrot.slane %v655, %v663
      %v699 = vunpack.c.l.b16 %v623
      %v700 = vunpack.c.h.b16 %v623
      %v701 = vunpack.c.l.b16 %v624
      %v702 = vunpack.c.h.b16 %v624
      %v703 = vunpack.c.l.b16 %v625
      %v704 = vunpack.c.h.b16 %v625
      %v705 = vunpack.c.l.b16 %v626
      %v706 = vunpack.c.h.b16 %v626
      %v707 = vunpack.c.l.b16 %v627
      %v708 = vunpack.c.h.b16 %v627
      %v709 = vunpack.c.l.b16 %v628
      %v710 = vunpack.c.h.b16 %v628
      %v711 = vunpack.c.l.b16 %v629
      %v712 = vunpack.c.h.b16 %v629
      %v713 = vunpack.c.l.b16 %v630
      %v714 = vunpack.c.h.b16 %v630
      %v715 = vunpack.c.l.b16 %v631
      %v716 = vunpack.c.h.b16 %v631
      %v717 = vunpack.c.l.b16 %v632
      %v718 = vunpack.c.h.b16 %v632
      %v719 = vunpack.c.l.b16 %v633
      %v720 = vunpack.c.h.b16 %v633
      %v721 = vunpack.c.l.b16 %v634
      %v722 = vunpack.c.h.b16 %v634
      %v723 = vunpack.c.l.b16 %v635
      %v724 = vunpack.c.h.b16 %v635
      %v725 = vunpack.c.l.b16 %v636
      %v726 = vunpack.c.h.b16 %v636
      %v727 = vunpack.c.l.b16 %v637
      %v728 = vunpack.c.h.b16 %v637
      %v729 = vunpack.c.l.b16 %v638
      %v730 = vunpack.c.h.b16 %v638
      %v731 = vunpack.c.l.b16 %v639
      %v732 = vunpack.c.h.b16 %v639
      %v733 = vunpack.c.l.b16 %v640
      %v734 = vunpack.c.h.b16 %v640
      %v735 = vunpack.c.l.b16 %v641
      %v736 = vunpack.c.h.b16 %v641
      %v737 = vunpack.c.l.b16 %v642
      %v738 = vunpack.c.h.b16 %v642
      %v739 = vunpack.c.l.b16 %v643
      %v740 = vunpack.c.h.b16 %v643
      %v741 = vunpack.c.l.b16 %v644
      %v742 = vunpack.c.h.b16 %v644
      %v743 = vunpack.c.l.b16 %v645
      %v744 = vunpack.c.h.b16 %v645
      %v745 = vunpack.c.l.b16 %v646
      %v746 = vunpack.c.h.b16 %v646
      %v747 = vunpack.c.l.b16 %v647
      %v748 = vunpack.c.h.b16 %v647
      %v749 = vunpack.c.l.b16 %v648
      %v750 = vunpack.c.h.b16 %v648
      %v751 = vunpack.c.l.b16 %v649
      %v752 = vunpack.c.h.b16 %v649
      %v753 = vunpack.c.l.b16 %v650
      %v754 = vunpack.c.h.b16 %v650
      %v755 = vunpack.c.l.b16 %v651
      %v756 = vunpack.c.h.b16 %v651
      %v757 = vunpack.c.l.b16 %v652
      %v758 = vunpack.c.h.b16 %v652
      %v759 = vunpack.c.l.b16 %v653
      %v760 = vunpack.c.h.b16 %v653
      %v761 = vunpack.c.l.b16 %v654
      %v762 = vunpack.c.h.b16 %v654
      %v763 = vpack.c.b16 %v701, %v699
      %v764 = vpack.c.b16 %v702, %v700
      %v765 = vpack.c.b16 %v705, %v703
      %v766 = vpack.c.b16 %v706, %v704
      %v767 = vpack.c.b16 %v709, %v707
      %v768 = vpack.c.b16 %v710, %v708
      %v769 = vpack.c.b16 %v713, %v711
      %v770 = vpack.c.b16 %v714, %v712
      %v771 = vpack.c.b16 %v717, %v715
      %v772 = vpack.c.b16 %v718, %v716
      %v773 = vpack.c.b16 %v721, %v719
      %v774 = vpack.c.b16 %v722, %v720
      %v775 = vpack.c.b16 %v725, %v723
      %v776 = vpack.c.b16 %v726, %v724
      %v777 = vpack.c.b16 %v729, %v727
      %v778 = vpack.c.b16 %v730, %v728
      %v779 = vpack.c.b16 %v733, %v731
      %v780 = vpack.c.b16 %v734, %v732
      %v781 = vpack.c.b16 %v737, %v735
      %v782 = vpack.c.b16 %v738, %v736
      %v783 = vpack.c.b16 %v741, %v739
      %v784 = vpack.c.b16 %v742, %v740
      %v785 = vpack.c.b16 %v745, %v743
      %v786 = vpack.c.b16 %v746, %v744
      %v787 = vpack.c.b16 %v749, %v747
      %v788 = vpack.c.b16 %v750, %v748
      %v789 = vpack.c.b16 %v753, %v751
      %v790 = vpack.c.b16 %v754, %v752
      %v791 = vpack.c.b16 %v757, %v755
      %v792 = vpack.c.b16 %v758, %v756
      %v793 = vpack.c.b16 %v761, %v759
      %v794 = vpack.c.b16 %v762, %v760
      %827 = vmatprep.subr.bf16.mxu0 %v778
      %828 = vmatpush1.bf16.msra.mxu0 %v777
      %829 = vmatprep.subr.bf16.mxu0 %v776
      %830 = vmatpush1.bf16.msra.mxu0 %v775
      %831 = vmatprep.subr.bf16.mxu0 %v774
      %832 = vmatpush1.bf16.msra.mxu0 %v773
      %833 = vmatprep.subr.bf16.mxu0 %v772
      %834 = vmatpush1.bf16.msra.mxu0 %v771
      %835 = vmatprep.subr.bf16.mxu0 %v770
      %836 = vmatpush1.bf16.msra.mxu0 %v769
      %837 = vmatprep.subr.bf16.mxu0 %v768
      %838 = vmatpush1.bf16.msra.mxu0 %v767
      %839 = vmatprep.subr.bf16.mxu0 %v766
      %840 = vmatpush1.bf16.msra.mxu0 %v765
      %841 = vmatprep.subr.bf16.mxu0 %v764
      %842 = vmatpush1.bf16.msra.mxu0 %v763
      %843 = vmatprep.subr.bf16.mxu0 %v794
      %844 = vmatpush2.bf16.msra.mxu0 %v793
      %845 = vmatprep.subr.bf16.mxu0 %v792
      %846 = vmatpush2.bf16.msra.mxu0 %v791
      %847 = vmatprep.subr.bf16.mxu0 %v790
      %848 = vmatpush2.bf16.msra.mxu0 %v789
      %849 = vmatprep.subr.bf16.mxu0 %v788
      %850 = vmatpush2.bf16.msra.mxu0 %v787
      %851 = vmatprep.subr.bf16.mxu0 %v786
      %852 = vmatpush2.bf16.msra.mxu0 %v785
      %853 = vmatprep.subr.bf16.mxu0 %v784
      %854 = vmatpush2.bf16.msra.mxu0 %v783
      %855 = vmatprep.subr.bf16.mxu0 %v782
      %856 = vmatpush2.bf16.msra.mxu0 %v781
      %857 = vmatprep.subr.bf16.mxu0 %v780
      %858 = vmatpush2.bf16.msra.mxu0 %v779
      %859 = vmatprep.mubr.bf16.mxu0 %v608
      %860 = vmatmul.mubr.bf16.gmra.mxu0 %v607
      %v861 = vpop.f32.mrf.mxu0
      %v862 = vadd.f32 %v660, %v861
      %v863 = vpop.f32.mrf.mxu0
      %v864 = vadd.f32 %v664, %v863
      %v865 = vpop.f32.mrf.mxu0
      %v866 = vadd.f32 %v660, %v865
      %v867 = vpop.f32.mrf.mxu0
      %v868 = vadd.f32 %v664, %v867
      %869 = vmatprep.mubr.bf16.mxu0 %v610
      %870 = vmatmul.mubr.bf16.gmra.mxu0 %v609
      %v871 = vpop.f32.mrf.mxu0
      %v872 = vadd.f32 %v660, %v871
      %v873 = vpop.f32.mrf.mxu0
      %v874 = vadd.f32 %v664, %v873
      %v875 = vpop.f32.mrf.mxu0
      %v876 = vadd.f32 %v660, %v875
      %v877 = vpop.f32.mrf.mxu0
      %v878 = vadd.f32 %v664, %v877
      %879 = vmatprep.mubr.bf16.mxu0 %v612
      %880 = vmatmul.mubr.bf16.gmra.mxu0 %v611
      %v881 = vpop.f32.mrf.mxu0
      %v882 = vadd.f32 %v660, %v881
      %v883 = vpop.f32.mrf.mxu0
      %v884 = vadd.f32 %v664, %v883
      %v885 = vpop.f32.mrf.mxu0
      %v886 = vadd.f32 %v660, %v885
      %v887 = vpop.f32.mrf.mxu0
      %v888 = vadd.f32 %v664, %v887
      %889 = vmatprep.mubr.bf16.mxu0 %v614
      %890 = vmatmul.mubr.bf16.gmra.mxu0 %v613
      %v891 = vpop.f32.mrf.mxu0
      %v892 = vadd.f32 %v660, %v891
      %v893 = vpop.f32.mrf.mxu0
      %v894 = vadd.f32 %v664, %v893
      %v895 = vpop.f32.mrf.mxu0
      %v896 = vadd.f32 %v660, %v895
      %v897 = vpop.f32.mrf.mxu0
      %v898 = vadd.f32 %v664, %v897
      %899 = vmatprep.mubr.bf16.mxu0 %v616
      %900 = vmatmul.mubr.bf16.gmra.mxu0 %v615
      %v901 = vpop.f32.mrf.mxu0
      %v902 = vadd.f32 %v660, %v901
      %v903 = vpop.f32.mrf.mxu0
      %v904 = vadd.f32 %v664, %v903
      %v905 = vpop.f32.mrf.mxu0
      %v906 = vadd.f32 %v660, %v905
      %v907 = vpop.f32.mrf.mxu0
      %v908 = vadd.f32 %v664, %v907
      %909 = vmatprep.mubr.bf16.mxu0 %v618
      %910 = vmatmul.mubr.bf16.gmra.mxu0 %v617
      %v911 = vpop.f32.mrf.mxu0
      %v912 = vadd.f32 %v660, %v911
      %v913 = vpop.f32.mrf.mxu0
      %v914 = vadd.f32 %v664, %v913
      %v915 = vpop.f32.mrf.mxu0
      %v916 = vadd.f32 %v660, %v915
      %v917 = vpop.f32.mrf.mxu0
      %v918 = vadd.f32 %v664, %v917
      %919 = vmatprep.mubr.bf16.mxu0 %v620
      %920 = vmatmul.mubr.bf16.gmra.mxu0 %v619
      %v921 = vpop.f32.mrf.mxu0
      %v922 = vadd.f32 %v660, %v921
      %v923 = vpop.f32.mrf.mxu0
      %v924 = vadd.f32 %v664, %v923
      %v925 = vpop.f32.mrf.mxu0
      %v926 = vadd.f32 %v660, %v925
      %v927 = vpop.f32.mrf.mxu0
      %v928 = vadd.f32 %v664, %v927
      %929 = vmatprep.mubr.bf16.mxu0 %v622
      %930 = vmatmul.mubr.bf16.gmra.mxu0 %v621
      %v931 = vpop.f32.mrf.mxu0
      %v932 = vadd.f32 %v660, %v931
      %v933 = vpop.f32.mrf.mxu0
      %v934 = vadd.f32 %v664, %v933
      %v935 = vpop.f32.mrf.mxu0
      %v936 = vadd.f32 %v660, %v935
      %v937 = vpop.f32.mrf.mxu0
      %v938 = vadd.f32 %v664, %v937
      %939 = vdwg.mxu0
      %v940 = vpack.c.bf16 %v866, %v862
      %v941 = vpack.c.bf16 %v868, %v864
      %v942 = vpack.c.bf16 %v876, %v872
      %v943 = vpack.c.bf16 %v878, %v874
      %v944 = vpack.c.bf16 %v886, %v882
      %v945 = vpack.c.bf16 %v888, %v884
      %v946 = vpack.c.bf16 %v896, %v892
      %v947 = vpack.c.bf16 %v898, %v894
      %v948 = vpack.c.bf16 %v906, %v902
      %v949 = vpack.c.bf16 %v908, %v904
      %v950 = vpack.c.bf16 %v916, %v912
      %v951 = vpack.c.bf16 %v918, %v914
      %v952 = vpack.c.bf16 %v926, %v922
      %v953 = vpack.c.bf16 %v928, %v924
      %v954 = vpack.c.bf16 %v936, %v932
      %v955 = vpack.c.bf16 %v938, %v934
      %v956 = vld [vmem:[%s558] sm:$0xf]
      %v957 = vld [vmem:[%s558 + $0x10] sm:$0xf]
      %v958 = vld [vmem:[%s558 + $0x20] sm:$0xf]
      %v959 = vld [vmem:[%s558 + $0x30] sm:$0xf]
      %v960 = vld [vmem:[%s558 + $0x40] sm:$0xf]
      %v961 = vld [vmem:[%s558 + $0x50] sm:$0xf]
      %v962 = vld [vmem:[%s558 + $0x60] sm:$0xf]
      %v963 = vld [vmem:[%s558 + $0x70] sm:$0xf]
      %v964 = vld [vmem:[%s558 + $0x80] sm:$0xf]
      %v965 = vld [vmem:[%s558 + $0x90] sm:$0xf]
      %v966 = vld [vmem:[%s558 + $0xa0] sm:$0xf]
      %v967 = vld [vmem:[%s558 + $0xb0] sm:$0xf]
      %v968 = vld [vmem:[%s558 + $0xc0] sm:$0xf]
      %v969 = vld [vmem:[%s558 + $0xd0] sm:$0xf]
      %v970 = vld [vmem:[%s558 + $0xe0] sm:$0xf]
      %v971 = vld [vmem:[%s558 + $0xf0] sm:$0xf]
      %v972 = vld [vmem:[%s558 + $0x8] sm:$0xf]
      %v973 = vld [vmem:[%s558 + $0x18] sm:$0xf]
      %v974 = vld [vmem:[%s558 + $0x28] sm:$0xf]
      %v975 = vld [vmem:[%s558 + $0x38] sm:$0xf]
      %v976 = vld [vmem:[%s558 + $0x48] sm:$0xf]
      %v977 = vld [vmem:[%s558 + $0x58] sm:$0xf]
      %v978 = vld [vmem:[%s558 + $0x68] sm:$0xf]
      %v979 = vld [vmem:[%s558 + $0x78] sm:$0xf]
      %v980 = vld [vmem:[%s558 + $0x88] sm:$0xf]
      %v981 = vld [vmem:[%s558 + $0x98] sm:$0xf]
      %v982 = vld [vmem:[%s558 + $0xa8] sm:$0xf]
      %v983 = vld [vmem:[%s558 + $0xb8] sm:$0xf]
      %v984 = vld [vmem:[%s558 + $0xc8] sm:$0xf]
      %v985 = vld [vmem:[%s558 + $0xd8] sm:$0xf]
      %v986 = vld [vmem:[%s558 + $0xe8] sm:$0xf]
      %v987 = vld [vmem:[%s558 + $0xf8] sm:$0xf]
      %v989 = vlaneseq
      %v990 = vshrl.u32 %v989, 7
      %v991 = vsub.s32 0, %v990
      %v992 = vrot.slane %v606, %v991
      %v1010 = vunpack.c.l.b16 %v956
      %v1011 = vunpack.c.l.b16 %v957
      %v1012 = vunpack.c.l.b16 %v958
      %v1013 = vunpack.c.l.b16 %v959
      %v1014 = vunpack.c.l.b16 %v960
      %v1015 = vunpack.c.l.b16 %v961
      %v1016 = vunpack.c.l.b16 %v962
      %v1017 = vunpack.c.l.b16 %v963
      %v1018 = vunpack.c.l.b16 %v964
      %v1019 = vunpack.c.l.b16 %v965
      %v1020 = vunpack.c.l.b16 %v966
      %v1021 = vunpack.c.l.b16 %v967
      %v1022 = vunpack.c.l.b16 %v968
      %v1023 = vunpack.c.l.b16 %v969
      %v1024 = vunpack.c.l.b16 %v970
      %v1025 = vunpack.c.l.b16 %v971
      %v1026 = vpack.c.b16 %v1011, %v1010
      %v1027 = vpack.c.b16 %v1013, %v1012
      %v1028 = vpack.c.b16 %v1015, %v1014
      %v1029 = vpack.c.b16 %v1017, %v1016
      %v1030 = vpack.c.b16 %v1019, %v1018
      %v1031 = vpack.c.b16 %v1021, %v1020
      %v1032 = vpack.c.b16 %v1023, %v1022
      %v1033 = vpack.c.b16 %v1025, %v1024
      %1042 = vmatprep.subr.bf16.mxu0 0
      %1043 = vmatpush1.bf16.xpose.msra.mxu0 %v1033
      %1044 = vmatprep.subr.bf16.mxu0 0
      %1045 = vmatpush1.bf16.xpose.msra.mxu0 %v1032
      %1046 = vmatprep.subr.bf16.mxu0 0
      %1047 = vmatpush1.bf16.xpose.msra.mxu0 %v1031
      %1048 = vmatprep.subr.bf16.mxu0 0
      %1049 = vmatpush1.bf16.xpose.msra.mxu0 %v1030
      %1050 = vmatprep.subr.bf16.mxu0 0
      %1051 = vmatpush1.bf16.xpose.msra.mxu0 %v1029
      %1052 = vmatprep.subr.bf16.mxu0 0
      %1053 = vmatpush1.bf16.xpose.msra.mxu0 %v1028
      %1054 = vmatprep.subr.bf16.mxu0 0
      %1055 = vmatpush1.bf16.xpose.msra.mxu0 %v1027
      %1056 = vmatprep.subr.bf16.mxu0 0
      %1057 = vmatpush1.bf16.xpose.msra.mxu0 %v1026
      %1058 = vmatprep.subr.bf16.mxu0 0
      %1059 = vmatpush2.bf16.xpose.msra.mxu0 0
      %1060 = vmatprep.subr.bf16.mxu0 0
      %1061 = vmatpush2.bf16.xpose.msra.mxu0 0
      %1062 = vmatprep.subr.bf16.mxu0 0
      %1063 = vmatpush2.bf16.xpose.msra.mxu0 0
      %1064 = vmatprep.subr.bf16.mxu0 0
      %1065 = vmatpush2.bf16.xpose.msra.mxu0 0
      %1066 = vmatprep.subr.bf16.mxu0 0
      %1067 = vmatpush2.bf16.xpose.msra.mxu0 0
      %1068 = vmatprep.subr.bf16.mxu0 0
      %1069 = vmatpush2.bf16.xpose.msra.mxu0 0
      %1070 = vmatprep.subr.bf16.mxu0 0
      %1071 = vmatpush2.bf16.xpose.msra.mxu0 0
      %1072 = vmatprep.subr.bf16.mxu0 0
      %1073 = vmatpush2.bf16.xpose.msra.mxu0 0
      %1074 = vmatprep.mubr.bf16.mxu0 0
      %1075 = vmatmul.mubr.bf16.gmra.mxu0 %v940
      %v1076 = vpop.f32.mrf.mxu0
      %v1077 = vadd.f32 %v992, %v1076
      %v1078 = vpop.f32.mrf.mxu0
      %v1079 = vpop.f32.mrf.mxu0
      %v1080 = vadd.f32 %v992, %v1079
      %v1081 = vpop.f32.mrf.mxu0
      %1082 = vmatprep.mubr.bf16.mxu0 0
      %1083 = vmatmul.mubr.bf16.gmra.mxu0 %v942
      %v1084 = vpop.f32.mrf.mxu0
      %v1085 = vadd.f32 %v992, %v1084
      %v1086 = vpop.f32.mrf.mxu0
      %v1087 = vpop.f32.mrf.mxu0
      %v1088 = vadd.f32 %v992, %v1087
      %v1089 = vpop.f32.mrf.mxu0
      %1090 = vmatprep.mubr.bf16.mxu0 0
      %1091 = vmatmul.mubr.bf16.gmra.mxu0 %v944
      %v1092 = vpop.f32.mrf.mxu0
      %v1093 = vadd.f32 %v992, %v1092
      %v1094 = vpop.f32.mrf.mxu0
      %v1095 = vpop.f32.mrf.mxu0
      %v1096 = vadd.f32 %v992, %v1095
      %v1097 = vpop.f32.mrf.mxu0
      %1098 = vmatprep.mubr.bf16.mxu0 0
      %1099 = vmatmul.mubr.bf16.gmra.mxu0 %v946
      %v1100 = vpop.f32.mrf.mxu0
      %v1101 = vadd.f32 %v992, %v1100
      %v1102 = vpop.f32.mrf.mxu0
      %v1103 = vpop.f32.mrf.mxu0
      %v1104 = vadd.f32 %v992, %v1103
      %v1105 = vpop.f32.mrf.mxu0
      %1106 = vmatprep.mubr.bf16.mxu0 0
      %1107 = vmatmul.mubr.bf16.gmra.mxu0 %v948
      %v1108 = vpop.f32.mrf.mxu0
      %v1109 = vadd.f32 %v992, %v1108
      %v1110 = vpop.f32.mrf.mxu0
      %v1111 = vpop.f32.mrf.mxu0
      %v1112 = vadd.f32 %v992, %v1111
      %v1113 = vpop.f32.mrf.mxu0
      %1114 = vmatprep.mubr.bf16.mxu0 0
      %1115 = vmatmul.mubr.bf16.gmra.mxu0 %v950
      %v1116 = vpop.f32.mrf.mxu0
      %v1117 = vadd.f32 %v992, %v1116
      %v1118 = vpop.f32.mrf.mxu0
      %v1119 = vpop.f32.mrf.mxu0
      %v1120 = vadd.f32 %v992, %v1119
      %v1121 = vpop.f32.mrf.mxu0
      %1122 = vmatprep.mubr.bf16.mxu0 0
      %1123 = vmatmul.mubr.bf16.gmra.mxu0 %v952
      %v1124 = vpop.f32.mrf.mxu0
      %v1125 = vadd.f32 %v992, %v1124
      %v1126 = vpop.f32.mrf.mxu0
      %v1127 = vpop.f32.mrf.mxu0
      %v1128 = vadd.f32 %v992, %v1127
      %v1129 = vpop.f32.mrf.mxu0
      %1130 = vmatprep.mubr.bf16.mxu0 0
      %1131 = vmatmul.mubr.bf16.gmra.mxu0 %v954
      %v1132 = vpop.f32.mrf.mxu0
      %v1133 = vadd.f32 %v992, %v1132
      %v1134 = vpop.f32.mrf.mxu0
      %v1135 = vpop.f32.mrf.mxu0
      %v1136 = vadd.f32 %v992, %v1135
      %v1137 = vpop.f32.mrf.mxu0
      %1138 = vdwg.mxu0
      %1139 = vmax.xlane.f32.xlu0 %v1077
      %v1140 = vpop.xlane.xlu0 %1139
      %1141 = vmax.xlane.f32.xlu0 %v1080
      %v1142 = vpop.xlane.xlu0 %1141
      %1143 = vmax.xlane.f32.xlu0 %v1085
      %v1144 = vpop.xlane.xlu0 %1143
      %1145 = vmax.xlane.f32.xlu0 %v1088
      %v1146 = vpop.xlane.xlu0 %1145
      %1147 = vmax.xlane.f32.xlu0 %v1093
      %v1148 = vpop.xlane.xlu0 %1147
      %1149 = vmax.xlane.f32.xlu0 %v1096
      %v1150 = vpop.xlane.xlu0 %1149
      %1151 = vmax.xlane.f32.xlu0 %v1101
      %v1152 = vpop.xlane.xlu0 %1151
      %1153 = vmax.xlane.f32.xlu0 %v1104
      %v1154 = vpop.xlane.xlu0 %1153
      %1155 = vmax.xlane.f32.xlu0 %v1109
      %v1156 = vpop.xlane.xlu0 %1155
      %1157 = vmax.xlane.f32.xlu0 %v1112
      %v1158 = vpop.xlane.xlu0 %1157
      %1159 = vmax.xlane.f32.xlu0 %v1117
      %v1160 = vpop.xlane.xlu0 %1159
      %1161 = vmax.xlane.f32.xlu0 %v1120
      %v1162 = vpop.xlane.xlu0 %1161
      %1163 = vmax.xlane.f32.xlu0 %v1125
      %v1164 = vpop.xlane.xlu0 %1163
      %1165 = vmax.xlane.f32.xlu0 %v1128
      %v1166 = vpop.xlane.xlu0 %1165
      %1167 = vmax.xlane.f32.xlu0 %v1133
      %v1168 = vpop.xlane.xlu0 %1167
      %1169 = vmax.xlane.f32.xlu0 %v1136
      %v1170 = vpop.xlane.xlu0 %1169
      %v1171 = vsub.f32 %v1077, %v1140
      %v1172 = vsub.f32 %v1080, %v1142
      %v1173 = vsub.f32 %v1085, %v1144
      %v1174 = vsub.f32 %v1088, %v1146
      %v1175 = vsub.f32 %v1093, %v1148
      %v1176 = vsub.f32 %v1096, %v1150
      %v1177 = vsub.f32 %v1101, %v1152
      %v1178 = vsub.f32 %v1104, %v1154
      %v1179 = vsub.f32 %v1109, %v1156
      %v1180 = vsub.f32 %v1112, %v1158
      %v1181 = vsub.f32 %v1117, %v1160
      %v1182 = vsub.f32 %v1120, %v1162
      %v1183 = vsub.f32 %v1125, %v1164
      %v1184 = vsub.f32 %v1128, %v1166
      %v1185 = vsub.f32 %v1133, %v1168
      %v1186 = vsub.f32 %v1136, %v1170
      %v1187 = vmul.f32 %v1171, 1.442695
      %v1188 = vpow.pop %v1187
      %v1189 = vmul.f32 %v1172, 1.442695
      %v1190 = vpow.pop %v1189
      %v1191 = vmul.f32 %v1173, 1.442695
      %v1192 = vpow.pop %v1191
      %v1193 = vmul.f32 %v1174, 1.442695
      %v1194 = vpow.pop %v1193
      %v1195 = vmul.f32 %v1175, 1.442695
      %v1196 = vpow.pop %v1195
      %v1197 = vmul.f32 %v1176, 1.442695
      %v1198 = vpow.pop %v1197
      %v1199 = vmul.f32 %v1177, 1.442695
      %v1200 = vpow.pop %v1199
      %v1201 = vmul.f32 %v1178, 1.442695
      %v1202 = vpow.pop %v1201
      %v1203 = vmul.f32 %v1179, 1.442695
      %v1204 = vpow.pop %v1203
      %v1205 = vmul.f32 %v1180, 1.442695
      %v1206 = vpow.pop %v1205
      %v1207 = vmul.f32 %v1181, 1.442695
      %v1208 = vpow.pop %v1207
      %v1209 = vmul.f32 %v1182, 1.442695
      %v1210 = vpow.pop %v1209
      %v1211 = vmul.f32 %v1183, 1.442695
      %v1212 = vpow.pop %v1211
      %v1213 = vmul.f32 %v1184, 1.442695
      %v1214 = vpow.pop %v1213
      %v1215 = vmul.f32 %v1185, 1.442695
      %v1216 = vpow.pop %v1215
      %v1217 = vmul.f32 %v1186, 1.442695
      %v1218 = vpow.pop %v1217
      %1219 = vadd.xlane.f32.xlu0 %v1188
      %v1220 = vpop.xlane.xlu0 %1219
      %1221 = vadd.xlane.f32.xlu0 %v1190
      %v1222 = vpop.xlane.xlu0 %1221
      %1223 = vadd.xlane.f32.xlu0 %v1192
      %v1224 = vpop.xlane.xlu0 %1223
      %1225 = vadd.xlane.f32.xlu0 %v1194
      %v1226 = vpop.xlane.xlu0 %1225
      %1227 = vadd.xlane.f32.xlu0 %v1196
      %v1228 = vpop.xlane.xlu0 %1227
      %1229 = vadd.xlane.f32.xlu0 %v1198
      %v1230 = vpop.xlane.xlu0 %1229
      %1231 = vadd.xlane.f32.xlu0 %v1200
      %v1232 = vpop.xlane.xlu0 %1231
      %1233 = vadd.xlane.f32.xlu0 %v1202
      %v1234 = vpop.xlane.xlu0 %1233
      %1235 = vadd.xlane.f32.xlu0 %v1204
      %v1236 = vpop.xlane.xlu0 %1235
      %1237 = vadd.xlane.f32.xlu0 %v1206
      %v1238 = vpop.xlane.xlu0 %1237
      %1239 = vadd.xlane.f32.xlu0 %v1208
      %v1240 = vpop.xlane.xlu0 %1239
      %1241 = vadd.xlane.f32.xlu0 %v1210
      %v1242 = vpop.xlane.xlu0 %1241
      %1243 = vadd.xlane.f32.xlu0 %v1212
      %v1244 = vpop.xlane.xlu0 %1243
      %1245 = vadd.xlane.f32.xlu0 %v1214
      %v1246 = vpop.xlane.xlu0 %1245
      %1247 = vadd.xlane.f32.xlu0 %v1216
      %v1248 = vpop.xlane.xlu0 %1247
      %1249 = vadd.xlane.f32.xlu0 %v1218
      %v1250 = vpop.xlane.xlu0 %1249
      %v1251 = vrcp.pop %v1220
      %v1252 = vrcp.pop %v1222
      %v1253 = vrcp.pop %v1224
      %v1254 = vrcp.pop %v1226
      %v1255 = vrcp.pop %v1228
      %v1256 = vrcp.pop %v1230
      %v1257 = vrcp.pop %v1232
      %v1258 = vrcp.pop %v1234
      %v1259 = vrcp.pop %v1236
      %v1260 = vrcp.pop %v1238
      %v1261 = vrcp.pop %v1240
      %v1262 = vrcp.pop %v1242
      %v1263 = vrcp.pop %v1244
      %v1264 = vrcp.pop %v1246
      %v1265 = vrcp.pop %v1248
      %v1266 = vrcp.pop %v1250
      %v1267 = vmul.f32 %v1188, %v1251
      %v1268 = vmul.f32 %v1190, %v1252
      %v1269 = vmul.f32 %v1192, %v1253
      %v1270 = vmul.f32 %v1194, %v1254
      %v1271 = vmul.f32 %v1196, %v1255
      %v1272 = vmul.f32 %v1198, %v1256
      %v1273 = vmul.f32 %v1200, %v1257
      %v1274 = vmul.f32 %v1202, %v1258
      %v1275 = vmul.f32 %v1204, %v1259
      %v1276 = vmul.f32 %v1206, %v1260
      %v1277 = vmul.f32 %v1208, %v1261
      %v1278 = vmul.f32 %v1210, %v1262
      %v1279 = vmul.f32 %v1212, %v1263
      %v1280 = vmul.f32 %v1214, %v1264
      %v1281 = vmul.f32 %v1216, %v1265
      %v1282 = vmul.f32 %v1218, %v1266
      %v1283 = vpack.c.bf16 %v1268, %v1267
      %v1284 = vpack.c.bf16 %v1270, %v1269
      %v1285 = vpack.c.bf16 %v1272, %v1271
      %v1286 = vpack.c.bf16 %v1274, %v1273
      %v1287 = vpack.c.bf16 %v1276, %v1275
      %v1288 = vpack.c.bf16 %v1278, %v1277
      %v1289 = vpack.c.bf16 %v1280, %v1279
      %v1290 = vpack.c.bf16 %v1282, %v1281
      %v1307 = vunpack.c.l.b16 %v972
      %v1308 = vunpack.c.l.b16 %v973
      %v1309 = vunpack.c.l.b16 %v974
      %v1310 = vunpack.c.l.b16 %v975
      %v1311 = vunpack.c.l.b16 %v976
      %v1312 = vunpack.c.l.b16 %v977
      %v1313 = vunpack.c.l.b16 %v978
      %v1314 = vunpack.c.l.b16 %v979
      %v1315 = vunpack.c.l.b16 %v980
      %v1316 = vunpack.c.l.b16 %v981
      %v1317 = vunpack.c.l.b16 %v982
      %v1318 = vunpack.c.l.b16 %v983
      %v1319 = vunpack.c.l.b16 %v984
      %v1320 = vunpack.c.l.b16 %v985
      %v1321 = vunpack.c.l.b16 %v986
      %v1322 = vunpack.c.l.b16 %v987
      %v1323 = vpack.c.b16 %v1308, %v1307
      %v1324 = vpack.c.b16 %v1310, %v1309
      %v1325 = vpack.c.b16 %v1312, %v1311
      %v1326 = vpack.c.b16 %v1314, %v1313
      %v1327 = vpack.c.b16 %v1316, %v1315
      %v1328 = vpack.c.b16 %v1318, %v1317
      %v1329 = vpack.c.b16 %v1320, %v1319
      %v1330 = vpack.c.b16 %v1322, %v1321
      %1339 = vmatprep.subr.bf16.mxu0 0
      %1340 = vmatpush1.bf16.msra.mxu0 %v1330
      %1341 = vmatprep.subr.bf16.mxu0 0
      %1342 = vmatpush1.bf16.msra.mxu0 %v1329
      %1343 = vmatprep.subr.bf16.mxu0 0
      %1344 = vmatpush1.bf16.msra.mxu0 %v1328
      %1345 = vmatprep.subr.bf16.mxu0 0
      %1346 = vmatpush1.bf16.msra.mxu0 %v1327
      %1347 = vmatprep.subr.bf16.mxu0 0
      %1348 = vmatpush1.bf16.msra.mxu0 %v1326
      %1349 = vmatprep.subr.bf16.mxu0 0
      %1350 = vmatpush1.bf16.msra.mxu0 %v1325
      %1351 = vmatprep.subr.bf16.mxu0 0
      %1352 = vmatpush1.bf16.msra.mxu0 %v1324
      %1353 = vmatprep.subr.bf16.mxu0 0
      %1354 = vmatpush1.bf16.msra.mxu0 %v1323
      %1355 = vmatprep.subr.bf16.mxu0 0
      %1356 = vmatpush2.bf16.msra.mxu0 0
      %1357 = vmatprep.subr.bf16.mxu0 0
      %1358 = vmatpush2.bf16.msra.mxu0 0
      %1359 = vmatprep.subr.bf16.mxu0 0
      %1360 = vmatpush2.bf16.msra.mxu0 0
      %1361 = vmatprep.subr.bf16.mxu0 0
      %1362 = vmatpush2.bf16.msra.mxu0 0
      %1363 = vmatprep.subr.bf16.mxu0 0
      %1364 = vmatpush2.bf16.msra.mxu0 0
      %1365 = vmatprep.subr.bf16.mxu0 0
      %1366 = vmatpush2.bf16.msra.mxu0 0
      %1367 = vmatprep.subr.bf16.mxu0 0
      %1368 = vmatpush2.bf16.msra.mxu0 0
      %1369 = vmatprep.subr.bf16.mxu0 0
      %1370 = vmatpush2.bf16.msra.mxu0 0
      %1371 = vmatprep.mubr.bf16.mxu0 0
      %1372 = vmatmul.mubr.bf16.gmra.mxu0 %v1283
      %v1373 = vpop.f32.mrf.mxu0
      %v1374 = vadd.f32 0.0, %v1373
      %v1375 = vpop.f32.mrf.mxu0
      %v1376 = vpop.f32.mrf.mxu0
      %v1377 = vadd.f32 0.0, %v1376
      %v1378 = vpop.f32.mrf.mxu0
      %1379 = vmatprep.mubr.bf16.mxu0 0
      %1380 = vmatmul.mubr.bf16.gmra.mxu0 %v1284
      %v1381 = vpop.f32.mrf.mxu0
      %v1382 = vadd.f32 0.0, %v1381
      %v1383 = vpop.f32.mrf.mxu0
      %v1384 = vpop.f32.mrf.mxu0
      %v1385 = vadd.f32 0.0, %v1384
      %v1386 = vpop.f32.mrf.mxu0
      %1387 = vmatprep.mubr.bf16.mxu0 0
      %1388 = vmatmul.mubr.bf16.gmra.mxu0 %v1285
      %v1389 = vpop.f32.mrf.mxu0
      %v1390 = vadd.f32 0.0, %v1389
      %v1391 = vpop.f32.mrf.mxu0
      %v1392 = vpop.f32.mrf.mxu0
      %v1393 = vadd.f32 0.0, %v1392
      %v1394 = vpop.f32.mrf.mxu0
      %1395 = vmatprep.mubr.bf16.mxu0 0
      %1396 = vmatmul.mubr.bf16.gmra.mxu0 %v1286
      %v1397 = vpop.f32.mrf.mxu0
      %v1398 = vadd.f32 0.0, %v1397
      %v1399 = vpop.f32.mrf.mxu0
      %v1400 = vpop.f32.mrf.mxu0
      %v1401 = vadd.f32 0.0, %v1400
      %v1402 = vpop.f32.mrf.mxu0
      %1403 = vmatprep.mubr.bf16.mxu0 0
      %1404 = vmatmul.mubr.bf16.gmra.mxu0 %v1287
      %v1405 = vpop.f32.mrf.mxu0
      %v1406 = vadd.f32 0.0, %v1405
      %v1407 = vpop.f32.mrf.mxu0
      %v1408 = vpop.f32.mrf.mxu0
      %v1409 = vadd.f32 0.0, %v1408
      %v1410 = vpop.f32.mrf.mxu0
      %1411 = vmatprep.mubr.bf16.mxu0 0
      %1412 = vmatmul.mubr.bf16.gmra.mxu0 %v1288
      %v1413 = vpop.f32.mrf.mxu0
      %v1414 = vadd.f32 0.0, %v1413
      %v1415 = vpop.f32.mrf.mxu0
      %v1416 = vpop.f32.mrf.mxu0
      %v1417 = vadd.f32 0.0, %v1416
      %v1418 = vpop.f32.mrf.mxu0
      %1419 = vmatprep.mubr.bf16.mxu0 0
      %1420 = vmatmul.mubr.bf16.gmra.mxu0 %v1289
      %v1421 = vpop.f32.mrf.mxu0
      %v1422 = vadd.f32 0.0, %v1421
      %v1423 = vpop.f32.mrf.mxu0
      %v1424 = vpop.f32.mrf.mxu0
      %v1425 = vadd.f32 0.0, %v1424
      %v1426 = vpop.f32.mrf.mxu0
      %1427 = vmatprep.mubr.bf16.mxu0 0
      %1428 = vmatmul.mubr.bf16.gmra.mxu0 %v1290
      %v1429 = vpop.f32.mrf.mxu0
      %v1430 = vadd.f32 0.0, %v1429
      %v1431 = vpop.f32.mrf.mxu0
      %v1432 = vpop.f32.mrf.mxu0
      %v1433 = vadd.f32 0.0, %v1432
      %v1434 = vpop.f32.mrf.mxu0
      %1435 = vdwg.mxu0
      %v1436 = vpack.c.bf16 %v1377, %v1374
      %v1437 = vpack.c.bf16 %v1385, %v1382
      %v1438 = vpack.c.bf16 %v1393, %v1390
      %v1439 = vpack.c.bf16 %v1401, %v1398
      %v1440 = vpack.c.bf16 %v1409, %v1406
      %v1441 = vpack.c.bf16 %v1417, %v1414
      %v1442 = vpack.c.bf16 %v1425, %v1422
      %v1443 = vpack.c.bf16 %v1433, %v1430
      %v1452 = vunpack.c.l.b16 %v1436
      %v1453 = vunpack.c.h.b16 %v1436
      %v1454 = vunpack.c.l.b16 %v1437
      %v1455 = vunpack.c.h.b16 %v1437
      %v1456 = vunpack.c.l.b16 %v1438
      %v1457 = vunpack.c.h.b16 %v1438
      %v1458 = vunpack.c.l.b16 %v1439
      %v1459 = vunpack.c.h.b16 %v1439
      %v1460 = vunpack.c.l.b16 %v1440
      %v1461 = vunpack.c.h.b16 %v1440
      %v1462 = vunpack.c.l.b16 %v1441
      %v1463 = vunpack.c.h.b16 %v1441
      %v1464 = vunpack.c.l.b16 %v1442
      %v1465 = vunpack.c.h.b16 %v1442
      %v1466 = vunpack.c.l.b16 %v1443
      %v1467 = vunpack.c.h.b16 %v1443
      %v1468 = vpack.c.b16 %v1452, %v1452
      %v1469 = vpack.c.b16 %v1453, %v1453
      %v1470 = vpack.c.b16 %v1454, %v1454
      %v1471 = vpack.c.b16 %v1455, %v1455
      %v1472 = vpack.c.b16 %v1456, %v1456
      %v1473 = vpack.c.b16 %v1457, %v1457
      %v1474 = vpack.c.b16 %v1458, %v1458
      %v1475 = vpack.c.b16 %v1459, %v1459
      %v1476 = vpack.c.b16 %v1460, %v1460
      %v1477 = vpack.c.b16 %v1461, %v1461
      %v1478 = vpack.c.b16 %v1462, %v1462
      %v1479 = vpack.c.b16 %v1463, %v1463
      %v1480 = vpack.c.b16 %v1464, %v1464
      %v1481 = vpack.c.b16 %v1465, %v1465
      %v1482 = vpack.c.b16 %v1466, %v1466
      %v1483 = vpack.c.b16 %v1467, %v1467
      %1500 = vst [vmem:[#allocation2] sm:$0xf] %v1468
      %1501 = vst [vmem:[#allocation2 + $0x8] sm:$0xf] %v1469
      %1502 = vst [vmem:[#allocation2 + $0x10] sm:$0xf] %v1470
      %1503 = vst [vmem:[#allocation2 + $0x18] sm:$0xf] %v1471
      %1504 = vst [vmem:[#allocation2 + $0x20] sm:$0xf] %v1472
      %1505 = vst [vmem:[#allocation2 + $0x28] sm:$0xf] %v1473
      %1506 = vst [vmem:[#allocation2 + $0x30] sm:$0xf] %v1474
      %1507 = vst [vmem:[#allocation2 + $0x38] sm:$0xf] %v1475
      %1508 = vst [vmem:[#allocation2 + $0x40] sm:$0xf] %v1476
      %1509 = vst [vmem:[#allocation2 + $0x48] sm:$0xf] %v1477
      %1510 = vst [vmem:[#allocation2 + $0x50] sm:$0xf] %v1478
      %1511 = vst [vmem:[#allocation2 + $0x58] sm:$0xf] %v1479
      %1512 = vst [vmem:[#allocation2 + $0x60] sm:$0xf] %v1480
      %1513 = vst [vmem:[#allocation2 + $0x68] sm:$0xf] %v1481
      %1514 = vst [vmem:[#allocation2 + $0x70] sm:$0xf] %v1482
      %1515 = vst [vmem:[#allocation2 + $0x78] sm:$0xf] %v1483
      %v1516 = vld [vmem:[%s558 + $0x4] sm:$0xf]
      %v1517 = vld [vmem:[%s558 + $0x14] sm:$0xf]
      %v1518 = vld [vmem:[%s558 + $0x24] sm:$0xf]
      %v1519 = vld [vmem:[%s558 + $0x34] sm:$0xf]
      %v1520 = vld [vmem:[%s558 + $0x44] sm:$0xf]
      %v1521 = vld [vmem:[%s558 + $0x54] sm:$0xf]
      %v1522 = vld [vmem:[%s558 + $0x64] sm:$0xf]
      %v1523 = vld [vmem:[%s558 + $0x74] sm:$0xf]
      %v1524 = vld [vmem:[%s558 + $0x84] sm:$0xf]
      %v1525 = vld [vmem:[%s558 + $0x94] sm:$0xf]
      %v1526 = vld [vmem:[%s558 + $0xa4] sm:$0xf]
      %v1527 = vld [vmem:[%s558 + $0xb4] sm:$0xf]
      %v1528 = vld [vmem:[%s558 + $0xc4] sm:$0xf]
      %v1529 = vld [vmem:[%s558 + $0xd4] sm:$0xf]
      %v1530 = vld [vmem:[%s558 + $0xe4] sm:$0xf]
      %v1531 = vld [vmem:[%s558 + $0xf4] sm:$0xf]
      %v1532 = vld [vmem:[%s558 + $0xc] sm:$0xf]
      %v1533 = vld [vmem:[%s558 + $0x1c] sm:$0xf]
      %v1534 = vld [vmem:[%s558 + $0x2c] sm:$0xf]
      %v1535 = vld [vmem:[%s558 + $0x3c] sm:$0xf]
      %v1536 = vld [vmem:[%s558 + $0x4c] sm:$0xf]
      %v1537 = vld [vmem:[%s558 + $0x5c] sm:$0xf]
      %v1538 = vld [vmem:[%s558 + $0x6c] sm:$0xf]
      %v1539 = vld [vmem:[%s558 + $0x7c] sm:$0xf]
      %v1540 = vld [vmem:[%s558 + $0x8c] sm:$0xf]
      %v1541 = vld [vmem:[%s558 + $0x9c] sm:$0xf]
      %v1542 = vld [vmem:[%s558 + $0xac] sm:$0xf]
      %v1543 = vld [vmem:[%s558 + $0xbc] sm:$0xf]
      %v1544 = vld [vmem:[%s558 + $0xcc] sm:$0xf]
      %v1545 = vld [vmem:[%s558 + $0xdc] sm:$0xf]
      %v1546 = vld [vmem:[%s558 + $0xec] sm:$0xf]
      %v1547 = vld [vmem:[%s558 + $0xfc] sm:$0xf]
      %v1564 = vunpack.c.l.b16 %v1516
      %v1565 = vunpack.c.l.b16 %v1517
      %v1566 = vunpack.c.l.b16 %v1518
      %v1567 = vunpack.c.l.b16 %v1519
      %v1568 = vunpack.c.l.b16 %v1520
      %v1569 = vunpack.c.l.b16 %v1521
      %v1570 = vunpack.c.l.b16 %v1522
      %v1571 = vunpack.c.l.b16 %v1523
      %v1572 = vunpack.c.l.b16 %v1524
      %v1573 = vunpack.c.l.b16 %v1525
      %v1574 = vunpack.c.l.b16 %v1526
      %v1575 = vunpack.c.l.b16 %v1527
      %v1576 = vunpack.c.l.b16 %v1528
      %v1577 = vunpack.c.l.b16 %v1529
      %v1578 = vunpack.c.l.b16 %v1530
      %v1579 = vunpack.c.l.b16 %v1531
      %v1580 = vpack.c.b16 %v1565, %v1564
      %v1581 = vpack.c.b16 %v1567, %v1566
      %v1582 = vpack.c.b16 %v1569, %v1568
      %v1583 = vpack.c.b16 %v1571, %v1570
      %v1584 = vpack.c.b16 %v1573, %v1572
      %v1585 = vpack.c.b16 %v1575, %v1574
      %v1586 = vpack.c.b16 %v1577, %v1576
      %v1587 = vpack.c.b16 %v1579, %v1578
      %1596 = vmatprep.subr.bf16.mxu0 0
      %1597 = vmatpush1.bf16.xpose.msra.mxu0 %v1587
      %1598 = vmatprep.subr.bf16.mxu0 0
      %1599 = vmatpush1.bf16.xpose.msra.mxu0 %v1586
      %1600 = vmatprep.subr.bf16.mxu0 0
      %1601 = vmatpush1.bf16.xpose.msra.mxu0 %v1585
      %1602 = vmatprep.subr.bf16.mxu0 0
      %1603 = vmatpush1.bf16.xpose.msra.mxu0 %v1584
      %1604 = vmatprep.subr.bf16.mxu0 0
      %1605 = vmatpush1.bf16.xpose.msra.mxu0 %v1583
      %1606 = vmatprep.subr.bf16.mxu0 0
      %1607 = vmatpush1.bf16.xpose.msra.mxu0 %v1582
      %1608 = vmatprep.subr.bf16.mxu0 0
      %1609 = vmatpush1.bf16.xpose.msra.mxu0 %v1581
      %1610 = vmatprep.subr.bf16.mxu0 0
      %1611 = vmatpush1.bf16.xpose.msra.mxu0 %v1580
      %1612 = vmatprep.subr.bf16.mxu0 0
      %1613 = vmatpush2.bf16.xpose.msra.mxu0 0
      %1614 = vmatprep.subr.bf16.mxu0 0
      %1615 = vmatpush2.bf16.xpose.msra.mxu0 0
      %1616 = vmatprep.subr.bf16.mxu0 0
      %1617 = vmatpush2.bf16.xpose.msra.mxu0 0
      %1618 = vmatprep.subr.bf16.mxu0 0
      %1619 = vmatpush2.bf16.xpose.msra.mxu0 0
      %1620 = vmatprep.subr.bf16.mxu0 0
      %1621 = vmatpush2.bf16.xpose.msra.mxu0 0
      %1622 = vmatprep.subr.bf16.mxu0 0
      %1623 = vmatpush2.bf16.xpose.msra.mxu0 0
      %1624 = vmatprep.subr.bf16.mxu0 0
      %1625 = vmatpush2.bf16.xpose.msra.mxu0 0
      %1626 = vmatprep.subr.bf16.mxu0 0
      %1627 = vmatpush2.bf16.xpose.msra.mxu0 0
      %1628 = vmatprep.mubr.bf16.mxu0 0
      %1629 = vmatmul.mubr.bf16.gmra.mxu0 %v941
      %v1630 = vpop.f32.mrf.mxu0
      %v1631 = vadd.f32 %v992, %v1630
      %v1632 = vpop.f32.mrf.mxu0
      %v1633 = vpop.f32.mrf.mxu0
      %v1634 = vadd.f32 %v992, %v1633
      %v1635 = vpop.f32.mrf.mxu0
      %1636 = vmatprep.mubr.bf16.mxu0 0
      %1637 = vmatmul.mubr.bf16.gmra.mxu0 %v943
      %v1638 = vpop.f32.mrf.mxu0
      %v1639 = vadd.f32 %v992, %v1638
      %v1640 = vpop.f32.mrf.mxu0
      %v1641 = vpop.f32.mrf.mxu0
      %v1642 = vadd.f32 %v992, %v1641
      %v1643 = vpop.f32.mrf.mxu0
      %1644 = vmatprep.mubr.bf16.mxu0 0
      %1645 = vmatmul.mubr.bf16.gmra.mxu0 %v945
      %v1646 = vpop.f32.mrf.mxu0
      %v1647 = vadd.f32 %v992, %v1646
      %v1648 = vpop.f32.mrf.mxu0
      %v1649 = vpop.f32.mrf.mxu0
      %v1650 = vadd.f32 %v992, %v1649
      %v1651 = vpop.f32.mrf.mxu0
      %1652 = vmatprep.mubr.bf16.mxu0 0
      %1653 = vmatmul.mubr.bf16.gmra.mxu0 %v947
      %v1654 = vpop.f32.mrf.mxu0
      %v1655 = vadd.f32 %v992, %v1654
      %v1656 = vpop.f32.mrf.mxu0
      %v1657 = vpop.f32.mrf.mxu0
      %v1658 = vadd.f32 %v992, %v1657
      %v1659 = vpop.f32.mrf.mxu0
      %1660 = vmatprep.mubr.bf16.mxu0 0
      %1661 = vmatmul.mubr.bf16.gmra.mxu0 %v949
      %v1662 = vpop.f32.mrf.mxu0
      %v1663 = vadd.f32 %v992, %v1662
      %v1664 = vpop.f32.mrf.mxu0
      %v1665 = vpop.f32.mrf.mxu0
      %v1666 = vadd.f32 %v992, %v1665
      %v1667 = vpop.f32.mrf.mxu0
      %1668 = vmatprep.mubr.bf16.mxu0 0
      %1669 = vmatmul.mubr.bf16.gmra.mxu0 %v951
      %v1670 = vpop.f32.mrf.mxu0
      %v1671 = vadd.f32 %v992, %v1670
      %v1672 = vpop.f32.mrf.mxu0
      %v1673 = vpop.f32.mrf.mxu0
      %v1674 = vadd.f32 %v992, %v1673
      %v1675 = vpop.f32.mrf.mxu0
      %1676 = vmatprep.mubr.bf16.mxu0 0
      %1677 = vmatmul.mubr.bf16.gmra.mxu0 %v953
      %v1678 = vpop.f32.mrf.mxu0
      %v1679 = vadd.f32 %v992, %v1678
      %v1680 = vpop.f32.mrf.mxu0
      %v1681 = vpop.f32.mrf.mxu0
      %v1682 = vadd.f32 %v992, %v1681
      %v1683 = vpop.f32.mrf.mxu0
      %1684 = vmatprep.mubr.bf16.mxu0 0
      %1685 = vmatmul.mubr.bf16.gmra.mxu0 %v955
      %v1686 = vpop.f32.mrf.mxu0
      %v1687 = vadd.f32 %v992, %v1686
      %v1688 = vpop.f32.mrf.mxu0
      %v1689 = vpop.f32.mrf.mxu0
      %v1690 = vadd.f32 %v992, %v1689
      %v1691 = vpop.f32.mrf.mxu0
      %1692 = vdwg.mxu0
      %1693 = vmax.xlane.f32.xlu0 %v1631
      %v1694 = vpop.xlane.xlu0 %1693
      %1695 = vmax.xlane.f32.xlu0 %v1634
      %v1696 = vpop.xlane.xlu0 %1695
      %1697 = vmax.xlane.f32.xlu0 %v1639
      %v1698 = vpop.xlane.xlu0 %1697
      %1699 = vmax.xlane.f32.xlu0 %v1642
      %v1700 = vpop.xlane.xlu0 %1699
      %1701 = vmax.xlane.f32.xlu0 %v1647
      %v1702 = vpop.xlane.xlu0 %1701
      %1703 = vmax.xlane.f32.xlu0 %v1650
      %v1704 = vpop.xlane.xlu0 %1703
      %1705 = vmax.xlane.f32.xlu0 %v1655
      %v1706 = vpop.xlane.xlu0 %1705
      %1707 = vmax.xlane.f32.xlu0 %v1658
      %v1708 = vpop.xlane.xlu0 %1707
      %1709 = vmax.xlane.f32.xlu0 %v1663
      %v1710 = vpop.xlane.xlu0 %1709
      %1711 = vmax.xlane.f32.xlu0 %v1666
      %v1712 = vpop.xlane.xlu0 %1711
      %1713 = vmax.xlane.f32.xlu0 %v1671
      %v1714 = vpop.xlane.xlu0 %1713
      %1715 = vmax.xlane.f32.xlu0 %v1674
      %v1716 = vpop.xlane.xlu0 %1715
      %1717 = vmax.xlane.f32.xlu0 %v1679
      %v1718 = vpop.xlane.xlu0 %1717
      %1719 = vmax.xlane.f32.xlu0 %v1682
      %v1720 = vpop.xlane.xlu0 %1719
      %1721 = vmax.xlane.f32.xlu0 %v1687
      %v1722 = vpop.xlane.xlu0 %1721
      %1723 = vmax.xlane.f32.xlu0 %v1690
      %v1724 = vpop.xlane.xlu0 %1723
      %v1725 = vsub.f32 %v1631, %v1694
      %v1726 = vsub.f32 %v1634, %v1696
      %v1727 = vsub.f32 %v1639, %v1698
      %v1728 = vsub.f32 %v1642, %v1700
      %v1729 = vsub.f32 %v1647, %v1702
      %v1730 = vsub.f32 %v1650, %v1704
      %v1731 = vsub.f32 %v1655, %v1706
      %v1732 = vsub.f32 %v1658, %v1708
      %v1733 = vsub.f32 %v1663, %v1710
      %v1734 = vsub.f32 %v1666, %v1712
      %v1735 = vsub.f32 %v1671, %v1714
      %v1736 = vsub.f32 %v1674, %v1716
      %v1737 = vsub.f32 %v1679, %v1718
      %v1738 = vsub.f32 %v1682, %v1720
      %v1739 = vsub.f32 %v1687, %v1722
      %v1740 = vsub.f32 %v1690, %v1724
      %v1741 = vmul.f32 %v1725, 1.442695
      %v1742 = vpow.pop %v1741
      %v1743 = vmul.f32 %v1726, 1.442695
      %v1744 = vpow.pop %v1743
      %v1745 = vmul.f32 %v1727, 1.442695
      %v1746 = vpow.pop %v1745
      %v1747 = vmul.f32 %v1728, 1.442695
      %v1748 = vpow.pop %v1747
      %v1749 = vmul.f32 %v1729, 1.442695
      %v1750 = vpow.pop %v1749
      %v1751 = vmul.f32 %v1730, 1.442695
      %v1752 = vpow.pop %v1751
      %v1753 = vmul.f32 %v1731, 1.442695
      %v1754 = vpow.pop %v1753
      %v1755 = vmul.f32 %v1732, 1.442695
      %v1756 = vpow.pop %v1755
      %v1757 = vmul.f32 %v1733, 1.442695
      %v1758 = vpow.pop %v1757
      %v1759 = vmul.f32 %v1734, 1.442695
      %v1760 = vpow.pop %v1759
      %v1761 = vmul.f32 %v1735, 1.442695
      %v1762 = vpow.pop %v1761
      %v1763 = vmul.f32 %v1736, 1.442695
      %v1764 = vpow.pop %v1763
      %v1765 = vmul.f32 %v1737, 1.442695
      %v1766 = vpow.pop %v1765
      %v1767 = vmul.f32 %v1738, 1.442695
      %v1768 = vpow.pop %v1767
      %v1769 = vmul.f32 %v1739, 1.442695
      %v1770 = vpow.pop %v1769
      %v1771 = vmul.f32 %v1740, 1.442695
      %v1772 = vpow.pop %v1771
      %1773 = vadd.xlane.f32.xlu0 %v1742
      %v1774 = vpop.xlane.xlu0 %1773
      %1775 = vadd.xlane.f32.xlu0 %v1744
      %v1776 = vpop.xlane.xlu0 %1775
      %1777 = vadd.xlane.f32.xlu0 %v1746
      %v1778 = vpop.xlane.xlu0 %1777
      %1779 = vadd.xlane.f32.xlu0 %v1748
      %v1780 = vpop.xlane.xlu0 %1779
      %1781 = vadd.xlane.f32.xlu0 %v1750
      %v1782 = vpop.xlane.xlu0 %1781
      %1783 = vadd.xlane.f32.xlu0 %v1752
      %v1784 = vpop.xlane.xlu0 %1783
      %1785 = vadd.xlane.f32.xlu0 %v1754
      %v1786 = vpop.xlane.xlu0 %1785
      %1787 = vadd.xlane.f32.xlu0 %v1756
      %v1788 = vpop.xlane.xlu0 %1787
      %1789 = vadd.xlane.f32.xlu0 %v1758
      %v1790 = vpop.xlane.xlu0 %1789
      %1791 = vadd.xlane.f32.xlu0 %v1760
      %v1792 = vpop.xlane.xlu0 %1791
      %1793 = vadd.xlane.f32.xlu0 %v1762
      %v1794 = vpop.xlane.xlu0 %1793
      %1795 = vadd.xlane.f32.xlu0 %v1764
      %v1796 = vpop.xlane.xlu0 %1795
      %1797 = vadd.xlane.f32.xlu0 %v1766
      %v1798 = vpop.xlane.xlu0 %1797
      %1799 = vadd.xlane.f32.xlu0 %v1768
      %v1800 = vpop.xlane.xlu0 %1799
      %1801 = vadd.xlane.f32.xlu0 %v1770
      %v1802 = vpop.xlane.xlu0 %1801
      %1803 = vadd.xlane.f32.xlu0 %v1772
      %v1804 = vpop.xlane.xlu0 %1803
      %v1805 = vrcp.pop %v1774
      %v1806 = vrcp.pop %v1776
      %v1807 = vrcp.pop %v1778
      %v1808 = vrcp.pop %v1780
      %v1809 = vrcp.pop %v1782
      %v1810 = vrcp.pop %v1784
      %v1811 = vrcp.pop %v1786
      %v1812 = vrcp.pop %v1788
      %v1813 = vrcp.pop %v1790
      %v1814 = vrcp.pop %v1792
      %v1815 = vrcp.pop %v1794
      %v1816 = vrcp.pop %v1796
      %v1817 = vrcp.pop %v1798
      %v1818 = vrcp.pop %v1800
      %v1819 = vrcp.pop %v1802
      %v1820 = vrcp.pop %v1804
      %v1821 = vmul.f32 %v1742, %v1805
      %v1822 = vmul.f32 %v1744, %v1806
      %v1823 = vmul.f32 %v1746, %v1807
      %v1824 = vmul.f32 %v1748, %v1808
      %v1825 = vmul.f32 %v1750, %v1809
      %v1826 = vmul.f32 %v1752, %v1810
      %v1827 = vmul.f32 %v1754, %v1811
      %v1828 = vmul.f32 %v1756, %v1812
      %v1829 = vmul.f32 %v1758, %v1813
      %v1830 = vmul.f32 %v1760, %v1814
      %v1831 = vmul.f32 %v1762, %v1815
      %v1832 = vmul.f32 %v1764, %v1816
      %v1833 = vmul.f32 %v1766, %v1817
      %v1834 = vmul.f32 %v1768, %v1818
      %v1835 = vmul.f32 %v1770, %v1819
      %v1836 = vmul.f32 %v1772, %v1820
      %v1837 = vpack.c.bf16 %v1822, %v1821
      %v1838 = vpack.c.bf16 %v1824, %v1823
      %v1839 = vpack.c.bf16 %v1826, %v1825
      %v1840 = vpack.c.bf16 %v1828, %v1827
      %v1841 = vpack.c.bf16 %v1830, %v1829
      %v1842 = vpack.c.bf16 %v1832, %v1831
      %v1843 = vpack.c.bf16 %v1834, %v1833
      %v1844 = vpack.c.bf16 %v1836, %v1835
      %v1861 = vunpack.c.l.b16 %v1532
      %v1862 = vunpack.c.l.b16 %v1533
      %v1863 = vunpack.c.l.b16 %v1534
      %v1864 = vunpack.c.l.b16 %v1535
      %v1865 = vunpack.c.l.b16 %v1536
      %v1866 = vunpack.c.l.b16 %v1537
      %v1867 = vunpack.c.l.b16 %v1538
      %v1868 = vunpack.c.l.b16 %v1539
      %v1869 = vunpack.c.l.b16 %v1540
      %v1870 = vunpack.c.l.b16 %v1541
      %v1871 = vunpack.c.l.b16 %v1542
      %v1872 = vunpack.c.l.b16 %v1543
      %v1873 = vunpack.c.l.b16 %v1544
      %v1874 = vunpack.c.l.b16 %v1545
      %v1875 = vunpack.c.l.b16 %v1546
      %v1876 = vunpack.c.l.b16 %v1547
      %v1877 = vpack.c.b16 %v1862, %v1861
      %v1878 = vpack.c.b16 %v1864, %v1863
      %v1879 = vpack.c.b16 %v1866, %v1865
      %v1880 = vpack.c.b16 %v1868, %v1867
      %v1881 = vpack.c.b16 %v1870, %v1869
      %v1882 = vpack.c.b16 %v1872, %v1871
      %v1883 = vpack.c.b16 %v1874, %v1873
      %v1884 = vpack.c.b16 %v1876, %v1875
      %1893 = vmatprep.subr.bf16.mxu0 0
      %1894 = vmatpush1.bf16.msra.mxu0 %v1884
      %1895 = vmatprep.subr.bf16.mxu0 0
      %1896 = vmatpush1.bf16.msra.mxu0 %v1883
      %1897 = vmatprep.subr.bf16.mxu0 0
      %1898 = vmatpush1.bf16.msra.mxu0 %v1882
      %1899 = vmatprep.subr.bf16.mxu0 0
      %1900 = vmatpush1.bf16.msra.mxu0 %v1881
      %1901 = vmatprep.subr.bf16.mxu0 0
      %1902 = vmatpush1.bf16.msra.mxu0 %v1880
      %1903 = vmatprep.subr.bf16.mxu0 0
      %1904 = vmatpush1.bf16.msra.mxu0 %v1879
      %1905 = vmatprep.subr.bf16.mxu0 0
      %1906 = vmatpush1.bf16.msra.mxu0 %v1878
      %1907 = vmatprep.subr.bf16.mxu0 0
      %1908 = vmatpush1.bf16.msra.mxu0 %v1877
      %1909 = vmatprep.subr.bf16.mxu0 0
      %1910 = vmatpush2.bf16.msra.mxu0 0
      %1911 = vmatprep.subr.bf16.mxu0 0
      %1912 = vmatpush2.bf16.msra.mxu0 0
      %1913 = vmatprep.subr.bf16.mxu0 0
      %1914 = vmatpush2.bf16.msra.mxu0 0
      %1915 = vmatprep.subr.bf16.mxu0 0
      %1916 = vmatpush2.bf16.msra.mxu0 0
      %1917 = vmatprep.subr.bf16.mxu0 0
      %1918 = vmatpush2.bf16.msra.mxu0 0
      %1919 = vmatprep.subr.bf16.mxu0 0
      %1920 = vmatpush2.bf16.msra.mxu0 0
      %1921 = vmatprep.subr.bf16.mxu0 0
      %1922 = vmatpush2.bf16.msra.mxu0 0
      %1923 = vmatprep.subr.bf16.mxu0 0
      %1924 = vmatpush2.bf16.msra.mxu0 0
      %1925 = vmatprep.mubr.bf16.mxu0 0
      %1926 = vmatmul.mubr.bf16.gmra.mxu0 %v1837
      %v1927 = vpop.f32.mrf.mxu0
      %v1928 = vadd.f32 0.0, %v1927
      %v1929 = vpop.f32.mrf.mxu0
      %v1930 = vpop.f32.mrf.mxu0
      %v1931 = vadd.f32 0.0, %v1930
      %v1932 = vpop.f32.mrf.mxu0
      %1933 = vmatprep.mubr.bf16.mxu0 0
      %1934 = vmatmul.mubr.bf16.gmra.mxu0 %v1838
      %v1935 = vpop.f32.mrf.mxu0
      %v1936 = vadd.f32 0.0, %v1935
      %v1937 = vpop.f32.mrf.mxu0
      %v1938 = vpop.f32.mrf.mxu0
      %v1939 = vadd.f32 0.0, %v1938
      %v1940 = vpop.f32.mrf.mxu0
      %1941 = vmatprep.mubr.bf16.mxu0 0
      %1942 = vmatmul.mubr.bf16.gmra.mxu0 %v1839
      %v1943 = vpop.f32.mrf.mxu0
      %v1944 = vadd.f32 0.0, %v1943
      %v1945 = vpop.f32.mrf.mxu0
      %v1946 = vpop.f32.mrf.mxu0
      %v1947 = vadd.f32 0.0, %v1946
      %v1948 = vpop.f32.mrf.mxu0
      %1949 = vmatprep.mubr.bf16.mxu0 0
      %1950 = vmatmul.mubr.bf16.gmra.mxu0 %v1840
      %v1951 = vpop.f32.mrf.mxu0
      %v1952 = vadd.f32 0.0, %v1951
      %v1953 = vpop.f32.mrf.mxu0
      %v1954 = vpop.f32.mrf.mxu0
      %v1955 = vadd.f32 0.0, %v1954
      %v1956 = vpop.f32.mrf.mxu0
      %1957 = vmatprep.mubr.bf16.mxu0 0
      %1958 = vmatmul.mubr.bf16.gmra.mxu0 %v1841
      %v1959 = vpop.f32.mrf.mxu0
      %v1960 = vadd.f32 0.0, %v1959
      %v1961 = vpop.f32.mrf.mxu0
      %v1962 = vpop.f32.mrf.mxu0
      %v1963 = vadd.f32 0.0, %v1962
      %v1964 = vpop.f32.mrf.mxu0
      %1965 = vmatprep.mubr.bf16.mxu0 0
      %1966 = vmatmul.mubr.bf16.gmra.mxu0 %v1842
      %v1967 = vpop.f32.mrf.mxu0
      %v1968 = vadd.f32 0.0, %v1967
      %v1969 = vpop.f32.mrf.mxu0
      %v1970 = vpop.f32.mrf.mxu0
      %v1971 = vadd.f32 0.0, %v1970
      %v1972 = vpop.f32.mrf.mxu0
      %1973 = vmatprep.mubr.bf16.mxu0 0
      %1974 = vmatmul.mubr.bf16.gmra.mxu0 %v1843
      %v1975 = vpop.f32.mrf.mxu0
      %v1976 = vadd.f32 0.0, %v1975
      %v1977 = vpop.f32.mrf.mxu0
      %v1978 = vpop.f32.mrf.mxu0
      %v1979 = vadd.f32 0.0, %v1978
      %v1980 = vpop.f32.mrf.mxu0
      %1981 = vmatprep.mubr.bf16.mxu0 0
      %1982 = vmatmul.mubr.bf16.gmra.mxu0 %v1844
      %v1983 = vpop.f32.mrf.mxu0
      %v1984 = vadd.f32 0.0, %v1983
      %v1985 = vpop.f32.mrf.mxu0
      %v1986 = vpop.f32.mrf.mxu0
      %v1987 = vadd.f32 0.0, %v1986
      %v1988 = vpop.f32.mrf.mxu0
      %1989 = vdwg.mxu0
      %v1990 = vpack.c.bf16 %v1931, %v1928
      %v1991 = vpack.c.bf16 %v1939, %v1936
      %v1992 = vpack.c.bf16 %v1947, %v1944
      %v1993 = vpack.c.bf16 %v1955, %v1952
      %v1994 = vpack.c.bf16 %v1963, %v1960
      %v1995 = vpack.c.bf16 %v1971, %v1968
      %v1996 = vpack.c.bf16 %v1979, %v1976
      %v1997 = vpack.c.bf16 %v1987, %v1984
      %v2006 = vunpack.c.l.b16 %v1990
      %v2007 = vunpack.c.h.b16 %v1990
      %v2008 = vunpack.c.l.b16 %v1991
      %v2009 = vunpack.c.h.b16 %v1991
      %v2010 = vunpack.c.l.b16 %v1992
      %v2011 = vunpack.c.h.b16 %v1992
      %v2012 = vunpack.c.l.b16 %v1993
      %v2013 = vunpack.c.h.b16 %v1993
      %v2014 = vunpack.c.l.b16 %v1994
      %v2015 = vunpack.c.h.b16 %v1994
      %v2016 = vunpack.c.l.b16 %v1995
      %v2017 = vunpack.c.h.b16 %v1995
      %v2018 = vunpack.c.l.b16 %v1996
      %v2019 = vunpack.c.h.b16 %v1996
      %v2020 = vunpack.c.l.b16 %v1997
      %v2021 = vunpack.c.h.b16 %v1997
      %v2022 = vpack.c.b16 %v2006, %v2006
      %v2023 = vpack.c.b16 %v2007, %v2007
      %v2024 = vpack.c.b16 %v2008, %v2008
      %v2025 = vpack.c.b16 %v2009, %v2009
      %v2026 = vpack.c.b16 %v2010, %v2010
      %v2027 = vpack.c.b16 %v2011, %v2011
      %v2028 = vpack.c.b16 %v2012, %v2012
      %v2029 = vpack.c.b16 %v2013, %v2013
      %v2030 = vpack.c.b16 %v2014, %v2014
      %v2031 = vpack.c.b16 %v2015, %v2015
      %v2032 = vpack.c.b16 %v2016, %v2016
      %v2033 = vpack.c.b16 %v2017, %v2017
      %v2034 = vpack.c.b16 %v2018, %v2018
      %v2035 = vpack.c.b16 %v2019, %v2019
      %v2036 = vpack.c.b16 %v2020, %v2020
      %v2037 = vpack.c.b16 %v2021, %v2021
      %2054 = vst [vmem:[#allocation2 + $0x4] sm:$0xf] %v2022
      %2055 = vst [vmem:[#allocation2 + $0xc] sm:$0xf] %v2023
      %2056 = vst [vmem:[#allocation2 + $0x14] sm:$0xf] %v2024
      %2057 = vst [vmem:[#allocation2 + $0x1c] sm:$0xf] %v2025
      %2058 = vst [vmem:[#allocation2 + $0x24] sm:$0xf] %v2026
      %2059 = vst [vmem:[#allocation2 + $0x2c] sm:$0xf] %v2027
      %2060 = vst [vmem:[#allocation2 + $0x34] sm:$0xf] %v2028
      %2061 = vst [vmem:[#allocation2 + $0x3c] sm:$0xf] %v2029
      %2062 = vst [vmem:[#allocation2 + $0x44] sm:$0xf] %v2030
      %2063 = vst [vmem:[#allocation2 + $0x4c] sm:$0xf] %v2031
      %2064 = vst [vmem:[#allocation2 + $0x54] sm:$0xf] %v2032
      %2065 = vst [vmem:[#allocation2 + $0x5c] sm:$0xf] %v2033
      %2066 = vst [vmem:[#allocation2 + $0x64] sm:$0xf] %v2034
      %2067 = vst [vmem:[#allocation2 + $0x6c] sm:$0xf] %v2035
      %2068 = vst [vmem:[#allocation2 + $0x74] sm:$0xf] %v2036
      %2069 = vst [vmem:[#allocation2 + $0x7c] sm:$0xf] %v2037
      %v2070 = vld [vmem:[#allocation2] sm:$0xff]
      %v2071 = vld [vmem:[#allocation2 + $0x8] sm:$0xff]
      %v2072 = vld [vmem:[#allocation2 + $0x10] sm:$0xff]
      %v2073 = vld [vmem:[#allocation2 + $0x18] sm:$0xff]
      %v2074 = vld [vmem:[#allocation2 + $0x20] sm:$0xff]
      %v2075 = vld [vmem:[#allocation2 + $0x28] sm:$0xff]
      %v2076 = vld [vmem:[#allocation2 + $0x30] sm:$0xff]
      %v2077 = vld [vmem:[#allocation2 + $0x38] sm:$0xff]
      %v2078 = vld [vmem:[#allocation2 + $0x40] sm:$0xff]
      %v2079 = vld [vmem:[#allocation2 + $0x48] sm:$0xff]
      %v2080 = vld [vmem:[#allocation2 + $0x50] sm:$0xff]
      %v2081 = vld [vmem:[#allocation2 + $0x58] sm:$0xff]
      %v2082 = vld [vmem:[#allocation2 + $0x60] sm:$0xff]
      %v2083 = vld [vmem:[#allocation2 + $0x68] sm:$0xff]
      %v2084 = vld [vmem:[#allocation2 + $0x70] sm:$0xff]
      %v2085 = vld [vmem:[#allocation2 + $0x78] sm:$0xff]
      %v2086 = vld [vmem:[%s5] sm:$0xff]
      %v2087 = vld [vmem:[%s5 + $0x8] sm:$0xff]
      %v2088 = vld [vmem:[%s5 + $0x10] sm:$0xff]
      %v2089 = vld [vmem:[%s5 + $0x18] sm:$0xff]
      %v2090 = vld [vmem:[%s5 + $0x20] sm:$0xff]
      %v2091 = vld [vmem:[%s5 + $0x28] sm:$0xff]
      %v2092 = vld [vmem:[%s5 + $0x30] sm:$0xff]
      %v2093 = vld [vmem:[%s5 + $0x38] sm:$0xff]
      %v2094 = vld [vmem:[%s5 + $0x40] sm:$0xff]
      %v2095 = vld [vmem:[%s5 + $0x48] sm:$0xff]
      %v2096 = vld [vmem:[%s5 + $0x50] sm:$0xff]
      %v2097 = vld [vmem:[%s5 + $0x58] sm:$0xff]
      %v2098 = vld [vmem:[%s5 + $0x60] sm:$0xff]
      %v2099 = vld [vmem:[%s5 + $0x68] sm:$0xff]
      %v2100 = vld [vmem:[%s5 + $0x70] sm:$0xff]
      %v2101 = vld [vmem:[%s5 + $0x78] sm:$0xff]
      %v2102 = vld [vmem:[%s5 + $0x80] sm:$0xff]
      %v2103 = vld [vmem:[%s5 + $0x88] sm:$0xff]
      %v2104 = vld [vmem:[%s5 + $0x90] sm:$0xff]
      %v2105 = vld [vmem:[%s5 + $0x98] sm:$0xff]
      %v2106 = vld [vmem:[%s5 + $0xa0] sm:$0xff]
      %v2107 = vld [vmem:[%s5 + $0xa8] sm:$0xff]
      %v2108 = vld [vmem:[%s5 + $0xb0] sm:$0xff]
      %v2109 = vld [vmem:[%s5 + $0xb8] sm:$0xff]
      %v2110 = vld [vmem:[%s5 + $0xc0] sm:$0xff]
      %v2111 = vld [vmem:[%s5 + $0xc8] sm:$0xff]
      %v2112 = vld [vmem:[%s5 + $0xd0] sm:$0xff]
      %v2113 = vld [vmem:[%s5 + $0xd8] sm:$0xff]
      %v2114 = vld [vmem:[%s5 + $0xe0] sm:$0xff]
      %v2115 = vld [vmem:[%s5 + $0xe8] sm:$0xff]
      %v2116 = vld [vmem:[%s5 + $0xf0] sm:$0xff]
      %v2117 = vld [vmem:[%s5 + $0xf8] sm:$0xff]
      %v2118 = vld [vmem:[%s6] sm:$0x3]
      %v2120 = vlaneseq
      %v2121 = vshrl.u32 %v2120, 7
      %v2122 = vsub.s32 0, %v2121
      %v2123 = vrot.slane %v2118, %v2122
      %v2124 = vlaneseq
      %v2125 = vshrl.u32 %v2124, 7
      %v2126 = vsub.s32 1, %v2125
      %v2127 = vrot.slane %v2118, %v2126
      %v2146 = vunpack.c.l.b16 %v2070
      %v2147 = vunpack.c.h.b16 %v2070
      %v2148 = vunpack.c.l.b16 %v2071
      %v2149 = vunpack.c.h.b16 %v2071
      %v2150 = vunpack.c.l.b16 %v2072
      %v2151 = vunpack.c.h.b16 %v2072
      %v2152 = vunpack.c.l.b16 %v2073
      %v2153 = vunpack.c.h.b16 %v2073
      %v2154 = vunpack.c.l.b16 %v2074
      %v2155 = vunpack.c.h.b16 %v2074
      %v2156 = vunpack.c.l.b16 %v2075
      %v2157 = vunpack.c.h.b16 %v2075
      %v2158 = vunpack.c.l.b16 %v2076
      %v2159 = vunpack.c.h.b16 %v2076
      %v2160 = vunpack.c.l.b16 %v2077
      %v2161 = vunpack.c.h.b16 %v2077
      %v2162 = vunpack.c.l.b16 %v2078
      %v2163 = vunpack.c.h.b16 %v2078
      %v2164 = vunpack.c.l.b16 %v2079
      %v2165 = vunpack.c.h.b16 %v2079
      %v2166 = vunpack.c.l.b16 %v2080
      %v2167 = vunpack.c.h.b16 %v2080
      %v2168 = vunpack.c.l.b16 %v2081
      %v2169 = vunpack.c.h.b16 %v2081
      %v2170 = vunpack.c.l.b16 %v2082
      %v2171 = vunpack.c.h.b16 %v2082
      %v2172 = vunpack.c.l.b16 %v2083
      %v2173 = vunpack.c.h.b16 %v2083
      %v2174 = vunpack.c.l.b16 %v2084
      %v2175 = vunpack.c.h.b16 %v2084
      %v2176 = vunpack.c.l.b16 %v2085
      %v2177 = vunpack.c.h.b16 %v2085
      %v2178 = vpack.c.b16 %v2148, %v2146
      %v2179 = vpack.c.b16 %v2149, %v2147
      %v2180 = vpack.c.b16 %v2152, %v2150
      %v2181 = vpack.c.b16 %v2153, %v2151
      %v2182 = vpack.c.b16 %v2156, %v2154
      %v2183 = vpack.c.b16 %v2157, %v2155
      %v2184 = vpack.c.b16 %v2160, %v2158
      %v2185 = vpack.c.b16 %v2161, %v2159
      %v2186 = vpack.c.b16 %v2164, %v2162
      %v2187 = vpack.c.b16 %v2165, %v2163
      %v2188 = vpack.c.b16 %v2168, %v2166
      %v2189 = vpack.c.b16 %v2169, %v2167
      %v2190 = vpack.c.b16 %v2172, %v2170
      %v2191 = vpack.c.b16 %v2173, %v2171
      %v2192 = vpack.c.b16 %v2176, %v2174
      %v2193 = vpack.c.b16 %v2177, %v2175
      %v2242 = vunpack.c.l.b16 %v2086
      %v2243 = vunpack.c.h.b16 %v2086
      %v2244 = vunpack.c.l.b16 %v2087
      %v2245 = vunpack.c.h.b16 %v2087
      %v2246 = vunpack.c.l.b16 %v2088
      %v2247 = vunpack.c.h.b16 %v2088
      %v2248 = vunpack.c.l.b16 %v2089
      %v2249 = vunpack.c.h.b16 %v2089
      %v2250 = vunpack.c.l.b16 %v2090
      %v2251 = vunpack.c.h.b16 %v2090
      %v2252 = vunpack.c.l.b16 %v2091
      %v2253 = vunpack.c.h.b16 %v2091
      %v2254 = vunpack.c.l.b16 %v2092
      %v2255 = vunpack.c.h.b16 %v2092
      %v2256 = vunpack.c.l.b16 %v2093
      %v2257 = vunpack.c.h.b16 %v2093
      %v2258 = vunpack.c.l.b16 %v2094
      %v2259 = vunpack.c.h.b16 %v2094
      %v2260 = vunpack.c.l.b16 %v2095
      %v2261 = vunpack.c.h.b16 %v2095
      %v2262 = vunpack.c.l.b16 %v2096
      %v2263 = vunpack.c.h.b16 %v2096
      %v2264 = vunpack.c.l.b16 %v2097
      %v2265 = vunpack.c.h.b16 %v2097
      %v2266 = vunpack.c.l.b16 %v2098
      %v2267 = vunpack.c.h.b16 %v2098
      %v2268 = vunpack.c.l.b16 %v2099
      %v2269 = vunpack.c.h.b16 %v2099
      %v2270 = vunpack.c.l.b16 %v2100
      %v2271 = vunpack.c.h.b16 %v2100
      %v2272 = vunpack.c.l.b16 %v2101
      %v2273 = vunpack.c.h.b16 %v2101
      %v2274 = vunpack.c.l.b16 %v2102
      %v2275 = vunpack.c.h.b16 %v2102
      %v2276 = vunpack.c.l.b16 %v2103
      %v2277 = vunpack.c.h.b16 %v2103
      %v2278 = vunpack.c.l.b16 %v2104
      %v2279 = vunpack.c.h.b16 %v2104
      %v2280 = vunpack.c.l.b16 %v2105
      %v2281 = vunpack.c.h.b16 %v2105
      %v2282 = vunpack.c.l.b16 %v2106
      %v2283 = vunpack.c.h.b16 %v2106
      %v2284 = vunpack.c.l.b16 %v2107
      %v2285 = vunpack.c.h.b16 %v2107
      %v2286 = vunpack.c.l.b16 %v2108
      %v2287 = vunpack.c.h.b16 %v2108
      %v2288 = vunpack.c.l.b16 %v2109
      %v2289 = vunpack.c.h.b16 %v2109
      %v2290 = vunpack.c.l.b16 %v2110
      %v2291 = vunpack.c.h.b16 %v2110
      %v2292 = vunpack.c.l.b16 %v2111
      %v2293 = vunpack.c.h.b16 %v2111
      %v2294 = vunpack.c.l.b16 %v2112
      %v2295 = vunpack.c.h.b16 %v2112
      %v2296 = vunpack.c.l.b16 %v2113
      %v2297 = vunpack.c.h.b16 %v2113
      %v2298 = vunpack.c.l.b16 %v2114
      %v2299 = vunpack.c.h.b16 %v2114
      %v2300 = vunpack.c.l.b16 %v2115
      %v2301 = vunpack.c.h.b16 %v2115
      %v2302 = vunpack.c.l.b16 %v2116
      %v2303 = vunpack.c.h.b16 %v2116
      %v2304 = vunpack.c.l.b16 %v2117
      %v2305 = vunpack.c.h.b16 %v2117
      %v2306 = vpack.c.b16 %v2244, %v2242
      %v2307 = vpack.c.b16 %v2245, %v2243
      %v2308 = vpack.c.b16 %v2248, %v2246
      %v2309 = vpack.c.b16 %v2249, %v2247
      %v2310 = vpack.c.b16 %v2252, %v2250
      %v2311 = vpack.c.b16 %v2253, %v2251
      %v2312 = vpack.c.b16 %v2256, %v2254
      %v2313 = vpack.c.b16 %v2257, %v2255
      %v2314 = vpack.c.b16 %v2260, %v2258
      %v2315 = vpack.c.b16 %v2261, %v2259
      %v2316 = vpack.c.b16 %v2264, %v2262
      %v2317 = vpack.c.b16 %v2265, %v2263
      %v2318 = vpack.c.b16 %v2268, %v2266
      %v2319 = vpack.c.b16 %v2269, %v2267
      %v2320 = vpack.c.b16 %v2272, %v2270
      %v2321 = vpack.c.b16 %v2273, %v2271
      %v2322 = vpack.c.b16 %v2276, %v2274
      %v2323 = vpack.c.b16 %v2277, %v2275
      %v2324 = vpack.c.b16 %v2280, %v2278
      %v2325 = vpack.c.b16 %v2281, %v2279
      %v2326 = vpack.c.b16 %v2284, %v2282
      %v2327 = vpack.c.b16 %v2285, %v2283
      %v2328 = vpack.c.b16 %v2288, %v2286
      %v2329 = vpack.c.b16 %v2289, %v2287
      %v2330 = vpack.c.b16 %v2292, %v2290
      %v2331 = vpack.c.b16 %v2293, %v2291
      %v2332 = vpack.c.b16 %v2296, %v2294
      %v2333 = vpack.c.b16 %v2297, %v2295
      %v2334 = vpack.c.b16 %v2300, %v2298
      %v2335 = vpack.c.b16 %v2301, %v2299
      %v2336 = vpack.c.b16 %v2304, %v2302
      %v2337 = vpack.c.b16 %v2305, %v2303
      %2370 = vmatprep.subr.bf16.mxu0 %v2321
      %2371 = vmatpush1.bf16.msra.mxu0 %v2320
      %2372 = vmatprep.subr.bf16.mxu0 %v2319
      %2373 = vmatpush1.bf16.msra.mxu0 %v2318
      %2374 = vmatprep.subr.bf16.mxu0 %v2317
      %2375 = vmatpush1.bf16.msra.mxu0 %v2316
      %2376 = vmatprep.subr.bf16.mxu0 %v2315
      %2377 = vmatpush1.bf16.msra.mxu0 %v2314
      %2378 = vmatprep.subr.bf16.mxu0 %v2313
      %2379 = vmatpush1.bf16.msra.mxu0 %v2312
      %2380 = vmatprep.subr.bf16.mxu0 %v2311
      %2381 = vmatpush1.bf16.msra.mxu0 %v2310
      %2382 = vmatprep.subr.bf16.mxu0 %v2309
      %2383 = vmatpush1.bf16.msra.mxu0 %v2308
      %2384 = vmatprep.subr.bf16.mxu0 %v2307
      %2385 = vmatpush1.bf16.msra.mxu0 %v2306
      %2386 = vmatprep.subr.bf16.mxu0 %v2337
      %2387 = vmatpush2.bf16.msra.mxu0 %v2336
      %2388 = vmatprep.subr.bf16.mxu0 %v2335
      %2389 = vmatpush2.bf16.msra.mxu0 %v2334
      %2390 = vmatprep.subr.bf16.mxu0 %v2333
      %2391 = vmatpush2.bf16.msra.mxu0 %v2332
      %2392 = vmatprep.subr.bf16.mxu0 %v2331
      %2393 = vmatpush2.bf16.msra.mxu0 %v2330
      %2394 = vmatprep.subr.bf16.mxu0 %v2329
      %2395 = vmatpush2.bf16.msra.mxu0 %v2328
      %2396 = vmatprep.subr.bf16.mxu0 %v2327
      %2397 = vmatpush2.bf16.msra.mxu0 %v2326
      %2398 = vmatprep.subr.bf16.mxu0 %v2325
      %2399 = vmatpush2.bf16.msra.mxu0 %v2324
      %2400 = vmatprep.subr.bf16.mxu0 %v2323
      %2401 = vmatpush2.bf16.msra.mxu0 %v2322
      %2402 = vmatprep.mubr.bf16.mxu0 %v2179
      %2403 = vmatmul.mubr.bf16.gmra.mxu0 %v2178
      %v2404 = vpop.f32.mrf.mxu0
      %v2405 = vadd.f32 %v2123, %v2404
      %v2406 = vpop.f32.mrf.mxu0
      %v2407 = vadd.f32 %v2127, %v2406
      %v2408 = vpop.f32.mrf.mxu0
      %v2409 = vadd.f32 %v2123, %v2408
      %v2410 = vpop.f32.mrf.mxu0
      %v2411 = vadd.f32 %v2127, %v2410
      %2412 = vmatprep.mubr.bf16.mxu0 %v2181
      %2413 = vmatmul.mubr.bf16.gmra.mxu0 %v2180
      %v2414 = vpop.f32.mrf.mxu0
      %v2415 = vadd.f32 %v2123, %v2414
      %v2416 = vpop.f32.mrf.mxu0
      %v2417 = vadd.f32 %v2127, %v2416
      %v2418 = vpop.f32.mrf.mxu0
      %v2419 = vadd.f32 %v2123, %v2418
      %v2420 = vpop.f32.mrf.mxu0
      %v2421 = vadd.f32 %v2127, %v2420
      %2422 = vmatprep.mubr.bf16.mxu0 %v2183
      %2423 = vmatmul.mubr.bf16.gmra.mxu0 %v2182
      %v2424 = vpop.f32.mrf.mxu0
      %v2425 = vadd.f32 %v2123, %v2424
      %v2426 = vpop.f32.mrf.mxu0
      %v2427 = vadd.f32 %v2127, %v2426
      %v2428 = vpop.f32.mrf.mxu0
      %v2429 = vadd.f32 %v2123, %v2428
      %v2430 = vpop.f32.mrf.mxu0
      %v2431 = vadd.f32 %v2127, %v2430
      %2432 = vmatprep.mubr.bf16.mxu0 %v2185
      %2433 = vmatmul.mubr.bf16.gmra.mxu0 %v2184
      %v2434 = vpop.f32.mrf.mxu0
      %v2435 = vadd.f32 %v2123, %v2434
      %v2436 = vpop.f32.mrf.mxu0
      %v2437 = vadd.f32 %v2127, %v2436
      %v2438 = vpop.f32.mrf.mxu0
      %v2439 = vadd.f32 %v2123, %v2438
      %v2440 = vpop.f32.mrf.mxu0
      %v2441 = vadd.f32 %v2127, %v2440
      %2442 = vmatprep.mubr.bf16.mxu0 %v2187
      %2443 = vmatmul.mubr.bf16.gmra.mxu0 %v2186
      %v2444 = vpop.f32.mrf.mxu0
      %v2445 = vadd.f32 %v2123, %v2444
      %v2446 = vpop.f32.mrf.mxu0
      %v2447 = vadd.f32 %v2127, %v2446
      %v2448 = vpop.f32.mrf.mxu0
      %v2449 = vadd.f32 %v2123, %v2448
      %v2450 = vpop.f32.mrf.mxu0
      %v2451 = vadd.f32 %v2127, %v2450
      %2452 = vmatprep.mubr.bf16.mxu0 %v2189
      %2453 = vmatmul.mubr.bf16.gmra.mxu0 %v2188
      %v2454 = vpop.f32.mrf.mxu0
      %v2455 = vadd.f32 %v2123, %v2454
      %v2456 = vpop.f32.mrf.mxu0
      %v2457 = vadd.f32 %v2127, %v2456
      %v2458 = vpop.f32.mrf.mxu0
      %v2459 = vadd.f32 %v2123, %v2458
      %v2460 = vpop.f32.mrf.mxu0
      %v2461 = vadd.f32 %v2127, %v2460
      %2462 = vmatprep.mubr.bf16.mxu0 %v2191
      %2463 = vmatmul.mubr.bf16.gmra.mxu0 %v2190
      %v2464 = vpop.f32.mrf.mxu0
      %v2465 = vadd.f32 %v2123, %v2464
      %v2466 = vpop.f32.mrf.mxu0
      %v2467 = vadd.f32 %v2127, %v2466
      %v2468 = vpop.f32.mrf.mxu0
      %v2469 = vadd.f32 %v2123, %v2468
      %v2470 = vpop.f32.mrf.mxu0
      %v2471 = vadd.f32 %v2127, %v2470
      %2472 = vmatprep.mubr.bf16.mxu0 %v2193
      %2473 = vmatmul.mubr.bf16.gmra.mxu0 %v2192
      %v2474 = vpop.f32.mrf.mxu0
      %v2475 = vadd.f32 %v2123, %v2474
      %v2476 = vpop.f32.mrf.mxu0
      %v2477 = vadd.f32 %v2127, %v2476
      %v2478 = vpop.f32.mrf.mxu0
      %v2479 = vadd.f32 %v2123, %v2478
      %v2480 = vpop.f32.mrf.mxu0
      %v2481 = vadd.f32 %v2127, %v2480
      %2482 = vdwg.mxu0
      %v2483 = vadd.f32 %v574, %v2405
      %v2484 = vadd.f32 %v575, %v2407
      %v2485 = vadd.f32 %v576, %v2409
      %v2486 = vadd.f32 %v577, %v2411
      %v2487 = vadd.f32 %v578, %v2415
      %v2488 = vadd.f32 %v579, %v2417
      %v2489 = vadd.f32 %v580, %v2419
      %v2490 = vadd.f32 %v581, %v2421
      %v2491 = vadd.f32 %v582, %v2425
      %v2492 = vadd.f32 %v583, %v2427
      %v2493 = vadd.f32 %v584, %v2429
      %v2494 = vadd.f32 %v585, %v2431
      %v2495 = vadd.f32 %v586, %v2435
      %v2496 = vadd.f32 %v587, %v2437
      %v2497 = vadd.f32 %v588, %v2439
      %v2498 = vadd.f32 %v589, %v2441
      %v2499 = vadd.f32 %v590, %v2445
      %v2500 = vadd.f32 %v591, %v2447
      %v2501 = vadd.f32 %v592, %v2449
      %v2502 = vadd.f32 %v593, %v2451
      %v2503 = vadd.f32 %v594, %v2455
      %v2504 = vadd.f32 %v595, %v2457
      %v2505 = vadd.f32 %v596, %v2459
      %v2506 = vadd.f32 %v597, %v2461
      %v2507 = vadd.f32 %v598, %v2465
      %v2508 = vadd.f32 %v599, %v2467
      %v2509 = vadd.f32 %v600, %v2469
      %v2510 = vadd.f32 %v601, %v2471
      %v2511 = vadd.f32 %v602, %v2475
      %v2512 = vadd.f32 %v603, %v2477
      %v2513 = vadd.f32 %v604, %v2479
      %v2514 = vadd.f32 %v605, %v2481
      %v2515 = vld [vmem:[%s11] sm:$0x3]
      %v2516 = vld [vmem:[%s12] sm:$0x3]
      %v2517 = vadd.f32 %v2483, %v2484
      %2518 = vadd.xlane.f32.xlu0 %v2517
      %v2519 = vpop.xlane.xlu0 %2518
      %v2520 = vadd.f32 %v2485, %v2486
      %2521 = vadd.xlane.f32.xlu0 %v2520
      %v2522 = vpop.xlane.xlu0 %2521
      %v2523 = vadd.f32 %v2487, %v2488
      %2524 = vadd.xlane.f32.xlu0 %v2523
      %v2525 = vpop.xlane.xlu0 %2524
      %v2526 = vadd.f32 %v2489, %v2490
      %2527 = vadd.xlane.f32.xlu0 %v2526
      %v2528 = vpop.xlane.xlu0 %2527
      %v2529 = vadd.f32 %v2491, %v2492
      %2530 = vadd.xlane.f32.xlu0 %v2529
      %v2531 = vpop.xlane.xlu0 %2530
      %v2532 = vadd.f32 %v2493, %v2494
      %2533 = vadd.xlane.f32.xlu0 %v2532
      %v2534 = vpop.xlane.xlu0 %2533
      %v2535 = vadd.f32 %v2495, %v2496
      %2536 = vadd.xlane.f32.xlu0 %v2535
      %v2537 = vpop.xlane.xlu0 %2536
      %v2538 = vadd.f32 %v2497, %v2498
      %2539 = vadd.xlane.f32.xlu0 %v2538
      %v2540 = vpop.xlane.xlu0 %2539
      %v2541 = vadd.f32 %v2499, %v2500
      %2542 = vadd.xlane.f32.xlu0 %v2541
      %v2543 = vpop.xlane.xlu0 %2542
      %v2544 = vadd.f32 %v2501, %v2502
      %2545 = vadd.xlane.f32.xlu0 %v2544
      %v2546 = vpop.xlane.xlu0 %2545
      %v2547 = vadd.f32 %v2503, %v2504
      %2548 = vadd.xlane.f32.xlu0 %v2547
      %v2549 = vpop.xlane.xlu0 %2548
      %v2550 = vadd.f32 %v2505, %v2506
      %2551 = vadd.xlane.f32.xlu0 %v2550
      %v2552 = vpop.xlane.xlu0 %2551
      %v2553 = vadd.f32 %v2507, %v2508
      %2554 = vadd.xlane.f32.xlu0 %v2553
      %v2555 = vpop.xlane.xlu0 %2554
      %v2556 = vadd.f32 %v2509, %v2510
      %2557 = vadd.xlane.f32.xlu0 %v2556
      %v2558 = vpop.xlane.xlu0 %2557
      %v2559 = vadd.f32 %v2511, %v2512
      %2560 = vadd.xlane.f32.xlu0 %v2559
      %v2561 = vpop.xlane.xlu0 %2560
      %v2562 = vadd.f32 %v2513, %v2514
      %2563 = vadd.xlane.f32.xlu0 %v2562
      %v2564 = vpop.xlane.xlu0 %2563
      %v2565 = vrcp.pop 256.0
      %v2566 = vmul.f32 %v2519, %v2565
      %v2567 = vmul.f32 %v2522, %v2565
      %v2568 = vmul.f32 %v2525, %v2565
      %v2569 = vmul.f32 %v2528, %v2565
      %v2570 = vmul.f32 %v2531, %v2565
      %v2571 = vmul.f32 %v2534, %v2565
      %v2572 = vmul.f32 %v2537, %v2565
      %v2573 = vmul.f32 %v2540, %v2565
      %v2574 = vmul.f32 %v2543, %v2565
      %v2575 = vmul.f32 %v2546, %v2565
      %v2576 = vmul.f32 %v2549, %v2565
      %v2577 = vmul.f32 %v2552, %v2565
      %v2578 = vmul.f32 %v2555, %v2565
      %v2579 = vmul.f32 %v2558, %v2565
      %v2580 = vmul.f32 %v2561, %v2565
      %v2581 = vmul.f32 %v2564, %v2565
      %v2582 = vsub.f32 %v2483, %v2566
      %v2583 = vsub.f32 %v2484, %v2566
      %v2584 = vsub.f32 %v2485, %v2567
      %v2585 = vsub.f32 %v2486, %v2567
      %v2586 = vsub.f32 %v2487, %v2568
      %v2587 = vsub.f32 %v2488, %v2568
      %v2588 = vsub.f32 %v2489, %v2569
      %v2589 = vsub.f32 %v2490, %v2569
      %v2590 = vsub.f32 %v2491, %v2570
      %v2591 = vsub.f32 %v2492, %v2570
      %v2592 = vsub.f32 %v2493, %v2571
      %v2593 = vsub.f32 %v2494, %v2571
      %v2594 = vsub.f32 %v2495, %v2572
      %v2595 = vsub.f32 %v2496, %v2572
      %v2596 = vsub.f32 %v2497, %v2573
      %v2597 = vsub.f32 %v2498, %v2573
      %v2598 = vsub.f32 %v2499, %v2574
      %v2599 = vsub.f32 %v2500, %v2574
      %v2600 = vsub.f32 %v2501, %v2575
      %v2601 = vsub.f32 %v2502, %v2575
      %v2602 = vsub.f32 %v2503, %v2576
      %v2603 = vsub.f32 %v2504, %v2576
      %v2604 = vsub.f32 %v2505, %v2577
      %v2605 = vsub.f32 %v2506, %v2577
      %v2606 = vsub.f32 %v2507, %v2578
      %v2607 = vsub.f32 %v2508, %v2578
      %v2608 = vsub.f32 %v2509, %v2579
      %v2609 = vsub.f32 %v2510, %v2579
      %v2610 = vsub.f32 %v2511, %v2580
      %v2611 = vsub.f32 %v2512, %v2580
      %v2612 = vsub.f32 %v2513, %v2581
      %v2613 = vsub.f32 %v2514, %v2581
      %v2614 = vmul.f32 %v2582, %v2582
      %v2615 = vmul.f32 %v2583, %v2583
      %v2616 = vmul.f32 %v2584, %v2584
      %v2617 = vmul.f32 %v2585, %v2585
      %v2618 = vmul.f32 %v2586, %v2586
      %v2619 = vmul.f32 %v2587, %v2587
      %v2620 = vmul.f32 %v2588, %v2588
      %v2621 = vmul.f32 %v2589, %v2589
      %v2622 = vmul.f32 %v2590, %v2590
      %v2623 = vmul.f32 %v2591, %v2591
      %v2624 = vmul.f32 %v2592, %v2592
      %v2625 = vmul.f32 %v2593, %v2593
      %v2626 = vmul.f32 %v2594, %v2594
      %v2627 = vmul.f32 %v2595, %v2595
      %v2628 = vmul.f32 %v2596, %v2596
      %v2629 = vmul.f32 %v2597, %v2597
      %v2630 = vmul.f32 %v2598, %v2598
      %v2631 = vmul.f32 %v2599, %v2599
      %v2632 = vmul.f32 %v2600, %v2600
      %v2633 = vmul.f32 %v2601, %v2601
      %v2634 = vmul.f32 %v2602, %v2602
      %v2635 = vmul.f32 %v2603, %v2603
      %v2636 = vmul.f32 %v2604, %v2604
      %v2637 = vmul.f32 %v2605, %v2605
      %v2638 = vmul.f32 %v2606, %v2606
      %v2639 = vmul.f32 %v2607, %v2607
      %v2640 = vmul.f32 %v2608, %v2608
      %v2641 = vmul.f32 %v2609, %v2609
      %v2642 = vmul.f32 %v2610, %v2610
      %v2643 = vmul.f32 %v2611, %v2611
      %v2644 = vmul.f32 %v2612, %v2612
      %v2645 = vmul.f32 %v2613, %v2613
      %v2646 = vadd.f32 %v2614, %v2615
      %2647 = vadd.xlane.f32.xlu0 %v2646
      %v2648 = vpop.xlane.xlu0 %2647
      %v2649 = vadd.f32 %v2616, %v2617
      %2650 = vadd.xlane.f32.xlu0 %v2649
      %v2651 = vpop.xlane.xlu0 %2650
      %v2652 = vadd.f32 %v2618, %v2619
      %2653 = vadd.xlane.f32.xlu0 %v2652
      %v2654 = vpop.xlane.xlu0 %2653
      %v2655 = vadd.f32 %v2620, %v2621
      %2656 = vadd.xlane.f32.xlu0 %v2655
      %v2657 = vpop.xlane.xlu0 %2656
      %v2658 = vadd.f32 %v2622, %v2623
      %2659 = vadd.xlane.f32.xlu0 %v2658
      %v2660 = vpop.xlane.xlu0 %2659
      %v2661 = vadd.f32 %v2624, %v2625
      %2662 = vadd.xlane.f32.xlu0 %v2661
      %v2663 = vpop.xlane.xlu0 %2662
      %v2664 = vadd.f32 %v2626, %v2627
      %2665 = vadd.xlane.f32.xlu0 %v2664
      %v2666 = vpop.xlane.xlu0 %2665
      %v2667 = vadd.f32 %v2628, %v2629
      %2668 = vadd.xlane.f32.xlu0 %v2667
      %v2669 = vpop.xlane.xlu0 %2668
      %v2670 = vadd.f32 %v2630, %v2631
      %2671 = vadd.xlane.f32.xlu0 %v2670
      %v2672 = vpop.xlane.xlu0 %2671
      %v2673 = vadd.f32 %v2632, %v2633
      %2674 = vadd.xlane.f32.xlu0 %v2673
      %v2675 = vpop.xlane.xlu0 %2674
      %v2676 = vadd.f32 %v2634, %v2635
      %2677 = vadd.xlane.f32.xlu0 %v2676
      %v2678 = vpop.xlane.xlu0 %2677
      %v2679 = vadd.f32 %v2636, %v2637
      %2680 = vadd.xlane.f32.xlu0 %v2679
      %v2681 = vpop.xlane.xlu0 %2680
      %v2682 = vadd.f32 %v2638, %v2639
      %2683 = vadd.xlane.f32.xlu0 %v2682
      %v2684 = vpop.xlane.xlu0 %2683
      %v2685 = vadd.f32 %v2640, %v2641
      %2686 = vadd.xlane.f32.xlu0 %v2685
      %v2687 = vpop.xlane.xlu0 %2686
      %v2688 = vadd.f32 %v2642, %v2643
      %2689 = vadd.xlane.f32.xlu0 %v2688
      %v2690 = vpop.xlane.xlu0 %2689
      %v2691 = vadd.f32 %v2644, %v2645
      %2692 = vadd.xlane.f32.xlu0 %v2691
      %v2693 = vpop.xlane.xlu0 %2692
      %v2694 = vmul.f32 %v2648, %v2565
      %v2695 = vmul.f32 %v2651, %v2565
      %v2696 = vmul.f32 %v2654, %v2565
      %v2697 = vmul.f32 %v2657, %v2565
      %v2698 = vmul.f32 %v2660, %v2565
      %v2699 = vmul.f32 %v2663, %v2565
      %v2700 = vmul.f32 %v2666, %v2565
      %v2701 = vmul.f32 %v2669, %v2565
      %v2702 = vmul.f32 %v2672, %v2565
      %v2703 = vmul.f32 %v2675, %v2565
      %v2704 = vmul.f32 %v2678, %v2565
      %v2705 = vmul.f32 %v2681, %v2565
      %v2706 = vmul.f32 %v2684, %v2565
      %v2707 = vmul.f32 %v2687, %v2565
      %v2708 = vmul.f32 %v2690, %v2565
      %v2709 = vmul.f32 %v2693, %v2565
      %v2710 = vadd.f32 %v2694, 1e-05
      %v2711 = vadd.f32 %v2695, 1e-05
      %v2712 = vadd.f32 %v2696, 1e-05
      %v2713 = vadd.f32 %v2697, 1e-05
      %v2714 = vadd.f32 %v2698, 1e-05
      %v2715 = vadd.f32 %v2699, 1e-05
      %v2716 = vadd.f32 %v2700, 1e-05
      %v2717 = vadd.f32 %v2701, 1e-05
      %v2718 = vadd.f32 %v2702, 1e-05
      %v2719 = vadd.f32 %v2703, 1e-05
      %v2720 = vadd.f32 %v2704, 1e-05
      %v2721 = vadd.f32 %v2705, 1e-05
      %v2722 = vadd.f32 %v2706, 1e-05
      %v2723 = vadd.f32 %v2707, 1e-05
      %v2724 = vadd.f32 %v2708, 1e-05
      %v2725 = vadd.f32 %v2709, 1e-05
      %v2726 = vrsqrt.pop %v2710
      %v2727 = vrsqrt.pop %v2711
      %v2728 = vrsqrt.pop %v2712
      %v2729 = vrsqrt.pop %v2713
      %v2730 = vrsqrt.pop %v2714
      %v2731 = vrsqrt.pop %v2715
      %v2732 = vrsqrt.pop %v2716
      %v2733 = vrsqrt.pop %v2717
      %v2734 = vrsqrt.pop %v2718
      %v2735 = vrsqrt.pop %v2719
      %v2736 = vrsqrt.pop %v2720
      %v2737 = vrsqrt.pop %v2721
      %v2738 = vrsqrt.pop %v2722
      %v2739 = vrsqrt.pop %v2723
      %v2740 = vrsqrt.pop %v2724
      %v2741 = vrsqrt.pop %v2725
      %v2742 = vmul.f32 %v2582, %v2726
      %v2743 = vmul.f32 %v2583, %v2726
      %v2744 = vmul.f32 %v2584, %v2727
      %v2745 = vmul.f32 %v2585, %v2727
      %v2746 = vmul.f32 %v2586, %v2728
      %v2747 = vmul.f32 %v2587, %v2728
      %v2748 = vmul.f32 %v2588, %v2729
      %v2749 = vmul.f32 %v2589, %v2729
      %v2750 = vmul.f32 %v2590, %v2730
      %v2751 = vmul.f32 %v2591, %v2730
      %v2752 = vmul.f32 %v2592, %v2731
      %v2753 = vmul.f32 %v2593, %v2731
      %v2754 = vmul.f32 %v2594, %v2732
      %v2755 = vmul.f32 %v2595, %v2732
      %v2756 = vmul.f32 %v2596, %v2733
      %v2757 = vmul.f32 %v2597, %v2733
      %v2758 = vmul.f32 %v2598, %v2734
      %v2759 = vmul.f32 %v2599, %v2734
      %v2760 = vmul.f32 %v2600, %v2735
      %v2761 = vmul.f32 %v2601, %v2735
      %v2762 = vmul.f32 %v2602, %v2736
      %v2763 = vmul.f32 %v2603, %v2736
      %v2764 = vmul.f32 %v2604, %v2737
      %v2765 = vmul.f32 %v2605, %v2737
      %v2766 = vmul.f32 %v2606, %v2738
      %v2767 = vmul.f32 %v2607, %v2738
      %v2768 = vmul.f32 %v2608, %v2739
      %v2769 = vmul.f32 %v2609, %v2739
      %v2770 = vmul.f32 %v2610, %v2740
      %v2771 = vmul.f32 %v2611, %v2740
      %v2772 = vmul.f32 %v2612, %v2741
      %v2773 = vmul.f32 %v2613, %v2741
      %v2775 = vlaneseq
      %v2776 = vshrl.u32 %v2775, 7
      %v2777 = vsub.s32 0, %v2776
      %v2778 = vrot.slane %v2515, %v2777
      %v2779 = vlaneseq
      %v2780 = vshrl.u32 %v2779, 7
      %v2781 = vsub.s32 1, %v2780
      %v2782 = vrot.slane %v2515, %v2781
      %v2785 = vmul.f32 %v2742, %v2778
      %v2786 = vmul.f32 %v2743, %v2782
      %v2787 = vmul.f32 %v2744, %v2778
      %v2788 = vmul.f32 %v2745, %v2782
      %v2789 = vmul.f32 %v2746, %v2778
      %v2790 = vmul.f32 %v2747, %v2782
      %v2791 = vmul.f32 %v2748, %v2778
      %v2792 = vmul.f32 %v2749, %v2782
      %v2793 = vmul.f32 %v2750, %v2778
      %v2794 = vmul.f32 %v2751, %v2782
      %v2795 = vmul.f32 %v2752, %v2778
      %v2796 = vmul.f32 %v2753, %v2782
      %v2797 = vmul.f32 %v2754, %v2778
      %v2798 = vmul.f32 %v2755, %v2782
      %v2799 = vmul.f32 %v2756, %v2778
      %v2800 = vmul.f32 %v2757, %v2782
      %v2801 = vmul.f32 %v2758, %v2778
      %v2802 = vmul.f32 %v2759, %v2782
      %v2803 = vmul.f32 %v2760, %v2778
      %v2804 = vmul.f32 %v2761, %v2782
      %v2805 = vmul.f32 %v2762, %v2778
      %v2806 = vmul.f32 %v2763, %v2782
      %v2807 = vmul.f32 %v2764, %v2778
      %v2808 = vmul.f32 %v2765, %v2782
      %v2809 = vmul.f32 %v2766, %v2778
      %v2810 = vmul.f32 %v2767, %v2782
      %v2811 = vmul.f32 %v2768, %v2778
      %v2812 = vmul.f32 %v2769, %v2782
      %v2813 = vmul.f32 %v2770, %v2778
      %v2814 = vmul.f32 %v2771, %v2782
      %v2815 = vmul.f32 %v2772, %v2778
      %v2816 = vmul.f32 %v2773, %v2782
      %v2818 = vlaneseq
      %v2819 = vshrl.u32 %v2818, 7
      %v2820 = vsub.s32 0, %v2819
      %v2821 = vrot.slane %v2516, %v2820
      %v2822 = vlaneseq
      %v2823 = vshrl.u32 %v2822, 7
      %v2824 = vsub.s32 1, %v2823
      %v2825 = vrot.slane %v2516, %v2824
      %v2828 = vadd.f32 %v2785, %v2821
      %v2829 = vadd.f32 %v2786, %v2825
      %v2830 = vadd.f32 %v2787, %v2821
      %v2831 = vadd.f32 %v2788, %v2825
      %v2832 = vadd.f32 %v2789, %v2821
      %v2833 = vadd.f32 %v2790, %v2825
      %v2834 = vadd.f32 %v2791, %v2821
      %v2835 = vadd.f32 %v2792, %v2825
      %v2836 = vadd.f32 %v2793, %v2821
      %v2837 = vadd.f32 %v2794, %v2825
      %v2838 = vadd.f32 %v2795, %v2821
      %v2839 = vadd.f32 %v2796, %v2825
      %v2840 = vadd.f32 %v2797, %v2821
      %v2841 = vadd.f32 %v2798, %v2825
      %v2842 = vadd.f32 %v2799, %v2821
      %v2843 = vadd.f32 %v2800, %v2825
      %v2844 = vadd.f32 %v2801, %v2821
      %v2845 = vadd.f32 %v2802, %v2825
      %v2846 = vadd.f32 %v2803, %v2821
      %v2847 = vadd.f32 %v2804, %v2825
      %v2848 = vadd.f32 %v2805, %v2821
      %v2849 = vadd.f32 %v2806, %v2825
      %v2850 = vadd.f32 %v2807, %v2821
      %v2851 = vadd.f32 %v2808, %v2825
      %v2852 = vadd.f32 %v2809, %v2821
      %v2853 = vadd.f32 %v2810, %v2825
      %v2854 = vadd.f32 %v2811, %v2821
      %v2855 = vadd.f32 %v2812, %v2825
      %v2856 = vadd.f32 %v2813, %v2821
      %v2857 = vadd.f32 %v2814, %v2825
      %v2858 = vadd.f32 %v2815, %v2821
      %v2859 = vadd.f32 %v2816, %v2825
      %v2860 = vpack.c.bf16 %v2830, %v2828
      %v2861 = vpack.c.bf16 %v2831, %v2829
      %v2862 = vpack.c.bf16 %v2834, %v2832
      %v2863 = vpack.c.bf16 %v2835, %v2833
      %v2864 = vpack.c.bf16 %v2838, %v2836
      %v2865 = vpack.c.bf16 %v2839, %v2837
      %v2866 = vpack.c.bf16 %v2842, %v2840
      %v2867 = vpack.c.bf16 %v2843, %v2841
      %v2868 = vpack.c.bf16 %v2846, %v2844
      %v2869 = vpack.c.bf16 %v2847, %v2845
      %v2870 = vpack.c.bf16 %v2850, %v2848
      %v2871 = vpack.c.bf16 %v2851, %v2849
      %v2872 = vpack.c.bf16 %v2854, %v2852
      %v2873 = vpack.c.bf16 %v2855, %v2853
      %v2874 = vpack.c.bf16 %v2858, %v2856
      %v2875 = vpack.c.bf16 %v2859, %v2857
      %v2876 = vld [vmem:[%s7] sm:$0xf]
      %v2877 = vld [vmem:[%s7 + $0x4] sm:$0xf]
      %v2878 = vld [vmem:[%s7 + $0x8] sm:$0xf]
      %v2879 = vld [vmem:[%s7 + $0xc] sm:$0xf]
      %v2880 = vld [vmem:[%s7 + $0x10] sm:$0xf]
      %v2881 = vld [vmem:[%s7 + $0x14] sm:$0xf]
      %v2882 = vld [vmem:[%s7 + $0x18] sm:$0xf]
      %v2883 = vld [vmem:[%s7 + $0x1c] sm:$0xf]
      %v2884 = vld [vmem:[%s7 + $0x20] sm:$0xf]
      %v2885 = vld [vmem:[%s7 + $0x24] sm:$0xf]
      %v2886 = vld [vmem:[%s7 + $0x28] sm:$0xf]
      %v2887 = vld [vmem:[%s7 + $0x2c] sm:$0xf]
      %v2888 = vld [vmem:[%s7 + $0x30] sm:$0xf]
      %v2889 = vld [vmem:[%s7 + $0x34] sm:$0xf]
      %v2890 = vld [vmem:[%s7 + $0x38] sm:$0xf]
      %v2891 = vld [vmem:[%s7 + $0x3c] sm:$0xf]
      %v2892 = vld [vmem:[%s7 + $0x40] sm:$0xf]
      %v2893 = vld [vmem:[%s7 + $0x44] sm:$0xf]
      %v2894 = vld [vmem:[%s7 + $0x48] sm:$0xf]
      %v2895 = vld [vmem:[%s7 + $0x4c] sm:$0xf]
      %v2896 = vld [vmem:[%s7 + $0x50] sm:$0xf]
      %v2897 = vld [vmem:[%s7 + $0x54] sm:$0xf]
      %v2898 = vld [vmem:[%s7 + $0x58] sm:$0xf]
      %v2899 = vld [vmem:[%s7 + $0x5c] sm:$0xf]
      %v2900 = vld [vmem:[%s7 + $0x60] sm:$0xf]
      %v2901 = vld [vmem:[%s7 + $0x64] sm:$0xf]
      %v2902 = vld [vmem:[%s7 + $0x68] sm:$0xf]
      %v2903 = vld [vmem:[%s7 + $0x6c] sm:$0xf]
      %v2904 = vld [vmem:[%s7 + $0x70] sm:$0xf]
      %v2905 = vld [vmem:[%s7 + $0x74] sm:$0xf]
      %v2906 = vld [vmem:[%s7 + $0x78] sm:$0xf]
      %v2907 = vld [vmem:[%s7 + $0x7c] sm:$0xf]
      %v2908 = vld [vmem:[%s8] sm:$0x1]
      %v2910 = vlaneseq
      %v2911 = vshrl.u32 %v2910, 7
      %v2912 = vsub.s32 0, %v2911
      %v2913 = vrot.slane %v2908, %v2912
      %v2947 = vunpack.c.l.b16 %v2876
      %v2948 = vunpack.c.l.b16 %v2877
      %v2949 = vunpack.c.l.b16 %v2878
      %v2950 = vunpack.c.l.b16 %v2879
      %v2951 = vunpack.c.l.b16 %v2880
      %v2952 = vunpack.c.l.b16 %v2881
      %v2953 = vunpack.c.l.b16 %v2882
      %v2954 = vunpack.c.l.b16 %v2883
      %v2955 = vunpack.c.l.b16 %v2884
      %v2956 = vunpack.c.l.b16 %v2885
      %v2957 = vunpack.c.l.b16 %v2886
      %v2958 = vunpack.c.l.b16 %v2887
      %v2959 = vunpack.c.l.b16 %v2888
      %v2960 = vunpack.c.l.b16 %v2889
      %v2961 = vunpack.c.l.b16 %v2890
      %v2962 = vunpack.c.l.b16 %v2891
      %v2963 = vunpack.c.l.b16 %v2892
      %v2964 = vunpack.c.l.b16 %v2893
      %v2965 = vunpack.c.l.b16 %v2894
      %v2966 = vunpack.c.l.b16 %v2895
      %v2967 = vunpack.c.l.b16 %v2896
      %v2968 = vunpack.c.l.b16 %v2897
      %v2969 = vunpack.c.l.b16 %v2898
      %v2970 = vunpack.c.l.b16 %v2899
      %v2971 = vunpack.c.l.b16 %v2900
      %v2972 = vunpack.c.l.b16 %v2901
      %v2973 = vunpack.c.l.b16 %v2902
      %v2974 = vunpack.c.l.b16 %v2903
      %v2975 = vunpack.c.l.b16 %v2904
      %v2976 = vunpack.c.l.b16 %v2905
      %v2977 = vunpack.c.l.b16 %v2906
      %v2978 = vunpack.c.l.b16 %v2907
      %v2979 = vpack.c.b16 %v2948, %v2947
      %v2980 = vpack.c.b16 %v2950, %v2949
      %v2981 = vpack.c.b16 %v2952, %v2951
      %v2982 = vpack.c.b16 %v2954, %v2953
      %v2983 = vpack.c.b16 %v2956, %v2955
      %v2984 = vpack.c.b16 %v2958, %v2957
      %v2985 = vpack.c.b16 %v2960, %v2959
      %v2986 = vpack.c.b16 %v2962, %v2961
      %v2987 = vpack.c.b16 %v2964, %v2963
      %v2988 = vpack.c.b16 %v2966, %v2965
      %v2989 = vpack.c.b16 %v2968, %v2967
      %v2990 = vpack.c.b16 %v2970, %v2969
      %v2991 = vpack.c.b16 %v2972, %v2971
      %v2992 = vpack.c.b16 %v2974, %v2973
      %v2993 = vpack.c.b16 %v2976, %v2975
      %v2994 = vpack.c.b16 %v2978, %v2977
      %3011 = vmatprep.subr.bf16.mxu0 0
      %3012 = vmatpush1.bf16.msra.mxu0 %v2986
      %3013 = vmatprep.subr.bf16.mxu0 0
      %3014 = vmatpush1.bf16.msra.mxu0 %v2985
      %3015 = vmatprep.subr.bf16.mxu0 0
      %3016 = vmatpush1.bf16.msra.mxu0 %v2984
      %3017 = vmatprep.subr.bf16.mxu0 0
      %3018 = vmatpush1.bf16.msra.mxu0 %v2983
      %3019 = vmatprep.subr.bf16.mxu0 0
      %3020 = vmatpush1.bf16.msra.mxu0 %v2982
      %3021 = vmatprep.subr.bf16.mxu0 0
      %3022 = vmatpush1.bf16.msra.mxu0 %v2981
      %3023 = vmatprep.subr.bf16.mxu0 0
      %3024 = vmatpush1.bf16.msra.mxu0 %v2980
      %3025 = vmatprep.subr.bf16.mxu0 0
      %3026 = vmatpush1.bf16.msra.mxu0 %v2979
      %3027 = vmatprep.subr.bf16.mxu0 0
      %3028 = vmatpush2.bf16.msra.mxu0 %v2994
      %3029 = vmatprep.subr.bf16.mxu0 0
      %3030 = vmatpush2.bf16.msra.mxu0 %v2993
      %3031 = vmatprep.subr.bf16.mxu0 0
      %3032 = vmatpush2.bf16.msra.mxu0 %v2992
      %3033 = vmatprep.subr.bf16.mxu0 0
      %3034 = vmatpush2.bf16.msra.mxu0 %v2991
      %3035 = vmatprep.subr.bf16.mxu0 0
      %3036 = vmatpush2.bf16.msra.mxu0 %v2990
      %3037 = vmatprep.subr.bf16.mxu0 0
      %3038 = vmatpush2.bf16.msra.mxu0 %v2989
      %3039 = vmatprep.subr.bf16.mxu0 0
      %3040 = vmatpush2.bf16.msra.mxu0 %v2988
      %3041 = vmatprep.subr.bf16.mxu0 0
      %3042 = vmatpush2.bf16.msra.mxu0 %v2987
      %3043 = vmatprep.mubr.bf16.mxu0 %v2861
      %3044 = vmatmul.mubr.bf16.gmra.mxu0 %v2860
      %v3045 = vpop.f32.mrf.mxu0
      %v3046 = vadd.f32 %v2913, %v3045
      %v3047 = vpop.f32.mrf.mxu0
      %v3048 = vpop.f32.mrf.mxu0
      %v3049 = vadd.f32 %v2913, %v3048
      %v3050 = vpop.f32.mrf.mxu0
      %3051 = vmatprep.mubr.bf16.mxu0 %v2863
      %3052 = vmatmul.mubr.bf16.gmra.mxu0 %v2862
      %v3053 = vpop.f32.mrf.mxu0
      %v3054 = vadd.f32 %v2913, %v3053
      %v3055 = vpop.f32.mrf.mxu0
      %v3056 = vpop.f32.mrf.mxu0
      %v3057 = vadd.f32 %v2913, %v3056
      %v3058 = vpop.f32.mrf.mxu0
      %3059 = vmatprep.mubr.bf16.mxu0 %v2865
      %3060 = vmatmul.mubr.bf16.gmra.mxu0 %v2864
      %v3061 = vpop.f32.mrf.mxu0
      %v3062 = vadd.f32 %v2913, %v3061
      %v3063 = vpop.f32.mrf.mxu0
      %v3064 = vpop.f32.mrf.mxu0
      %v3065 = vadd.f32 %v2913, %v3064
      %v3066 = vpop.f32.mrf.mxu0
      %3067 = vmatprep.mubr.bf16.mxu0 %v2867
      %3068 = vmatmul.mubr.bf16.gmra.mxu0 %v2866
      %v3069 = vpop.f32.mrf.mxu0
      %v3070 = vadd.f32 %v2913, %v3069
      %v3071 = vpop.f32.mrf.mxu0
      %v3072 = vpop.f32.mrf.mxu0
      %v3073 = vadd.f32 %v2913, %v3072
      %v3074 = vpop.f32.mrf.mxu0
      %3075 = vmatprep.mubr.bf16.mxu0 %v2869
      %3076 = vmatmul.mubr.bf16.gmra.mxu0 %v2868
      %v3077 = vpop.f32.mrf.mxu0
      %v3078 = vadd.f32 %v2913, %v3077
      %v3079 = vpop.f32.mrf.mxu0
      %v3080 = vpop.f32.mrf.mxu0
      %v3081 = vadd.f32 %v2913, %v3080
      %v3082 = vpop.f32.mrf.mxu0
      %3083 = vmatprep.mubr.bf16.mxu0 %v2871
      %3084 = vmatmul.mubr.bf16.gmra.mxu0 %v2870
      %v3085 = vpop.f32.mrf.mxu0
      %v3086 = vadd.f32 %v2913, %v3085
      %v3087 = vpop.f32.mrf.mxu0
      %v3088 = vpop.f32.mrf.mxu0
      %v3089 = vadd.f32 %v2913, %v3088
      %v3090 = vpop.f32.mrf.mxu0
      %3091 = vmatprep.mubr.bf16.mxu0 %v2873
      %3092 = vmatmul.mubr.bf16.gmra.mxu0 %v2872
      %v3093 = vpop.f32.mrf.mxu0
      %v3094 = vadd.f32 %v2913, %v3093
      %v3095 = vpop.f32.mrf.mxu0
      %v3096 = vpop.f32.mrf.mxu0
      %v3097 = vadd.f32 %v2913, %v3096
      %v3098 = vpop.f32.mrf.mxu0
      %3099 = vmatprep.mubr.bf16.mxu0 %v2875
      %3100 = vmatmul.mubr.bf16.gmra.mxu0 %v2874
      %v3101 = vpop.f32.mrf.mxu0
      %v3102 = vadd.f32 %v2913, %v3101
      %v3103 = vpop.f32.mrf.mxu0
      %v3104 = vpop.f32.mrf.mxu0
      %v3105 = vadd.f32 %v2913, %v3104
      %v3106 = vpop.f32.mrf.mxu0
      %3107 = vdwg.mxu0
      %v3108 = vmax.f32 %v3046, 0.0
      %v3109 = vmax.f32 %v3049, 0.0
      %v3110 = vmax.f32 %v3054, 0.0
      %v3111 = vmax.f32 %v3057, 0.0
      %v3112 = vmax.f32 %v3062, 0.0
      %v3113 = vmax.f32 %v3065, 0.0
      %v3114 = vmax.f32 %v3070, 0.0
      %v3115 = vmax.f32 %v3073, 0.0
      %v3116 = vmax.f32 %v3078, 0.0
      %v3117 = vmax.f32 %v3081, 0.0
      %v3118 = vmax.f32 %v3086, 0.0
      %v3119 = vmax.f32 %v3089, 0.0
      %v3120 = vmax.f32 %v3094, 0.0
      %v3121 = vmax.f32 %v3097, 0.0
      %v3122 = vmax.f32 %v3102, 0.0
      %v3123 = vmax.f32 %v3105, 0.0
      %v3124 = vpack.c.bf16 %v3109, %v3108
      %v3125 = vpack.c.bf16 %v3111, %v3110
      %v3126 = vpack.c.bf16 %v3113, %v3112
      %v3127 = vpack.c.bf16 %v3115, %v3114
      %v3128 = vpack.c.bf16 %v3117, %v3116
      %v3129 = vpack.c.bf16 %v3119, %v3118
      %v3130 = vpack.c.bf16 %v3121, %v3120
      %v3131 = vpack.c.bf16 %v3123, %v3122
      %v3132 = vld [vmem:[%s9] sm:$0xff]
      %v3133 = vld [vmem:[%s9 + $0x8] sm:$0xff]
      %v3134 = vld [vmem:[%s9 + $0x10] sm:$0xff]
      %v3135 = vld [vmem:[%s9 + $0x18] sm:$0xff]
      %v3136 = vld [vmem:[%s9 + $0x20] sm:$0xff]
      %v3137 = vld [vmem:[%s9 + $0x28] sm:$0xff]
      %v3138 = vld [vmem:[%s9 + $0x30] sm:$0xff]
      %v3139 = vld [vmem:[%s9 + $0x38] sm:$0xff]
      %v3140 = vld [vmem:[%s10] sm:$0x3]
      %v3142 = vlaneseq
      %v3143 = vshrl.u32 %v3142, 7
      %v3144 = vsub.s32 0, %v3143
      %v3145 = vrot.slane %v3140, %v3144
      %v3146 = vlaneseq
      %v3147 = vshrl.u32 %v3146, 7
      %v3148 = vsub.s32 1, %v3147
      %v3149 = vrot.slane %v3140, %v3148
      %v3160 = vunpack.c.l.b16 %v3132
      %v3161 = vunpack.c.h.b16 %v3132
      %v3162 = vunpack.c.l.b16 %v3133
      %v3163 = vunpack.c.h.b16 %v3133
      %v3164 = vunpack.c.l.b16 %v3134
      %v3165 = vunpack.c.h.b16 %v3134
      %v3166 = vunpack.c.l.b16 %v3135
      %v3167 = vunpack.c.h.b16 %v3135
      %v3168 = vunpack.c.l.b16 %v3136
      %v3169 = vunpack.c.h.b16 %v3136
      %v3170 = vunpack.c.l.b16 %v3137
      %v3171 = vunpack.c.h.b16 %v3137
      %v3172 = vunpack.c.l.b16 %v3138
      %v3173 = vunpack.c.h.b16 %v3138
      %v3174 = vunpack.c.l.b16 %v3139
      %v3175 = vunpack.c.h.b16 %v3139
      %v3176 = vpack.c.b16 %v3162, %v3160
      %v3177 = vpack.c.b16 %v3163, %v3161
      %v3178 = vpack.c.b16 %v3166, %v3164
      %v3179 = vpack.c.b16 %v3167, %v3165
      %v3180 = vpack.c.b16 %v3170, %v3168
      %v3181 = vpack.c.b16 %v3171, %v3169
      %v3182 = vpack.c.b16 %v3174, %v3172
      %v3183 = vpack.c.b16 %v3175, %v3173
      %vm3192 = vcmask 523264
      %v3194 = vsel %vm3192, %v3124, 0
      %v3197 = vsel %vm3192, %v3125, 0
      %v3200 = vsel %vm3192, %v3126, 0
      %v3203 = vsel %vm3192, %v3127, 0
      %v3206 = vsel %vm3192, %v3128, 0
      %v3209 = vsel %vm3192, %v3129, 0
      %v3212 = vsel %vm3192, %v3130, 0
      %v3215 = vsel %vm3192, %v3131, 0
      %3217 = vmatprep.subr.bf16.mxu0 0
      %3218 = vmatpush1.bf16.msra.mxu0 0
      %3219 = vmatprep.subr.bf16.mxu0 0
      %3220 = vmatpush1.bf16.msra.mxu0 0
      %3221 = vmatprep.subr.bf16.mxu0 0
      %3222 = vmatpush1.bf16.msra.mxu0 0
      %3223 = vmatprep.subr.bf16.mxu0 0
      %3224 = vmatpush1.bf16.msra.mxu0 0
      %3225 = vmatprep.subr.bf16.mxu0 %v3183
      %3226 = vmatpush1.bf16.msra.mxu0 %v3182
      %3227 = vmatprep.subr.bf16.mxu0 %v3181
      %3228 = vmatpush1.bf16.msra.mxu0 %v3180
      %3229 = vmatprep.subr.bf16.mxu0 %v3179
      %3230 = vmatpush1.bf16.msra.mxu0 %v3178
      %3231 = vmatprep.subr.bf16.mxu0 %v3177
      %3232 = vmatpush1.bf16.msra.mxu0 %v3176
      %3233 = vmatprep.subr.bf16.mxu0 0
      %3234 = vmatpush2.bf16.msra.mxu0 0
      %3235 = vmatprep.subr.bf16.mxu0 0
      %3236 = vmatpush2.bf16.msra.mxu0 0
      %3237 = vmatprep.subr.bf16.mxu0 0
      %3238 = vmatpush2.bf16.msra.mxu0 0
      %3239 = vmatprep.subr.bf16.mxu0 0
      %3240 = vmatpush2.bf16.msra.mxu0 0
      %3241 = vmatprep.subr.bf16.mxu0 0
      %3242 = vmatpush2.bf16.msra.mxu0 0
      %3243 = vmatprep.subr.bf16.mxu0 0
      %3244 = vmatpush2.bf16.msra.mxu0 0
      %3245 = vmatprep.subr.bf16.mxu0 0
      %3246 = vmatpush2.bf16.msra.mxu0 0
      %3247 = vmatprep.subr.bf16.mxu0 0
      %3248 = vmatpush2.bf16.msra.mxu0 0
      %3249 = vmatprep.mubr.bf16.mxu0 0
      %3250 = vmatmul.mubr.bf16.gmra.mxu0 %v3194
      %v3251 = vpop.f32.mrf.mxu0
      %v3252 = vadd.f32 %v3145, %v3251
      %v3253 = vpop.f32.mrf.mxu0
      %v3254 = vadd.f32 %v3149, %v3253
      %v3255 = vpop.f32.mrf.mxu0
      %v3256 = vadd.f32 %v3145, %v3255
      %v3257 = vpop.f32.mrf.mxu0
      %v3258 = vadd.f32 %v3149, %v3257
      %3259 = vmatprep.mubr.bf16.mxu0 0
      %3260 = vmatmul.mubr.bf16.gmra.mxu0 %v3197
      %v3261 = vpop.f32.mrf.mxu0
      %v3262 = vadd.f32 %v3145, %v3261
      %v3263 = vpop.f32.mrf.mxu0
      %v3264 = vadd.f32 %v3149, %v3263
      %v3265 = vpop.f32.mrf.mxu0
      %v3266 = vadd.f32 %v3145, %v3265
      %v3267 = vpop.f32.mrf.mxu0
      %v3268 = vadd.f32 %v3149, %v3267
      %3269 = vmatprep.mubr.bf16.mxu0 0
      %3270 = vmatmul.mubr.bf16.gmra.mxu0 %v3200
      %v3271 = vpop.f32.mrf.mxu0
      %v3272 = vadd.f32 %v3145, %v3271
      %v3273 = vpop.f32.mrf.mxu0
      %v3274 = vadd.f32 %v3149, %v3273
      %v3275 = vpop.f32.mrf.mxu0
      %v3276 = vadd.f32 %v3145, %v3275
      %v3277 = vpop.f32.mrf.mxu0
      %v3278 = vadd.f32 %v3149, %v3277
      %3279 = vmatprep.mubr.bf16.mxu0 0
      %3280 = vmatmul.mubr.bf16.gmra.mxu0 %v3203
      %v3281 = vpop.f32.mrf.mxu0
      %v3282 = vadd.f32 %v3145, %v3281
      %v3283 = vpop.f32.mrf.mxu0
      %v3284 = vadd.f32 %v3149, %v3283
      %v3285 = vpop.f32.mrf.mxu0
      %v3286 = vadd.f32 %v3145, %v3285
      %v3287 = vpop.f32.mrf.mxu0
      %v3288 = vadd.f32 %v3149, %v3287
      %3289 = vmatprep.mubr.bf16.mxu0 0
      %3290 = vmatmul.mubr.bf16.gmra.mxu0 %v3206
      %v3291 = vpop.f32.mrf.mxu0
      %v3292 = vadd.f32 %v3145, %v3291
      %v3293 = vpop.f32.mrf.mxu0
      %v3294 = vadd.f32 %v3149, %v3293
      %v3295 = vpop.f32.mrf.mxu0
      %v3296 = vadd.f32 %v3145, %v3295
      %v3297 = vpop.f32.mrf.mxu0
      %v3298 = vadd.f32 %v3149, %v3297
      %3299 = vmatprep.mubr.bf16.mxu0 0
      %3300 = vmatmul.mubr.bf16.gmra.mxu0 %v3209
      %v3301 = vpop.f32.mrf.mxu0
      %v3302 = vadd.f32 %v3145, %v3301
      %v3303 = vpop.f32.mrf.mxu0
      %v3304 = vadd.f32 %v3149, %v3303
      %v3305 = vpop.f32.mrf.mxu0
      %v3306 = vadd.f32 %v3145, %v3305
      %v3307 = vpop.f32.mrf.mxu0
      %v3308 = vadd.f32 %v3149, %v3307
      %3309 = vmatprep.mubr.bf16.mxu0 0
      %3310 = vmatmul.mubr.bf16.gmra.mxu0 %v3212
      %v3311 = vpop.f32.mrf.mxu0
      %v3312 = vadd.f32 %v3145, %v3311
      %v3313 = vpop.f32.mrf.mxu0
      %v3314 = vadd.f32 %v3149, %v3313
      %v3315 = vpop.f32.mrf.mxu0
      %v3316 = vadd.f32 %v3145, %v3315
      %v3317 = vpop.f32.mrf.mxu0
      %v3318 = vadd.f32 %v3149, %v3317
      %3319 = vmatprep.mubr.bf16.mxu0 0
      %3320 = vmatmul.mubr.bf16.gmra.mxu0 %v3215
      %v3321 = vpop.f32.mrf.mxu0
      %v3322 = vadd.f32 %v3145, %v3321
      %v3323 = vpop.f32.mrf.mxu0
      %v3324 = vadd.f32 %v3149, %v3323
      %v3325 = vpop.f32.mrf.mxu0
      %v3326 = vadd.f32 %v3145, %v3325
      %v3327 = vpop.f32.mrf.mxu0
      %v3328 = vadd.f32 %v3149, %v3327
      %3329 = vdwg.mxu0
      %v3330 = vadd.f32 %v2828, %v3252
      %v3331 = vadd.f32 %v2829, %v3254
      %v3332 = vadd.f32 %v2830, %v3256
      %v3333 = vadd.f32 %v2831, %v3258
      %v3334 = vadd.f32 %v2832, %v3262
      %v3335 = vadd.f32 %v2833, %v3264
      %v3336 = vadd.f32 %v2834, %v3266
      %v3337 = vadd.f32 %v2835, %v3268
      %v3338 = vadd.f32 %v2836, %v3272
      %v3339 = vadd.f32 %v2837, %v3274
      %v3340 = vadd.f32 %v2838, %v3276
      %v3341 = vadd.f32 %v2839, %v3278
      %v3342 = vadd.f32 %v2840, %v3282
      %v3343 = vadd.f32 %v2841, %v3284
      %v3344 = vadd.f32 %v2842, %v3286
      %v3345 = vadd.f32 %v2843, %v3288
      %v3346 = vadd.f32 %v2844, %v3292
      %v3347 = vadd.f32 %v2845, %v3294
      %v3348 = vadd.f32 %v2846, %v3296
      %v3349 = vadd.f32 %v2847, %v3298
      %v3350 = vadd.f32 %v2848, %v3302
      %v3351 = vadd.f32 %v2849, %v3304
      %v3352 = vadd.f32 %v2850, %v3306
      %v3353 = vadd.f32 %v2851, %v3308
      %v3354 = vadd.f32 %v2852, %v3312
      %v3355 = vadd.f32 %v2853, %v3314
      %v3356 = vadd.f32 %v2854, %v3316
      %v3357 = vadd.f32 %v2855, %v3318
      %v3358 = vadd.f32 %v2856, %v3322
      %v3359 = vadd.f32 %v2857, %v3324
      %v3360 = vadd.f32 %v2858, %v3326
      %v3361 = vadd.f32 %v2859, %v3328
      %v3362 = vld [vmem:[%s13] sm:$0x3]
      %v3363 = vld [vmem:[%s14] sm:$0x3]
      %v3364 = vadd.f32 %v3330, %v3331
      %3365 = vadd.xlane.f32.xlu0 %v3364
      %v3366 = vpop.xlane.xlu0 %3365
      %v3367 = vadd.f32 %v3332, %v3333
      %3368 = vadd.xlane.f32.xlu0 %v3367
      %v3369 = vpop.xlane.xlu0 %3368
      %v3370 = vadd.f32 %v3334, %v3335
      %3371 = vadd.xlane.f32.xlu0 %v3370
      %v3372 = vpop.xlane.xlu0 %3371
      %v3373 = vadd.f32 %v3336, %v3337
      %3374 = vadd.xlane.f32.xlu0 %v3373
      %v3375 = vpop.xlane.xlu0 %3374
      %v3376 = vadd.f32 %v3338, %v3339
      %3377 = vadd.xlane.f32.xlu0 %v3376
      %v3378 = vpop.xlane.xlu0 %3377
      %v3379 = vadd.f32 %v3340, %v3341
      %3380 = vadd.xlane.f32.xlu0 %v3379
      %v3381 = vpop.xlane.xlu0 %3380
      %v3382 = vadd.f32 %v3342, %v3343
      %3383 = vadd.xlane.f32.xlu0 %v3382
      %v3384 = vpop.xlane.xlu0 %3383
      %v3385 = vadd.f32 %v3344, %v3345
      %3386 = vadd.xlane.f32.xlu0 %v3385
      %v3387 = vpop.xlane.xlu0 %3386
      %v3388 = vadd.f32 %v3346, %v3347
      %3389 = vadd.xlane.f32.xlu0 %v3388
      %v3390 = vpop.xlane.xlu0 %3389
      %v3391 = vadd.f32 %v3348, %v3349
      %3392 = vadd.xlane.f32.xlu0 %v3391
      %v3393 = vpop.xlane.xlu0 %3392
      %v3394 = vadd.f32 %v3350, %v3351
      %3395 = vadd.xlane.f32.xlu0 %v3394
      %v3396 = vpop.xlane.xlu0 %3395
      %v3397 = vadd.f32 %v3352, %v3353
      %3398 = vadd.xlane.f32.xlu0 %v3397
      %v3399 = vpop.xlane.xlu0 %3398
      %v3400 = vadd.f32 %v3354, %v3355
      %3401 = vadd.xlane.f32.xlu0 %v3400
      %v3402 = vpop.xlane.xlu0 %3401
      %v3403 = vadd.f32 %v3356, %v3357
      %3404 = vadd.xlane.f32.xlu0 %v3403
      %v3405 = vpop.xlane.xlu0 %3404
      %v3406 = vadd.f32 %v3358, %v3359
      %3407 = vadd.xlane.f32.xlu0 %v3406
      %v3408 = vpop.xlane.xlu0 %3407
      %v3409 = vadd.f32 %v3360, %v3361
      %3410 = vadd.xlane.f32.xlu0 %v3409
      %v3411 = vpop.xlane.xlu0 %3410
      %v3412 = vmul.f32 %v3366, %v2565
      %v3413 = vmul.f32 %v3369, %v2565
      %v3414 = vmul.f32 %v3372, %v2565
      %v3415 = vmul.f32 %v3375, %v2565
      %v3416 = vmul.f32 %v3378, %v2565
      %v3417 = vmul.f32 %v3381, %v2565
      %v3418 = vmul.f32 %v3384, %v2565
      %v3419 = vmul.f32 %v3387, %v2565
      %v3420 = vmul.f32 %v3390, %v2565
      %v3421 = vmul.f32 %v3393, %v2565
      %v3422 = vmul.f32 %v3396, %v2565
      %v3423 = vmul.f32 %v3399, %v2565
      %v3424 = vmul.f32 %v3402, %v2565
      %v3425 = vmul.f32 %v3405, %v2565
      %v3426 = vmul.f32 %v3408, %v2565
      %v3427 = vmul.f32 %v3411, %v2565
      %v3428 = vsub.f32 %v3330, %v3412
      %v3429 = vsub.f32 %v3331, %v3412
      %v3430 = vsub.f32 %v3332, %v3413
      %v3431 = vsub.f32 %v3333, %v3413
      %v3432 = vsub.f32 %v3334, %v3414
      %v3433 = vsub.f32 %v3335, %v3414
      %v3434 = vsub.f32 %v3336, %v3415
      %v3435 = vsub.f32 %v3337, %v3415
      %v3436 = vsub.f32 %v3338, %v3416
      %v3437 = vsub.f32 %v3339, %v3416
      %v3438 = vsub.f32 %v3340, %v3417
      %v3439 = vsub.f32 %v3341, %v3417
      %v3440 = vsub.f32 %v3342, %v3418
      %v3441 = vsub.f32 %v3343, %v3418
      %v3442 = vsub.f32 %v3344, %v3419
      %v3443 = vsub.f32 %v3345, %v3419
      %v3444 = vsub.f32 %v3346, %v3420
      %v3445 = vsub.f32 %v3347, %v3420
      %v3446 = vsub.f32 %v3348, %v3421
      %v3447 = vsub.f32 %v3349, %v3421
      %v3448 = vsub.f32 %v3350, %v3422
      %v3449 = vsub.f32 %v3351, %v3422
      %v3450 = vsub.f32 %v3352, %v3423
      %v3451 = vsub.f32 %v3353, %v3423
      %v3452 = vsub.f32 %v3354, %v3424
      %v3453 = vsub.f32 %v3355, %v3424
      %v3454 = vsub.f32 %v3356, %v3425
      %v3455 = vsub.f32 %v3357, %v3425
      %v3456 = vsub.f32 %v3358, %v3426
      %v3457 = vsub.f32 %v3359, %v3426
      %v3458 = vsub.f32 %v3360, %v3427
      %v3459 = vsub.f32 %v3361, %v3427
      %v3460 = vmul.f32 %v3428, %v3428
      %v3461 = vmul.f32 %v3429, %v3429
      %v3462 = vmul.f32 %v3430, %v3430
      %v3463 = vmul.f32 %v3431, %v3431
      %v3464 = vmul.f32 %v3432, %v3432
      %v3465 = vmul.f32 %v3433, %v3433
      %v3466 = vmul.f32 %v3434, %v3434
      %v3467 = vmul.f32 %v3435, %v3435
      %v3468 = vmul.f32 %v3436, %v3436
      %v3469 = vmul.f32 %v3437, %v3437
      %v3470 = vmul.f32 %v3438, %v3438
      %v3471 = vmul.f32 %v3439, %v3439
      %v3472 = vmul.f32 %v3440, %v3440
      %v3473 = vmul.f32 %v3441, %v3441
      %v3474 = vmul.f32 %v3442, %v3442
      %v3475 = vmul.f32 %v3443, %v3443
      %v3476 = vmul.f32 %v3444, %v3444
      %v3477 = vmul.f32 %v3445, %v3445
      %v3478 = vmul.f32 %v3446, %v3446
      %v3479 = vmul.f32 %v3447, %v3447
      %v3480 = vmul.f32 %v3448, %v3448
      %v3481 = vmul.f32 %v3449, %v3449
      %v3482 = vmul.f32 %v3450, %v3450
      %v3483 = vmul.f32 %v3451, %v3451
      %v3484 = vmul.f32 %v3452, %v3452
      %v3485 = vmul.f32 %v3453, %v3453
      %v3486 = vmul.f32 %v3454, %v3454
      %v3487 = vmul.f32 %v3455, %v3455
      %v3488 = vmul.f32 %v3456, %v3456
      %v3489 = vmul.f32 %v3457, %v3457
      %v3490 = vmul.f32 %v3458, %v3458
      %v3491 = vmul.f32 %v3459, %v3459
      %v3492 = vadd.f32 %v3460, %v3461
      %3493 = vadd.xlane.f32.xlu0 %v3492
      %v3494 = vpop.xlane.xlu0 %3493
      %v3495 = vadd.f32 %v3462, %v3463
      %3496 = vadd.xlane.f32.xlu0 %v3495
      %v3497 = vpop.xlane.xlu0 %3496
      %v3498 = vadd.f32 %v3464, %v3465
      %3499 = vadd.xlane.f32.xlu0 %v3498
      %v3500 = vpop.xlane.xlu0 %3499
      %v3501 = vadd.f32 %v3466, %v3467
      %3502 = vadd.xlane.f32.xlu0 %v3501
      %v3503 = vpop.xlane.xlu0 %3502
      %v3504 = vadd.f32 %v3468, %v3469
      %3505 = vadd.xlane.f32.xlu0 %v3504
      %v3506 = vpop.xlane.xlu0 %3505
      %v3507 = vadd.f32 %v3470, %v3471
      %3508 = vadd.xlane.f32.xlu0 %v3507
      %v3509 = vpop.xlane.xlu0 %3508
      %v3510 = vadd.f32 %v3472, %v3473
      %3511 = vadd.xlane.f32.xlu0 %v3510
      %v3512 = vpop.xlane.xlu0 %3511
      %v3513 = vadd.f32 %v3474, %v3475
      %3514 = vadd.xlane.f32.xlu0 %v3513
      %v3515 = vpop.xlane.xlu0 %3514
      %v3516 = vadd.f32 %v3476, %v3477
      %3517 = vadd.xlane.f32.xlu0 %v3516
      %v3518 = vpop.xlane.xlu0 %3517
      %v3519 = vadd.f32 %v3478, %v3479
      %3520 = vadd.xlane.f32.xlu0 %v3519
      %v3521 = vpop.xlane.xlu0 %3520
      %v3522 = vadd.f32 %v3480, %v3481
      %3523 = vadd.xlane.f32.xlu0 %v3522
      %v3524 = vpop.xlane.xlu0 %3523
      %v3525 = vadd.f32 %v3482, %v3483
      %3526 = vadd.xlane.f32.xlu0 %v3525
      %v3527 = vpop.xlane.xlu0 %3526
      %v3528 = vadd.f32 %v3484, %v3485
      %3529 = vadd.xlane.f32.xlu0 %v3528
      %v3530 = vpop.xlane.xlu0 %3529
      %v3531 = vadd.f32 %v3486, %v3487
      %3532 = vadd.xlane.f32.xlu0 %v3531
      %v3533 = vpop.xlane.xlu0 %3532
      %v3534 = vadd.f32 %v3488, %v3489
      %3535 = vadd.xlane.f32.xlu0 %v3534
      %v3536 = vpop.xlane.xlu0 %3535
      %v3537 = vadd.f32 %v3490, %v3491
      %3538 = vadd.xlane.f32.xlu0 %v3537
      %v3539 = vpop.xlane.xlu0 %3538
      %v3540 = vmul.f32 %v3494, %v2565
      %v3541 = vmul.f32 %v3497, %v2565
      %v3542 = vmul.f32 %v3500, %v2565
      %v3543 = vmul.f32 %v3503, %v2565
      %v3544 = vmul.f32 %v3506, %v2565
      %v3545 = vmul.f32 %v3509, %v2565
      %v3546 = vmul.f32 %v3512, %v2565
      %v3547 = vmul.f32 %v3515, %v2565
      %v3548 = vmul.f32 %v3518, %v2565
      %v3549 = vmul.f32 %v3521, %v2565
      %v3550 = vmul.f32 %v3524, %v2565
      %v3551 = vmul.f32 %v3527, %v2565
      %v3552 = vmul.f32 %v3530, %v2565
      %v3553 = vmul.f32 %v3533, %v2565
      %v3554 = vmul.f32 %v3536, %v2565
      %v3555 = vmul.f32 %v3539, %v2565
      %v3556 = vadd.f32 %v3540, 1e-05
      %v3557 = vadd.f32 %v3541, 1e-05
      %v3558 = vadd.f32 %v3542, 1e-05
      %v3559 = vadd.f32 %v3543, 1e-05
      %v3560 = vadd.f32 %v3544, 1e-05
      %v3561 = vadd.f32 %v3545, 1e-05
      %v3562 = vadd.f32 %v3546, 1e-05
      %v3563 = vadd.f32 %v3547, 1e-05
      %v3564 = vadd.f32 %v3548, 1e-05
      %v3565 = vadd.f32 %v3549, 1e-05
      %v3566 = vadd.f32 %v3550, 1e-05
      %v3567 = vadd.f32 %v3551, 1e-05
      %v3568 = vadd.f32 %v3552, 1e-05
      %v3569 = vadd.f32 %v3553, 1e-05
      %v3570 = vadd.f32 %v3554, 1e-05
      %v3571 = vadd.f32 %v3555, 1e-05
      %v3572 = vrsqrt.pop %v3556
      %v3573 = vrsqrt.pop %v3557
      %v3574 = vrsqrt.pop %v3558
      %v3575 = vrsqrt.pop %v3559
      %v3576 = vrsqrt.pop %v3560
      %v3577 = vrsqrt.pop %v3561
      %v3578 = vrsqrt.pop %v3562
      %v3579 = vrsqrt.pop %v3563
      %v3580 = vrsqrt.pop %v3564
      %v3581 = vrsqrt.pop %v3565
      %v3582 = vrsqrt.pop %v3566
      %v3583 = vrsqrt.pop %v3567
      %v3584 = vrsqrt.pop %v3568
      %v3585 = vrsqrt.pop %v3569
      %v3586 = vrsqrt.pop %v3570
      %v3587 = vrsqrt.pop %v3571
      %v3588 = vmul.f32 %v3428, %v3572
      %v3589 = vmul.f32 %v3429, %v3572
      %v3590 = vmul.f32 %v3430, %v3573
      %v3591 = vmul.f32 %v3431, %v3573
      %v3592 = vmul.f32 %v3432, %v3574
      %v3593 = vmul.f32 %v3433, %v3574
      %v3594 = vmul.f32 %v3434, %v3575
      %v3595 = vmul.f32 %v3435, %v3575
      %v3596 = vmul.f32 %v3436, %v3576
      %v3597 = vmul.f32 %v3437, %v3576
      %v3598 = vmul.f32 %v3438, %v3577
      %v3599 = vmul.f32 %v3439, %v3577
      %v3600 = vmul.f32 %v3440, %v3578
      %v3601 = vmul.f32 %v3441, %v3578
      %v3602 = vmul.f32 %v3442, %v3579
      %v3603 = vmul.f32 %v3443, %v3579
      %v3604 = vmul.f32 %v3444, %v3580
      %v3605 = vmul.f32 %v3445, %v3580
      %v3606 = vmul.f32 %v3446, %v3581
      %v3607 = vmul.f32 %v3447, %v3581
      %v3608 = vmul.f32 %v3448, %v3582
      %v3609 = vmul.f32 %v3449, %v3582
      %v3610 = vmul.f32 %v3450, %v3583
      %v3611 = vmul.f32 %v3451, %v3583
      %v3612 = vmul.f32 %v3452, %v3584
      %v3613 = vmul.f32 %v3453, %v3584
      %v3614 = vmul.f32 %v3454, %v3585
      %v3615 = vmul.f32 %v3455, %v3585
      %v3616 = vmul.f32 %v3456, %v3586
      %v3617 = vmul.f32 %v3457, %v3586
      %v3618 = vmul.f32 %v3458, %v3587
      %v3619 = vmul.f32 %v3459, %v3587
      %v3621 = vlaneseq
      %v3622 = vshrl.u32 %v3621, 7
      %v3623 = vsub.s32 0, %v3622
      %v3624 = vrot.slane %v3362, %v3623
      %v3625 = vlaneseq
      %v3626 = vshrl.u32 %v3625, 7
      %v3627 = vsub.s32 1, %v3626
      %v3628 = vrot.slane %v3362, %v3627
      %v3631 = vmul.f32 %v3588, %v3624
      %v3632 = vmul.f32 %v3589, %v3628
      %v3633 = vmul.f32 %v3590, %v3624
      %v3634 = vmul.f32 %v3591, %v3628
      %v3635 = vmul.f32 %v3592, %v3624
      %v3636 = vmul.f32 %v3593, %v3628
      %v3637 = vmul.f32 %v3594, %v3624
      %v3638 = vmul.f32 %v3595, %v3628
      %v3639 = vmul.f32 %v3596, %v3624
      %v3640 = vmul.f32 %v3597, %v3628
      %v3641 = vmul.f32 %v3598, %v3624
      %v3642 = vmul.f32 %v3599, %v3628
      %v3643 = vmul.f32 %v3600, %v3624
      %v3644 = vmul.f32 %v3601, %v3628
      %v3645 = vmul.f32 %v3602, %v3624
      %v3646 = vmul.f32 %v3603, %v3628
      %v3647 = vmul.f32 %v3604, %v3624
      %v3648 = vmul.f32 %v3605, %v3628
      %v3649 = vmul.f32 %v3606, %v3624
      %v3650 = vmul.f32 %v3607, %v3628
      %v3651 = vmul.f32 %v3608, %v3624
      %v3652 = vmul.f32 %v3609, %v3628
      %v3653 = vmul.f32 %v3610, %v3624
      %v3654 = vmul.f32 %v3611, %v3628
      %v3655 = vmul.f32 %v3612, %v3624
      %v3656 = vmul.f32 %v3613, %v3628
      %v3657 = vmul.f32 %v3614, %v3624
      %v3658 = vmul.f32 %v3615, %v3628
      %v3659 = vmul.f32 %v3616, %v3624
      %v3660 = vmul.f32 %v3617, %v3628
      %v3661 = vmul.f32 %v3618, %v3624
      %v3662 = vmul.f32 %v3619, %v3628
      %v3664 = vlaneseq
      %v3665 = vshrl.u32 %v3664, 7
      %v3666 = vsub.s32 0, %v3665
      %v3667 = vrot.slane %v3363, %v3666
      %v3668 = vlaneseq
      %v3669 = vshrl.u32 %v3668, 7
      %v3670 = vsub.s32 1, %v3669
      %v3671 = vrot.slane %v3363, %v3670
      %v3674 = vadd.f32 %v3631, %v3667
      %v3675 = vadd.f32 %v3632, %v3671
      %v3676 = vadd.f32 %v3633, %v3667
      %v3677 = vadd.f32 %v3634, %v3671
      %v3678 = vadd.f32 %v3635, %v3667
      %v3679 = vadd.f32 %v3636, %v3671
      %v3680 = vadd.f32 %v3637, %v3667
      %v3681 = vadd.f32 %v3638, %v3671
      %v3682 = vadd.f32 %v3639, %v3667
      %v3683 = vadd.f32 %v3640, %v3671
      %v3684 = vadd.f32 %v3641, %v3667
      %v3685 = vadd.f32 %v3642, %v3671
      %v3686 = vadd.f32 %v3643, %v3667
      %v3687 = vadd.f32 %v3644, %v3671
      %v3688 = vadd.f32 %v3645, %v3667
      %v3689 = vadd.f32 %v3646, %v3671
      %v3690 = vadd.f32 %v3647, %v3667
      %v3691 = vadd.f32 %v3648, %v3671
      %v3692 = vadd.f32 %v3649, %v3667
      %v3693 = vadd.f32 %v3650, %v3671
      %v3694 = vadd.f32 %v3651, %v3667
      %v3695 = vadd.f32 %v3652, %v3671
      %v3696 = vadd.f32 %v3653, %v3667
      %v3697 = vadd.f32 %v3654, %v3671
      %v3698 = vadd.f32 %v3655, %v3667
      %v3699 = vadd.f32 %v3656, %v3671
      %v3700 = vadd.f32 %v3657, %v3667
      %v3701 = vadd.f32 %v3658, %v3671
      %v3702 = vadd.f32 %v3659, %v3667
      %v3703 = vadd.f32 %v3660, %v3671
      %v3704 = vadd.f32 %v3661, %v3667
      %v3705 = vadd.f32 %v3662, %v3671
      %3706 = vst [vmem:[%s571] sm:$0xff] %v3674
      %3707 = vst [vmem:[%s571 + $0x8] sm:$0xff] %v3675
      %3708 = vst [vmem:[%s571 + $0x10] sm:$0xff] %v3676
      %3709 = vst [vmem:[%s571 + $0x18] sm:$0xff] %v3677
      %3710 = vst [vmem:[%s571 + $0x20] sm:$0xff] %v3678
      %3711 = vst [vmem:[%s571 + $0x28] sm:$0xff] %v3679
      %3712 = vst [vmem:[%s571 + $0x30] sm:$0xff] %v3680
      %3713 = vst [vmem:[%s571 + $0x38] sm:$0xff] %v3681
      %3714 = vst [vmem:[%s571 + $0x40] sm:$0xff] %v3682
      %3715 = vst [vmem:[%s571 + $0x48] sm:$0xff] %v3683
      %3716 = vst [vmem:[%s571 + $0x50] sm:$0xff] %v3684
      %3717 = vst [vmem:[%s571 + $0x58] sm:$0xff] %v3685
      %3718 = vst [vmem:[%s571 + $0x60] sm:$0xff] %v3686
      %3719 = vst [vmem:[%s571 + $0x68] sm:$0xff] %v3687
      %3720 = vst [vmem:[%s571 + $0x70] sm:$0xff] %v3688
      %3721 = vst [vmem:[%s571 + $0x78] sm:$0xff] %v3689
      %3722 = vst [vmem:[%s571 + $0x80] sm:$0xff] %v3690
      %3723 = vst [vmem:[%s571 + $0x88] sm:$0xff] %v3691
      %3724 = vst [vmem:[%s571 + $0x90] sm:$0xff] %v3692
      %3725 = vst [vmem:[%s571 + $0x98] sm:$0xff] %v3693
      %3726 = vst [vmem:[%s571 + $0xa0] sm:$0xff] %v3694
      %3727 = vst [vmem:[%s571 + $0xa8] sm:$0xff] %v3695
      %3728 = vst [vmem:[%s571 + $0xb0] sm:$0xff] %v3696
      %3729 = vst [vmem:[%s571 + $0xb8] sm:$0xff] %v3697
      %3730 = vst [vmem:[%s571 + $0xc0] sm:$0xff] %v3698
      %3731 = vst [vmem:[%s571 + $0xc8] sm:$0xff] %v3699
      %3732 = vst [vmem:[%s571 + $0xd0] sm:$0xff] %v3700
      %3733 = vst [vmem:[%s571 + $0xd8] sm:$0xff] %v3701
      %3734 = vst [vmem:[%s571 + $0xe0] sm:$0xff] %v3702
      %3735 = vst [vmem:[%s571 + $0xe8] sm:$0xff] %v3703
      %3736 = vst [vmem:[%s571 + $0xf0] sm:$0xff] %v3704
      %3737 = vst [vmem:[%s571 + $0xf8] sm:$0xff] %v3705
      %s3738 = smul.u32 16, %s31
      %p3739 = scmp.lt.s32.totalorder %s30, 1
      %s3740 = scalar_select %p3739, %s30, 1
      %p3741 = scmp.lt.s32.totalorder %s3738, 15
      %s3742 = scalar_select %p3741, %s3738, 15
      %s3743 = smul.addr %s3742, 2
      %s3744 = smul.addr %s3740, 32
      %s3745 = sadd.s32 %s3743, %s3744
      %s3746 = smul.addr %s3745, 8
      %s3747 = scalar_lea.vmem %s15, %s3746
      // Predicated region
      $region81: #{audio_encoder_forward.5} parent=79 // pred_check
        %p3748 = pneg %p390
      $region82: #{audio_encoder_forward.5} parent=79 // pred_check_branch
        %3750 = sbr.rel (%p3748) target = $region84
      $region83: #{audio_encoder_forward.5} parent=79 // pred_region
        %s3751 = smul.u32 16, %s31
      $region84: #{audio_encoder_forward.5} parent=79 // pred_fallthru
        _
    $region80: #{audio_encoder_forward.5} parent=5 // pred_fallthru
      _
    %p3752 = scmp.le.s32.totalorder 2, %s21
    // Predicated region
    $region85: #{audio_encoder_forward.5} parent=5 // pred_check
      %p3753 = pneg %p3752
    $region86: #{audio_encoder_forward.5} parent=5 // pred_check_branch
      %3755 = sbr.rel (%p3753) target = $region88
    $region87: #{audio_encoder_forward.5} parent=5 // pred_region
      %s3756 = ssub.s32 %s21, 2
      // Predicated region
      $region89: #{audio_encoder_forward.5} parent=87 // pred_check
        %p3757 = pneg %p396
      $region90: #{audio_encoder_forward.5} parent=87 // pred_check_branch
        %3759 = sbr.rel (%p3757) target = $region92
      $region91: #{audio_encoder_forward.5} parent=87 // pred_region
        %s3760 = smul.u32 16, %s33
        %p3761 = scmp.lt.s32.totalorder %s32, 1
        %s3762 = scalar_select %p3761, %s32, 1
        %p3763 = scmp.lt.s32.totalorder %s3760, 15
        %s3764 = scalar_select %p3763, %s3760, 15
        %s3765 = smul.addr %s3764, 2
        %s3766 = smul.addr %s3762, 32
        %s3767 = sadd.s32 %s3765, %s3766
        %s3768 = smul.addr %s3767, 8
        %s3769 = scalar_lea.vmem %s15, %s3768
      $region92: #{audio_encoder_forward.5} parent=87 // pred_fallthru
        _
    $region88: #{audio_encoder_forward.5} parent=5 // pred_fallthru
      _
  $region6: #{audio_encoder_forward.5} parent=0 // loop_footer
    %s25 = sadd.s32 1, %s21
  $region7: #{audio_encoder_forward.5} parent=0 // loop_footer_branch
    %20 = sbr.rel target = $region3
  $region8: #{audio_encoder_forward.5} parent=0 // loop_exit
    _

</llo_original>
